<compile_context>
chip_gen: v7x
topology: tpu7x:2x2x1
jax: 0.10.0
libtpu: 0.0.40
codegen_flags: <defaults>
</compile_context>

<pallas_src>
import functools

import jax
import jax.numpy as jnp
import numpy as np
from jax.experimental import pallas as pl
from jax.experimental.pallas import tpu as pltpu


# --------------------------------------------------------------------------
# Pallas kernel: full SlotAttention iteration loop for Bt batch elements.
# --------------------------------------------------------------------------
def _slot_attention_kernel(*refs, iters, eps, mxu_dtype, gru_fused):
    if gru_fused:
        (x_ref, mask_ref, slots0_ref,
         wq_ref, wk_ref, wv_ref, wih_ref, whh_ref, grub_ref,
         w1_ref, b1_ref, w2_ref, vec_ref, out_ref) = refs
    else:
        (x_ref, mask_ref, slots0_ref,
         wq_ref, wk_ref, wv_ref,
         wih_r_ref, wih_z_ref, wih_n_ref, whh_r_ref, whh_z_ref, whh_n_ref,
         w1_ref, b1_ref, w2_ref, vec_ref, out_ref) = refs

    f32 = jnp.float32
    Bt, N, D = x_ref.shape
    S = slots0_ref.shape[1]

    # ---- flat activation slabs (leading-dim merges only) -------------------
    x = x_ref[...].reshape(Bt * N, D)          # (Bt*N, D)
    slots = slots0_ref[...].reshape(Bt * S, D)  # (Bt*S, D)

    # ---- packed (1, D) parameter rows --------------------------------------
    vec = vec_ref[...]                          # (R, D)

    def row(i):
        return vec[i:i + 1, :]                  # (1, D), sublane-broadcasts

    bq, bk, bv, b2 = row(0), row(1), row(2), row(3)
    g_in, beta_in = row(4), row(5)
    g_s, beta_s = row(6), row(7)
    g_ff, beta_ff = row(8), row(9)
    b1 = b1_ref[...]                            # (1, H)

    # ---- weights: un-broadcast, cast once for the MXU ----------------------
    wq = wq_ref[...].astype(mxu_dtype)          # 1/sqrt(D) already folded in
    wk = wk_ref[...].astype(mxu_dtype)
    wv = wv_ref[...].astype(mxu_dtype)
    w1 = w1_ref[...].astype(mxu_dtype)
    w2 = w2_ref[...].astype(mxu_dtype)
    if gru_fused:
        wih = wih_ref[...].astype(mxu_dtype)    # (D, 3D)
        whh = whh_ref[...].astype(mxu_dtype)
        grub = grub_ref[...]                    # (2, 3D): [bih; bhh]
        bih, bhh = grub[0:1, :], grub[1:2, :]
    else:
        wih_r = wih_r_ref[...].astype(mxu_dtype)
        wih_z = wih_z_ref[...].astype(mxu_dtype)
        wih_n = wih_n_ref[...].astype(mxu_dtype)
        whh_r = whh_r_ref[...].astype(mxu_dtype)
        whh_z = whh_z_ref[...].astype(mxu_dtype)
        whh_n = whh_n_ref[...].astype(mxu_dtype)
        bih_r, bih_z, bih_n = row(10), row(11), row(12)
        bhh_r, bhh_z, bhh_n = row(13), row(14), row(15)

    # hoisted loop invariant (3-iter loop is statically unrolled; JAX does not
    # CSE broadcast_in_dim).
    mask_zero = jnp.broadcast_to(mask_ref[...] == 0.0, (Bt, S, N))

    def layernorm(h, g, beta):
        mu = jnp.mean(h, axis=-1, keepdims=True)
        var = jnp.mean((h - mu) ** 2, axis=-1, keepdims=True)
        return (h - mu) * jax.lax.rsqrt(var + 1e-5) * g + beta

    def mdot(a, w):
        # flat (rows, K) x (K, E) slab matmul, f32 accumulation on the MXU.
        return jnp.dot(a.astype(mxu_dtype), w, preferred_element_type=f32)

    # ---- loop invariant: norm_input + k/v projections on (Bt*N, D) ---------
    xn = layernorm(x, g_in, beta_in)
    k = mdot(xn, wk) + bk                       # (Bt*N, D)
    v = mdot(xn, wv) + bv                       # (Bt*N, D)
    k3 = k.reshape(Bt, N, D)
    # hoist the K orientation: per-batch 2-D transposes, paid once.
    kT_mx = jnp.stack([k3[b].T for b in range(Bt)], axis=0).astype(mxu_dtype)
    v_mx = v.reshape(Bt, N, D).astype(mxu_dtype)

    for _ in range(iters):
        slots_prev = slots                      # (Bt*S, D)

        sn = layernorm(slots, g_s, beta_s)
        q = mdot(sn, wq) + bq                   # scale folded into wq / bq
        q3 = q.reshape(Bt, S, D).astype(mxu_dtype)

        # (S, N) orientation; kT already materialized -> plain batched matmul.
        dots = jnp.einsum("bsd,bdn->bsn", q3, kT_mx,
                          preferred_element_type=f32)       # (Bt, S, N)

        # softmax over the slot (sublane) axis, + eps
        m = jnp.max(dots, axis=1, keepdims=True)
        e = jnp.exp(dots - m)
        attn = e * pl.reciprocal(jnp.sum(e, axis=1, keepdims=True),
                                 approx=True) + eps
        # masked_fill(mask == 0, 0), exact renorm over the token (lane) axis
        attn = jnp.where(mask_zero, 0.0, attn)
        attn = attn / jnp.sum(attn, axis=2, keepdims=True)

        upd = jnp.einsum("bsn,bnd->bsd", attn.astype(mxu_dtype), v_mx,
                         preferred_element_type=f32)        # (Bt, S, D)
        u = upd.reshape(Bt * S, D)

        # GRUCell, PyTorch gate order (r, z, n).
        if gru_fused:
            gi = mdot(u, wih) + bih             # (Bt*S, 3D), lane-aligned slices
            gh = mdot(slots_prev, whh) + bhh
            r = jax.nn.sigmoid(gi[:, 0:D] + gh[:, 0:D])
            z = jax.nn.sigmoid(gi[:, D:2 * D] + gh[:, D:2 * D])
            n_cand = jnp.tanh(gi[:, 2 * D:3 * D] + r * gh[:, 2 * D:3 * D])
        else:
            r = jax.nn.sigmoid(mdot(u, wih_r) + bih_r
                               + mdot(slots_prev, whh_r) + bhh_r)
            z = jax.nn.sigmoid(mdot(u, wih_z) + bih_z
                               + mdot(slots_prev, whh_z) + bhh_z)
            n_cand = jnp.tanh(mdot(u, wih_n) + bih_n
                              + r * (mdot(slots_prev, whh_n) + bhh_n))
        slots = (1.0 - z) * n_cand + z * slots_prev

        # residual MLP
        pf = layernorm(slots, g_ff, beta_ff)
        h1 = jnp.maximum(mdot(pf, w1) + b1, 0.0)
        slots = slots + mdot(h1, w2) + b2

    # lane-dense store: out block is (Bt, 1, S*D); S static lane slices.
    slots3 = slots.reshape(Bt, S, D)
    for s in range(S):
        out_ref[:, :, s * D:(s + 1) * D] = (
            slots3[:, s:s + 1, :].astype(out_ref.dtype))


# --------------------------------------------------------------------------
# Generation-aware batch-tile selection.
# --------------------------------------------------------------------------
def _num_tensorcores():
    """1 for single-TC chips (v5e/v6e), 2 for megacore parts (v4/v5p/v7x)."""
    try:
        kind = jax.devices()[0].device_kind.lower()
    except Exception:
        return 2
    single_core = ("v5e", "v5 lite", "v5lite", "v6e", "v6 lite", "v6lite",
                   "trillium")
    if any(tag in kind for tag in single_core):
        return 1
    return 2


def _pick_batch_tile(B, N, S, D, H, n_cores, itemsize=4,
                     vmem_budget=24 * 1024 * 1024):
    """Largest batch tile that fits a conservative VMEM estimate and leaves
    >= 2 grid steps per TensorCore on megacore parts (grid=1 on single-TC)."""
    min_steps = 1 if n_cores <= 1 else 2 * n_cores
    weight_bytes = (9 * D * D + 2 * D * H + H + 16 * D) * itemsize

    def footprint(bt):
        io = 2 * bt * (N * D + S * D + N + S * D) * itemsize   # dbl-buffered blocks
        tmp = bt * (4 * N * D + 10 * S * D + 4 * S * N + S * H) * itemsize
        return io + tmp + weight_bytes

    fallback = None
    for bt in range(B, 0, -1):
        if B % bt or footprint(bt) > vmem_budget:
            continue
        if B // bt >= min_steps:
            return bt
        if fallback is None:
            fallback = bt
    return fallback if fallback is not None else 1


# --------------------------------------------------------------------------
# Wrapper: param prep (scale folding, GRU split/fuse, bias packing),
# BlockSpecs, pallas_call.
# --------------------------------------------------------------------------
def slot_attention_pallas(inputs, mask, slots0, params, *, iters=3, eps=1e-8,
                          batch_tile=None, mxu_dtype=jnp.float32):
    B, N, D = inputs.shape
    S = slots0.shape[1]
    H = params["w1"].shape[1]

    n_cores = _num_tensorcores()
    Bt = (batch_tile if batch_tile is not None
          else _pick_batch_tile(B, N, S, D, H, n_cores))
    assert B % Bt == 0, f"batch {B} must be divisible by batch_tile {Bt}"

    scale = D ** (-0.5)
    wq_s = params["wq"] * scale          # fold 1/sqrt(D) into the q projection
    bq_s = params["bq"] * scale

    gru_fused = (D % 128 == 0)

    # Pack the tiny (1, D) vectors into one (R, D) array: one DMA / BlockSpec.
    rows = [bq_s, params["bk"], params["bv"], params["b2"],
            params["g_in"], params["beta_in"], params["g_s"], params["beta_s"],
            params["g_ff"], params["beta_ff"]]
    if gru_fused:
        gru_arrays = [params["wih"], params["whh"],
                      jnp.concatenate([params["bih"], params["bhh"]], axis=0)]
    else:
        wih, whh, bih, bhh = (params["wih"], params["whh"],
                              params["bih"], params["bhh"])
        gru_arrays = [wih[:, 0:D], wih[:, D:2 * D], wih[:, 2 * D:3 * D],
                      whh[:, 0:D], whh[:, D:2 * D], whh[:, 2 * D:3 * D]]
        rows += [bih[:, 0:D], bih[:, D:2 * D], bih[:, 2 * D:3 * D],
                 bhh[:, 0:D], bhh[:, D:2 * D], bhh[:, 2 * D:3 * D]]
    vec_pack = jnp.concatenate(rows, axis=0)            # (R, D)

    param_arrays = ([wq_s, params["wk"], params["wv"]] + gru_arrays
                    + [params["w1"], params["b1"], params["w2"], vec_pack])

    # Token mask, lane-major: (B, 1, N) so it broadcasts against (Bt, S, N).
    mask3 = mask.reshape(B, 1, N).astype(jnp.float32)

    def const_spec(arr):
        nd = arr.ndim
        return pl.BlockSpec(arr.shape, lambda i, _nd=nd: (0,) * _nd)

    in_specs = [
        pl.BlockSpec((Bt, N, D), lambda i: (i, 0, 0)),   # inputs
        pl.BlockSpec((Bt, 1, N), lambda i: (i, 0, 0)),   # mask
        pl.BlockSpec((Bt, S, D), lambda i: (i, 0, 0)),   # initial slots
    ]
    in_specs += [const_spec(p) for p in param_arrays]    # grid-invariant params

    kernel = functools.partial(_slot_attention_kernel, iters=iters, eps=eps,
                               mxu_dtype=mxu_dtype, gru_fused=gru_fused)

    out = pl.pallas_call(
        kernel,
        out_shape=jax.ShapeDtypeStruct((B, 1, S * D), jnp.float32),
        grid_spec=pltpu.PrefetchScalarGridSpec(
            num_scalar_prefetch=0,
            grid=(B // Bt,),
            in_specs=in_specs,
            out_specs=pl.BlockSpec((Bt, 1, S * D), lambda i: (i, 0, 0)),
        ),
        compiler_params=pltpu.CompilerParams(
            dimension_semantics=("parallel",),
            vmem_limit_bytes=32 * 1024 * 1024),
    )(inputs, mask3, slots0, *param_arrays)

    return out.reshape(B, S, D)


# --------------------------------------------------------------------------
# Pure-JAX reference (mirrors the PyTorch forward exactly; concatenated GRU
# weights, explicit transposed einsums — cross-checks the kernel rewrites).
# --------------------------------------------------------------------------
def slot_attention_ref(inputs, mask, slots0, params, *, iters=3, eps=1e-8):
    B, N, D = inputs.shape
    scale = D ** (-0.5)
    mask_f = mask[:, :, None]

    def layernorm(h, g, beta):
        mu = jnp.mean(h, axis=-1, keepdims=True)
        var = jnp.mean((h - mu) ** 2, axis=-1, keepdims=True)
        return (h - mu) * jax.lax.rsqrt(var + 1e-5) * g + beta

    xn = layernorm(inputs, params["g_in"][0], params["beta_in"][0])
    k = xn @ params["wk"] + params["bk"][0]
    v = xn @ params["wv"] + params["bv"][0]
    slots = slots0
    for _ in range(iters):
        slots_prev = slots
        sn = layernorm(slots, params["g_s"][0], params["beta_s"][0])
        q = sn @ params["wq"] + params["bq"][0]
        dots = jnp.einsum("bid,bjd->bij", k, q) * scale
        attn = jax.nn.softmax(dots, axis=-1) + eps
        attn = jnp.where(mask_f == 0.0, 0.0, attn)
        attn = attn / jnp.sum(attn, axis=-2, keepdims=True)
        updates = jnp.einsum("bij,bid->bjd", attn, v)
        gi = updates @ params["wih"] + params["bih"][0]
        gh = slots_prev @ params["whh"] + params["bhh"][0]
        r = jax.nn.sigmoid(gi[..., 0:D] + gh[..., 0:D])
        z = jax.nn.sigmoid(gi[..., D:2 * D] + gh[..., D:2 * D])
        n_cand = jnp.tanh(gi[..., 2 * D:3 * D] + r * gh[..., 2 * D:3 * D])
        slots = (1.0 - z) * n_cand + z * slots_prev
        pf = layernorm(slots, params["g_ff"][0], params["beta_ff"][0])
        h1 = jax.nn.relu(pf @ params["w1"] + params["b1"][0])
        slots = slots + h1 @ params["w2"] + params["b2"][0]
    return slots


# --------------------------------------------------------------------------
# Deterministic parameter / input construction and test.
# --------------------------------------------------------------------------
def make_params(key, dim, hidden_dim):
    hidden_dim = max(dim, hidden_dim)
    keys = jax.random.split(key, 24)
    ki = iter(keys)

    def lin(kin, n_in, n_out):
        s = 1.0 / np.sqrt(n_in)
        return (jax.random.uniform(kin, (n_in, n_out), jnp.float32, -s, s),
                jax.random.uniform(next(ki), (1, n_out), jnp.float32, -s, s))

    params = {}
    params["wq"], params["bq"] = lin(next(ki), dim, dim)
    params["wk"], params["bk"] = lin(next(ki), dim, dim)
    params["wv"], params["bv"] = lin(next(ki), dim, dim)
    params["wih"], params["bih"] = lin(next(ki), dim, 3 * dim)
    params["whh"], params["bhh"] = lin(next(ki), dim, 3 * dim)
    params["w1"], params["b1"] = lin(next(ki), dim, hidden_dim)
    params["w2"], params["b2"] = lin(next(ki), hidden_dim, dim)
    params["g_in"] = jnp.ones((1, dim), jnp.float32)
    params["beta_in"] = jnp.zeros((1, dim), jnp.float32)
    params["g_s"] = jnp.ones((1, dim), jnp.float32)
    params["beta_s"] = jnp.zeros((1, dim), jnp.float32)
    params["g_ff"] = jnp.ones((1, dim), jnp.float32)
    params["beta_ff"] = jnp.zeros((1, dim), jnp.float32)
    # slot prior
    params["slots_mu"] = jax.random.normal(next(ki), (1, 1, dim), jnp.float32)
    params["slots_sigma"] = jax.random.uniform(next(ki), (1, 1, dim), jnp.float32)
    return params


if __name__ == "__main__":
    B, N, D = 8, 16, 32
    NUM_SLOTS, ITERS, EPS, HIDDEN = 4, 3, 1e-8, 128

    root = jax.random.PRNGKey(0)
    k_par, k_x, k_mask, k_slot = jax.random.split(root, 4)

    params = make_params(k_par, D, HIDDEN)

    inputs = jax.random.normal(k_x, (B, N, D), jnp.float32)
    # float mask, 1 = keep, 0 = drop (most tokens kept)
    mask = (jax.random.uniform(k_mask, (B, N)) > 0.2).astype(jnp.float32)

    # slots ~ Normal(mu, sigma), sampled once in JAX glue (torch.normal has no
    # in-kernel equivalent needed here); same sample fed to kernel + reference.
    slots0 = (params["slots_mu"]
              + params["slots_sigma"] * jax.random.normal(
                  k_slot, (B, NUM_SLOTS, D), jnp.float32))

    out = slot_attention_pallas(inputs, mask, slots0, params,
                                iters=ITERS, eps=EPS)
    out = jax.block_until_ready(out)

    ref = jax.block_until_ready(
        slot_attention_ref(inputs, mask, slots0, params, iters=ITERS, eps=EPS))

    np.testing.assert_allclose(np.asarray(out), np.asarray(ref),
                               rtol=2e-3, atol=2e-3)
    print("KERNEL_OK")
</pallas_src>

<mosaic_0001>
module attributes {stable_mosaic.version = 11 : i64} {
  func.func @_slot_attention_kernel(%arg0: i32, %arg1: memref<2x16x32xf32, #tpu.memory_space<vmem>>, %arg2: memref<2x1x16xf32, #tpu.memory_space<vmem>>, %arg3: memref<2x4x32xf32, #tpu.memory_space<vmem>>, %arg4: memref<32x32xf32, #tpu.memory_space<vmem>>, %arg5: memref<32x32xf32, #tpu.memory_space<vmem>>, %arg6: memref<32x32xf32, #tpu.memory_space<vmem>>, %arg7: memref<32x32xf32, #tpu.memory_space<vmem>>, %arg8: memref<32x32xf32, #tpu.memory_space<vmem>>, %arg9: memref<32x32xf32, #tpu.memory_space<vmem>>, %arg10: memref<32x32xf32, #tpu.memory_space<vmem>>, %arg11: memref<32x32xf32, #tpu.memory_space<vmem>>, %arg12: memref<32x32xf32, #tpu.memory_space<vmem>>, %arg13: memref<32x128xf32, #tpu.memory_space<vmem>>, %arg14: memref<1x128xf32, #tpu.memory_space<vmem>>, %arg15: memref<128x32xf32, #tpu.memory_space<vmem>>, %arg16: memref<16x32xf32, #tpu.memory_space<vmem>>, %arg17: memref<2x1x128xf32, #tpu.memory_space<vmem>>) attributes {dimension_semantics = [#tpu.dimension_semantics<parallel>], iteration_bounds = array<i64: 4>, scalar_prefetch = 0 : i64, scratch_operands = 0 : i64, tpu.core_type = #tpu.core_type<tc>, window_params = [{transform_indices = @transform_0, window_bounds = array<i64: 2, 16, 32>}, {transform_indices = @transform_1, window_bounds = array<i64: 2, 1, 16>}, {transform_indices = @transform_2, window_bounds = array<i64: 2, 4, 32>}, {pipeline_mode = #tpu.pipeline_mode<synchronous>, transform_indices = @transform_3, window_bounds = array<i64: 32, 32>}, {pipeline_mode = #tpu.pipeline_mode<synchronous>, transform_indices = @transform_4, window_bounds = array<i64: 32, 32>}, {pipeline_mode = #tpu.pipeline_mode<synchronous>, transform_indices = @transform_5, window_bounds = array<i64: 32, 32>}, {pipeline_mode = #tpu.pipeline_mode<synchronous>, transform_indices = @transform_6, window_bounds = array<i64: 32, 32>}, {pipeline_mode = #tpu.pipeline_mode<synchronous>, transform_indices = @transform_7, window_bounds = array<i64: 32, 32>}, {pipeline_mode = #tpu.pipeline_mode<synchronous>, transform_indices = @transform_8, window_bounds = array<i64: 32, 32>}, {pipeline_mode = #tpu.pipeline_mode<synchronous>, transform_indices = @transform_9, window_bounds = array<i64: 32, 32>}, {pipeline_mode = #tpu.pipeline_mode<synchronous>, transform_indices = @transform_10, window_bounds = array<i64: 32, 32>}, {pipeline_mode = #tpu.pipeline_mode<synchronous>, transform_indices = @transform_11, window_bounds = array<i64: 32, 32>}, {pipeline_mode = #tpu.pipeline_mode<synchronous>, transform_indices = @transform_12, window_bounds = array<i64: 32, 128>}, {pipeline_mode = #tpu.pipeline_mode<synchronous>, transform_indices = @transform_13, window_bounds = array<i64: 1, 128>}, {pipeline_mode = #tpu.pipeline_mode<synchronous>, transform_indices = @transform_14, window_bounds = array<i64: 128, 32>}, {pipeline_mode = #tpu.pipeline_mode<synchronous>, transform_indices = @transform_15, window_bounds = array<i64: 16, 32>}, {transform_indices = @transform_16, window_bounds = array<i64: 2, 1, 128>}]} {
    %c0 = arith.constant 0 : index
    %c0_0 = arith.constant 0 : index
    %c0_1 = arith.constant 0 : index
    %0 = vector.load %arg1[%c0, %c0_0, %c0_1] : memref<2x16x32xf32, #tpu.memory_space<vmem>>, vector<2x16x32xf32>
    %1 = vector.shape_cast %0 : vector<2x16x32xf32> to vector<32x32xf32>
    %c0_2 = arith.constant 0 : index
    %c0_3 = arith.constant 0 : index
    %c0_4 = arith.constant 0 : index
    %2 = vector.load %arg3[%c0_2, %c0_3, %c0_4] : memref<2x4x32xf32, #tpu.memory_space<vmem>>, vector<2x4x32xf32>
    %3 = vector.shape_cast %2 : vector<2x4x32xf32> to vector<8x32xf32>
    %c0_5 = arith.constant 0 : index
    %c0_6 = arith.constant 0 : index
    %4 = vector.load %arg16[%c0_5, %c0_6] : memref<16x32xf32, #tpu.memory_space<vmem>>, vector<16x32xf32>
    %5 = vector.extract_strided_slice %4 {offsets = [0, 0], sizes = [1, 32], strides = [1, 1]} : vector<16x32xf32> to vector<1x32xf32>
    %6 = vector.extract_strided_slice %4 {offsets = [1, 0], sizes = [1, 32], strides = [1, 1]} : vector<16x32xf32> to vector<1x32xf32>
    %7 = vector.extract_strided_slice %4 {offsets = [2, 0], sizes = [1, 32], strides = [1, 1]} : vector<16x32xf32> to vector<1x32xf32>
    %8 = vector.extract_strided_slice %4 {offsets = [3, 0], sizes = [1, 32], strides = [1, 1]} : vector<16x32xf32> to vector<1x32xf32>
    %9 = vector.extract_strided_slice %4 {offsets = [4, 0], sizes = [1, 32], strides = [1, 1]} : vector<16x32xf32> to vector<1x32xf32>
    %10 = vector.extract_strided_slice %4 {offsets = [5, 0], sizes = [1, 32], strides = [1, 1]} : vector<16x32xf32> to vector<1x32xf32>
    %11 = vector.extract_strided_slice %4 {offsets = [6, 0], sizes = [1, 32], strides = [1, 1]} : vector<16x32xf32> to vector<1x32xf32>
    %12 = vector.extract_strided_slice %4 {offsets = [7, 0], sizes = [1, 32], strides = [1, 1]} : vector<16x32xf32> to vector<1x32xf32>
    %13 = vector.extract_strided_slice %4 {offsets = [8, 0], sizes = [1, 32], strides = [1, 1]} : vector<16x32xf32> to vector<1x32xf32>
    %14 = vector.extract_strided_slice %4 {offsets = [9, 0], sizes = [1, 32], strides = [1, 1]} : vector<16x32xf32> to vector<1x32xf32>
    %c0_7 = arith.constant 0 : index
    %c0_8 = arith.constant 0 : index
    %15 = vector.load %arg14[%c0_7, %c0_8] : memref<1x128xf32, #tpu.memory_space<vmem>>, vector<1x128xf32>
    %c0_9 = arith.constant 0 : index
    %c0_10 = arith.constant 0 : index
    %16 = vector.load %arg4[%c0_9, %c0_10] : memref<32x32xf32, #tpu.memory_space<vmem>>, vector<32x32xf32>
    %c0_11 = arith.constant 0 : index
    %c0_12 = arith.constant 0 : index
    %17 = vector.load %arg5[%c0_11, %c0_12] : memref<32x32xf32, #tpu.memory_space<vmem>>, vector<32x32xf32>
    %c0_13 = arith.constant 0 : index
    %c0_14 = arith.constant 0 : index
    %18 = vector.load %arg6[%c0_13, %c0_14] : memref<32x32xf32, #tpu.memory_space<vmem>>, vector<32x32xf32>
    %c0_15 = arith.constant 0 : index
    %c0_16 = arith.constant 0 : index
    %19 = vector.load %arg13[%c0_15, %c0_16] : memref<32x128xf32, #tpu.memory_space<vmem>>, vector<32x128xf32>
    %c0_17 = arith.constant 0 : index
    %c0_18 = arith.constant 0 : index
    %20 = vector.load %arg15[%c0_17, %c0_18] : memref<128x32xf32, #tpu.memory_space<vmem>>, vector<128x32xf32>
    %c0_19 = arith.constant 0 : index
    %c0_20 = arith.constant 0 : index
    %21 = vector.load %arg7[%c0_19, %c0_20] : memref<32x32xf32, #tpu.memory_space<vmem>>, vector<32x32xf32>
    %c0_21 = arith.constant 0 : index
    %c0_22 = arith.constant 0 : index
    %22 = vector.load %arg8[%c0_21, %c0_22] : memref<32x32xf32, #tpu.memory_space<vmem>>, vector<32x32xf32>
    %c0_23 = arith.constant 0 : index
    %c0_24 = arith.constant 0 : index
    %23 = vector.load %arg9[%c0_23, %c0_24] : memref<32x32xf32, #tpu.memory_space<vmem>>, vector<32x32xf32>
    %c0_25 = arith.constant 0 : index
    %c0_26 = arith.constant 0 : index
    %24 = vector.load %arg10[%c0_25, %c0_26] : memref<32x32xf32, #tpu.memory_space<vmem>>, vector<32x32xf32>
    %c0_27 = arith.constant 0 : index
    %c0_28 = arith.constant 0 : index
    %25 = vector.load %arg11[%c0_27, %c0_28] : memref<32x32xf32, #tpu.memory_space<vmem>>, vector<32x32xf32>
    %c0_29 = arith.constant 0 : index
    %c0_30 = arith.constant 0 : index
    %26 = vector.load %arg12[%c0_29, %c0_30] : memref<32x32xf32, #tpu.memory_space<vmem>>, vector<32x32xf32>
    %27 = vector.extract_strided_slice %4 {offsets = [10, 0], sizes = [1, 32], strides = [1, 1]} : vector<16x32xf32> to vector<1x32xf32>
    %28 = vector.extract_strided_slice %4 {offsets = [11, 0], sizes = [1, 32], strides = [1, 1]} : vector<16x32xf32> to vector<1x32xf32>
    %29 = vector.extract_strided_slice %4 {offsets = [12, 0], sizes = [1, 32], strides = [1, 1]} : vector<16x32xf32> to vector<1x32xf32>
    %30 = vector.extract_strided_slice %4 {offsets = [13, 0], sizes = [1, 32], strides = [1, 1]} : vector<16x32xf32> to vector<1x32xf32>
    %31 = vector.extract_strided_slice %4 {offsets = [14, 0], sizes = [1, 32], strides = [1, 1]} : vector<16x32xf32> to vector<1x32xf32>
    %32 = vector.extract_strided_slice %4 {offsets = [15, 0], sizes = [1, 32], strides = [1, 1]} : vector<16x32xf32> to vector<1x32xf32>
    %c0_31 = arith.constant 0 : index
    %c0_32 = arith.constant 0 : index
    %c0_33 = arith.constant 0 : index
    %33 = vector.load %arg2[%c0_31, %c0_32, %c0_33] : memref<2x1x16xf32, #tpu.memory_space<vmem>>, vector<2x1x16xf32>
    %cst = arith.constant 0.000000e+00 : f32
    %34 = vector.broadcast %cst : f32 to vector<2x1x16xf32>
    %35 = arith.cmpf oeq, %33, %34 : vector<2x1x16xf32>
    %36 = vector.shape_cast %35 : vector<2x1x16xi1> to vector<2x1x16xi1>
    %37 = vector.broadcast %36 : vector<2x1x16xi1> to vector<2x4x16xi1>
    %cst_34 = arith.constant dense<0.000000e+00> : vector<32xf32>
    %38 = vector.multi_reduction <add>, %1, %cst_34 [1] : vector<32x32xf32> to vector<32xf32>
    %39 = vector.shape_cast %38 : vector<32xf32> to vector<32x1xf32>
    %cst_35 = arith.constant 3.200000e+01 : f32
    %40 = vector.broadcast %cst_35 : f32 to vector<32x1xf32>
    %41 = arith.divf %39, %40 : vector<32x1xf32>
    %42 = vector.broadcast %41 : vector<32x1xf32> to vector<32x32xf32>
    %43 = arith.subf %1, %42 : vector<32x32xf32>
    %44 = arith.mulf %43, %43 : vector<32x32xf32>
    %cst_36 = arith.constant dense<0.000000e+00> : vector<32xf32>
    %45 = vector.multi_reduction <add>, %44, %cst_36 [1] : vector<32x32xf32> to vector<32xf32>
    %46 = vector.shape_cast %45 : vector<32xf32> to vector<32x1xf32>
    %cst_37 = arith.constant 3.200000e+01 : f32
    %47 = vector.broadcast %cst_37 : f32 to vector<32x1xf32>
    %48 = arith.divf %46, %47 : vector<32x1xf32>
    %49 = vector.broadcast %41 : vector<32x1xf32> to vector<32x32xf32>
    %50 = arith.subf %1, %49 : vector<32x32xf32>
    %cst_38 = arith.constant 9.99999974E-6 : f32
    %51 = vector.broadcast %cst_38 : f32 to vector<32x1xf32>
    %52 = arith.addf %48, %51 : vector<32x1xf32>
    %53 = math.rsqrt %52 : vector<32x1xf32>
    %54 = vector.broadcast %53 : vector<32x1xf32> to vector<32x32xf32>
    %55 = arith.mulf %50, %54 : vector<32x32xf32>
    %56 = vector.broadcast %9 : vector<1x32xf32> to vector<32x32xf32>
    %57 = arith.mulf %55, %56 : vector<32x32xf32>
    %58 = vector.broadcast %10 : vector<1x32xf32> to vector<32x32xf32>
    %59 = arith.addf %57, %58 : vector<32x32xf32>
    %cst_39 = arith.constant dense<0.000000e+00> : vector<32x32xf32>
    %60 = tpu.matmul %59, %17, %cst_39 {dimension_numbers = #tpu.dot_dimension_numbers<[1], [0], [0], [1], [0, 0, 1, 1], [], []>} : vector<32x32xf32>, vector<32x32xf32>, vector<32x32xf32> -> vector<32x32xf32>
    %61 = vector.broadcast %6 : vector<1x32xf32> to vector<32x32xf32>
    %62 = arith.addf %60, %61 : vector<32x32xf32>
    %cst_40 = arith.constant dense<0.000000e+00> : vector<32x32xf32>
    %63 = tpu.matmul %59, %18, %cst_40 {dimension_numbers = #tpu.dot_dimension_numbers<[1], [0], [0], [1], [0, 0, 1, 1], [], []>} : vector<32x32xf32>, vector<32x32xf32>, vector<32x32xf32> -> vector<32x32xf32>
    %64 = vector.broadcast %7 : vector<1x32xf32> to vector<32x32xf32>
    %65 = arith.addf %63, %64 : vector<32x32xf32>
    %66 = vector.shape_cast %62 : vector<32x32xf32> to vector<2x16x32xf32>
    %67 = vector.extract_strided_slice %66 {offsets = [0, 0, 0], sizes = [1, 16, 32], strides = [1, 1, 1]} : vector<2x16x32xf32> to vector<1x16x32xf32>
    %68 = vector.shape_cast %67 : vector<1x16x32xf32> to vector<16x32xf32>
    %69 = tpu.transpose %68, [1, 0] : vector<16x32xf32> -> vector<32x16xf32>
    %70 = vector.extract_strided_slice %66 {offsets = [1, 0, 0], sizes = [1, 16, 32], strides = [1, 1, 1]} : vector<2x16x32xf32> to vector<1x16x32xf32>
    %71 = vector.shape_cast %70 : vector<1x16x32xf32> to vector<16x32xf32>
    %72 = tpu.transpose %71, [1, 0] : vector<16x32xf32> -> vector<32x16xf32>
    %73 = vector.shape_cast %69 : vector<32x16xf32> to vector<1x32x16xf32>
    %74 = vector.shape_cast %72 : vector<32x16xf32> to vector<1x32x16xf32>
    %75 = tpu.concatenate %73, %74 in 0 : vector<1x32x16xf32>, vector<1x32x16xf32> -> vector<2x32x16xf32>
    %76 = vector.shape_cast %65 : vector<32x32xf32> to vector<2x16x32xf32>
    %cst_41 = arith.constant dense<0.000000e+00> : vector<8xf32>
    %77 = vector.multi_reduction <add>, %3, %cst_41 [1] : vector<8x32xf32> to vector<8xf32>
    %78 = vector.shape_cast %77 : vector<8xf32> to vector<8x1xf32>
    %cst_42 = arith.constant 3.200000e+01 : f32
    %79 = vector.broadcast %cst_42 : f32 to vector<8x1xf32>
    %80 = arith.divf %78, %79 : vector<8x1xf32>
    %81 = vector.broadcast %80 : vector<8x1xf32> to vector<8x32xf32>
    %82 = arith.subf %3, %81 : vector<8x32xf32>
    %83 = arith.mulf %82, %82 : vector<8x32xf32>
    %cst_43 = arith.constant dense<0.000000e+00> : vector<8xf32>
    %84 = vector.multi_reduction <add>, %83, %cst_43 [1] : vector<8x32xf32> to vector<8xf32>
    %85 = vector.shape_cast %84 : vector<8xf32> to vector<8x1xf32>
    %cst_44 = arith.constant 3.200000e+01 : f32
    %86 = vector.broadcast %cst_44 : f32 to vector<8x1xf32>
    %87 = arith.divf %85, %86 : vector<8x1xf32>
    %88 = vector.broadcast %80 : vector<8x1xf32> to vector<8x32xf32>
    %89 = arith.subf %3, %88 : vector<8x32xf32>
    %cst_45 = arith.constant 9.99999974E-6 : f32
    %90 = vector.broadcast %cst_45 : f32 to vector<8x1xf32>
    %91 = arith.addf %87, %90 : vector<8x1xf32>
    %92 = math.rsqrt %91 : vector<8x1xf32>
    %93 = vector.broadcast %92 : vector<8x1xf32> to vector<8x32xf32>
    %94 = arith.mulf %89, %93 : vector<8x32xf32>
    %95 = vector.broadcast %11 : vector<1x32xf32> to vector<8x32xf32>
    %96 = arith.mulf %94, %95 : vector<8x32xf32>
    %97 = vector.broadcast %12 : vector<1x32xf32> to vector<8x32xf32>
    %98 = arith.addf %96, %97 : vector<8x32xf32>
    %cst_46 = arith.constant dense<0.000000e+00> : vector<8x32xf32>
    %99 = tpu.matmul %98, %16, %cst_46 {dimension_numbers = #tpu.dot_dimension_numbers<[1], [0], [0], [1], [0, 0, 1, 1], [], []>} : vector<8x32xf32>, vector<32x32xf32>, vector<8x32xf32> -> vector<8x32xf32>
    %100 = vector.broadcast %5 : vector<1x32xf32> to vector<8x32xf32>
    %101 = arith.addf %99, %100 : vector<8x32xf32>
    %102 = vector.shape_cast %101 : vector<8x32xf32> to vector<2x4x32xf32>
    "tpu.trace_start"() <{level = 10 : i32, message = "bsd,bdn->bsn"}> : () -> ()
    %cst_47 = arith.constant dense<0.000000e+00> : vector<2x4x16xf32>
    %103 = tpu.matmul %102, %75, %cst_47 {dimension_numbers = #tpu.dot_dimension_numbers<[2], [1], [1], [2], [0, 0, 0, 1, 1, 2], [0], [0]>} : vector<2x4x32xf32>, vector<2x32x16xf32>, vector<2x4x16xf32> -> vector<2x4x16xf32>
    "tpu.trace_stop"() : () -> ()
    %cst_48 = arith.constant dense<0xFF800000> : vector<2x16xf32>
    %104 = vector.multi_reduction <maximumf>, %103, %cst_48 [1] : vector<2x4x16xf32> to vector<2x16xf32>
    %105 = vector.shape_cast %104 : vector<2x16xf32> to vector<2x1x16xf32>
    %106 = vector.broadcast %105 : vector<2x1x16xf32> to vector<2x4x16xf32>
    %107 = arith.subf %103, %106 : vector<2x4x16xf32>
    %108 = math.exp %107 : vector<2x4x16xf32>
    %cst_49 = arith.constant dense<0.000000e+00> : vector<2x16xf32>
    %109 = vector.multi_reduction <add>, %108, %cst_49 [1] : vector<2x4x16xf32> to vector<2x16xf32>
    %110 = vector.shape_cast %109 : vector<2x16xf32> to vector<2x1x16xf32>
    %111 = tpu.reciprocal %110 {approx = true} : vector<2x1x16xf32> -> vector<2x1x16xf32>
    %112 = vector.broadcast %111 : vector<2x1x16xf32> to vector<2x4x16xf32>
    %113 = arith.mulf %108, %112 : vector<2x4x16xf32>
    %cst_50 = arith.constant 9.99999993E-9 : f32
    %114 = vector.broadcast %cst_50 : f32 to vector<2x4x16xf32>
    %115 = arith.addf %113, %114 : vector<2x4x16xf32>
    %cst_51 = arith.constant 0.000000e+00 : f32
    %116 = vector.broadcast %cst_51 : f32 to vector<2x4x16xf32>
    %117 = arith.select %37, %116, %115 : vector<2x4x16xi1>, vector<2x4x16xf32>
    %cst_52 = arith.constant dense<0.000000e+00> : vector<2x4xf32>
    %118 = vector.multi_reduction <add>, %117, %cst_52 [2] : vector<2x4x16xf32> to vector<2x4xf32>
    %119 = vector.shape_cast %118 : vector<2x4xf32> to vector<2x4x1xf32>
    %120 = vector.broadcast %119 : vector<2x4x1xf32> to vector<2x4x16xf32>
    %121 = arith.divf %117, %120 : vector<2x4x16xf32>
    "tpu.trace_start"() <{level = 10 : i32, message = "bsn,bnd->bsd"}> : () -> ()
    %cst_53 = arith.constant dense<0.000000e+00> : vector<2x4x32xf32>
    %122 = tpu.matmul %121, %76, %cst_53 {dimension_numbers = #tpu.dot_dimension_numbers<[2], [1], [1], [2], [0, 0, 0, 1, 1, 2], [0], [0]>} : vector<2x4x16xf32>, vector<2x16x32xf32>, vector<2x4x32xf32> -> vector<2x4x32xf32>
    "tpu.trace_stop"() : () -> ()
    %123 = vector.shape_cast %122 : vector<2x4x32xf32> to vector<8x32xf32>
    %cst_54 = arith.constant dense<0.000000e+00> : vector<8x32xf32>
    %124 = tpu.matmul %123, %21, %cst_54 {dimension_numbers = #tpu.dot_dimension_numbers<[1], [0], [0], [1], [0, 0, 1, 1], [], []>} : vector<8x32xf32>, vector<32x32xf32>, vector<8x32xf32> -> vector<8x32xf32>
    %125 = vector.broadcast %27 : vector<1x32xf32> to vector<8x32xf32>
    %126 = arith.addf %124, %125 : vector<8x32xf32>
    %cst_55 = arith.constant dense<0.000000e+00> : vector<8x32xf32>
    %127 = tpu.matmul %3, %24, %cst_55 {dimension_numbers = #tpu.dot_dimension_numbers<[1], [0], [0], [1], [0, 0, 1, 1], [], []>} : vector<8x32xf32>, vector<32x32xf32>, vector<8x32xf32> -> vector<8x32xf32>
    %128 = arith.addf %126, %127 : vector<8x32xf32>
    %129 = vector.broadcast %30 : vector<1x32xf32> to vector<8x32xf32>
    %130 = arith.addf %128, %129 : vector<8x32xf32>
    %131 = arith.negf %130 : vector<8x32xf32>
    %132 = math.exp %131 : vector<8x32xf32>
    %cst_56 = arith.constant 1.000000e+00 : f32
    %133 = vector.broadcast %cst_56 : f32 to vector<8x32xf32>
    %134 = arith.addf %133, %132 : vector<8x32xf32>
    %135 = arith.divf %133, %134 : vector<8x32xf32>
    %cst_57 = arith.constant dense<0.000000e+00> : vector<8x32xf32>
    %136 = tpu.matmul %123, %22, %cst_57 {dimension_numbers = #tpu.dot_dimension_numbers<[1], [0], [0], [1], [0, 0, 1, 1], [], []>} : vector<8x32xf32>, vector<32x32xf32>, vector<8x32xf32> -> vector<8x32xf32>
    %137 = vector.broadcast %28 : vector<1x32xf32> to vector<8x32xf32>
    %138 = arith.addf %136, %137 : vector<8x32xf32>
    %cst_58 = arith.constant dense<0.000000e+00> : vector<8x32xf32>
    %139 = tpu.matmul %3, %25, %cst_58 {dimension_numbers = #tpu.dot_dimension_numbers<[1], [0], [0], [1], [0, 0, 1, 1], [], []>} : vector<8x32xf32>, vector<32x32xf32>, vector<8x32xf32> -> vector<8x32xf32>
    %140 = arith.addf %138, %139 : vector<8x32xf32>
    %141 = vector.broadcast %31 : vector<1x32xf32> to vector<8x32xf32>
    %142 = arith.addf %140, %141 : vector<8x32xf32>
    %143 = arith.negf %142 : vector<8x32xf32>
    %144 = math.exp %143 : vector<8x32xf32>
    %cst_59 = arith.constant 1.000000e+00 : f32
    %145 = vector.broadcast %cst_59 : f32 to vector<8x32xf32>
    %146 = arith.addf %145, %144 : vector<8x32xf32>
    %147 = arith.divf %145, %146 : vector<8x32xf32>
    %cst_60 = arith.constant dense<0.000000e+00> : vector<8x32xf32>
    %148 = tpu.matmul %123, %23, %cst_60 {dimension_numbers = #tpu.dot_dimension_numbers<[1], [0], [0], [1], [0, 0, 1, 1], [], []>} : vector<8x32xf32>, vector<32x32xf32>, vector<8x32xf32> -> vector<8x32xf32>
    %149 = vector.broadcast %29 : vector<1x32xf32> to vector<8x32xf32>
    %150 = arith.addf %148, %149 : vector<8x32xf32>
    %cst_61 = arith.constant dense<0.000000e+00> : vector<8x32xf32>
    %151 = tpu.matmul %3, %26, %cst_61 {dimension_numbers = #tpu.dot_dimension_numbers<[1], [0], [0], [1], [0, 0, 1, 1], [], []>} : vector<8x32xf32>, vector<32x32xf32>, vector<8x32xf32> -> vector<8x32xf32>
    %152 = vector.broadcast %32 : vector<1x32xf32> to vector<8x32xf32>
    %153 = arith.addf %151, %152 : vector<8x32xf32>
    %154 = arith.mulf %135, %153 : vector<8x32xf32>
    %155 = arith.addf %150, %154 : vector<8x32xf32>
    %156 = math.tanh %155 : vector<8x32xf32>
    %cst_62 = arith.constant 1.000000e+00 : f32
    %157 = vector.broadcast %cst_62 : f32 to vector<8x32xf32>
    %158 = arith.subf %157, %147 : vector<8x32xf32>
    %159 = arith.mulf %158, %156 : vector<8x32xf32>
    %160 = arith.mulf %147, %3 : vector<8x32xf32>
    %161 = arith.addf %159, %160 : vector<8x32xf32>
    %cst_63 = arith.constant dense<0.000000e+00> : vector<8xf32>
    %162 = vector.multi_reduction <add>, %161, %cst_63 [1] : vector<8x32xf32> to vector<8xf32>
    %163 = vector.shape_cast %162 : vector<8xf32> to vector<8x1xf32>
    %cst_64 = arith.constant 3.200000e+01 : f32
    %164 = vector.broadcast %cst_64 : f32 to vector<8x1xf32>
    %165 = arith.divf %163, %164 : vector<8x1xf32>
    %166 = vector.broadcast %165 : vector<8x1xf32> to vector<8x32xf32>
    %167 = arith.subf %161, %166 : vector<8x32xf32>
    %168 = arith.mulf %167, %167 : vector<8x32xf32>
    %cst_65 = arith.constant dense<0.000000e+00> : vector<8xf32>
    %169 = vector.multi_reduction <add>, %168, %cst_65 [1] : vector<8x32xf32> to vector<8xf32>
    %170 = vector.shape_cast %169 : vector<8xf32> to vector<8x1xf32>
    %cst_66 = arith.constant 3.200000e+01 : f32
    %171 = vector.broadcast %cst_66 : f32 to vector<8x1xf32>
    %172 = arith.divf %170, %171 : vector<8x1xf32>
    %173 = vector.broadcast %165 : vector<8x1xf32> to vector<8x32xf32>
    %174 = arith.subf %161, %173 : vector<8x32xf32>
    %cst_67 = arith.constant 9.99999974E-6 : f32
    %175 = vector.broadcast %cst_67 : f32 to vector<8x1xf32>
    %176 = arith.addf %172, %175 : vector<8x1xf32>
    %177 = math.rsqrt %176 : vector<8x1xf32>
    %178 = vector.broadcast %177 : vector<8x1xf32> to vector<8x32xf32>
    %179 = arith.mulf %174, %178 : vector<8x32xf32>
    %180 = vector.broadcast %13 : vector<1x32xf32> to vector<8x32xf32>
    %181 = arith.mulf %179, %180 : vector<8x32xf32>
    %182 = vector.broadcast %14 : vector<1x32xf32> to vector<8x32xf32>
    %183 = arith.addf %181, %182 : vector<8x32xf32>
    %cst_68 = arith.constant dense<0.000000e+00> : vector<8x128xf32>
    %184 = tpu.matmul %183, %19, %cst_68 {dimension_numbers = #tpu.dot_dimension_numbers<[1], [0], [0], [1], [0, 0, 1, 1], [], []>} : vector<8x32xf32>, vector<32x128xf32>, vector<8x128xf32> -> vector<8x128xf32>
    %185 = vector.broadcast %15 : vector<1x128xf32> to vector<8x128xf32>
    %186 = arith.addf %184, %185 : vector<8x128xf32>
    %cst_69 = arith.constant 0.000000e+00 : f32
    %187 = vector.broadcast %cst_69 : f32 to vector<8x128xf32>
    %188 = arith.maximumf %186, %187 : vector<8x128xf32>
    %cst_70 = arith.constant dense<0.000000e+00> : vector<8x32xf32>
    %189 = tpu.matmul %188, %20, %cst_70 {dimension_numbers = #tpu.dot_dimension_numbers<[1], [0], [0], [1], [0, 0, 1, 1], [], []>} : vector<8x128xf32>, vector<128x32xf32>, vector<8x32xf32> -> vector<8x32xf32>
    %190 = arith.addf %161, %189 : vector<8x32xf32>
    %191 = vector.broadcast %8 : vector<1x32xf32> to vector<8x32xf32>
    %192 = arith.addf %190, %191 : vector<8x32xf32>
    %cst_71 = arith.constant dense<0.000000e+00> : vector<8xf32>
    %193 = vector.multi_reduction <add>, %192, %cst_71 [1] : vector<8x32xf32> to vector<8xf32>
    %194 = vector.shape_cast %193 : vector<8xf32> to vector<8x1xf32>
    %cst_72 = arith.constant 3.200000e+01 : f32
    %195 = vector.broadcast %cst_72 : f32 to vector<8x1xf32>
    %196 = arith.divf %194, %195 : vector<8x1xf32>
    %197 = vector.broadcast %196 : vector<8x1xf32> to vector<8x32xf32>
    %198 = arith.subf %192, %197 : vector<8x32xf32>
    %199 = arith.mulf %198, %198 : vector<8x32xf32>
    %cst_73 = arith.constant dense<0.000000e+00> : vector<8xf32>
    %200 = vector.multi_reduction <add>, %199, %cst_73 [1] : vector<8x32xf32> to vector<8xf32>
    %201 = vector.shape_cast %200 : vector<8xf32> to vector<8x1xf32>
    %cst_74 = arith.constant 3.200000e+01 : f32
    %202 = vector.broadcast %cst_74 : f32 to vector<8x1xf32>
    %203 = arith.divf %201, %202 : vector<8x1xf32>
    %204 = vector.broadcast %196 : vector<8x1xf32> to vector<8x32xf32>
    %205 = arith.subf %192, %204 : vector<8x32xf32>
    %cst_75 = arith.constant 9.99999974E-6 : f32
    %206 = vector.broadcast %cst_75 : f32 to vector<8x1xf32>
    %207 = arith.addf %203, %206 : vector<8x1xf32>
    %208 = math.rsqrt %207 : vector<8x1xf32>
    %209 = vector.broadcast %208 : vector<8x1xf32> to vector<8x32xf32>
    %210 = arith.mulf %205, %209 : vector<8x32xf32>
    %211 = vector.broadcast %11 : vector<1x32xf32> to vector<8x32xf32>
    %212 = arith.mulf %210, %211 : vector<8x32xf32>
    %213 = vector.broadcast %12 : vector<1x32xf32> to vector<8x32xf32>
    %214 = arith.addf %212, %213 : vector<8x32xf32>
    %cst_76 = arith.constant dense<0.000000e+00> : vector<8x32xf32>
    %215 = tpu.matmul %214, %16, %cst_76 {dimension_numbers = #tpu.dot_dimension_numbers<[1], [0], [0], [1], [0, 0, 1, 1], [], []>} : vector<8x32xf32>, vector<32x32xf32>, vector<8x32xf32> -> vector<8x32xf32>
    %216 = vector.broadcast %5 : vector<1x32xf32> to vector<8x32xf32>
    %217 = arith.addf %215, %216 : vector<8x32xf32>
    %218 = vector.shape_cast %217 : vector<8x32xf32> to vector<2x4x32xf32>
    "tpu.trace_start"() <{level = 10 : i32, message = "bsd,bdn->bsn"}> : () -> ()
    %cst_77 = arith.constant dense<0.000000e+00> : vector<2x4x16xf32>
    %219 = tpu.matmul %218, %75, %cst_77 {dimension_numbers = #tpu.dot_dimension_numbers<[2], [1], [1], [2], [0, 0, 0, 1, 1, 2], [0], [0]>} : vector<2x4x32xf32>, vector<2x32x16xf32>, vector<2x4x16xf32> -> vector<2x4x16xf32>
    "tpu.trace_stop"() : () -> ()
    %cst_78 = arith.constant dense<0xFF800000> : vector<2x16xf32>
    %220 = vector.multi_reduction <maximumf>, %219, %cst_78 [1] : vector<2x4x16xf32> to vector<2x16xf32>
    %221 = vector.shape_cast %220 : vector<2x16xf32> to vector<2x1x16xf32>
    %222 = vector.broadcast %221 : vector<2x1x16xf32> to vector<2x4x16xf32>
    %223 = arith.subf %219, %222 : vector<2x4x16xf32>
    %224 = math.exp %223 : vector<2x4x16xf32>
    %cst_79 = arith.constant dense<0.000000e+00> : vector<2x16xf32>
    %225 = vector.multi_reduction <add>, %224, %cst_79 [1] : vector<2x4x16xf32> to vector<2x16xf32>
    %226 = vector.shape_cast %225 : vector<2x16xf32> to vector<2x1x16xf32>
    %227 = tpu.reciprocal %226 {approx = true} : vector<2x1x16xf32> -> vector<2x1x16xf32>
    %228 = vector.broadcast %227 : vector<2x1x16xf32> to vector<2x4x16xf32>
    %229 = arith.mulf %224, %228 : vector<2x4x16xf32>
    %cst_80 = arith.constant 9.99999993E-9 : f32
    %230 = vector.broadcast %cst_80 : f32 to vector<2x4x16xf32>
    %231 = arith.addf %229, %230 : vector<2x4x16xf32>
    %cst_81 = arith.constant 0.000000e+00 : f32
    %232 = vector.broadcast %cst_81 : f32 to vector<2x4x16xf32>
    %233 = arith.select %37, %232, %231 : vector<2x4x16xi1>, vector<2x4x16xf32>
    %cst_82 = arith.constant dense<0.000000e+00> : vector<2x4xf32>
    %234 = vector.multi_reduction <add>, %233, %cst_82 [2] : vector<2x4x16xf32> to vector<2x4xf32>
    %235 = vector.shape_cast %234 : vector<2x4xf32> to vector<2x4x1xf32>
    %236 = vector.broadcast %235 : vector<2x4x1xf32> to vector<2x4x16xf32>
    %237 = arith.divf %233, %236 : vector<2x4x16xf32>
    "tpu.trace_start"() <{level = 10 : i32, message = "bsn,bnd->bsd"}> : () -> ()
    %cst_83 = arith.constant dense<0.000000e+00> : vector<2x4x32xf32>
    %238 = tpu.matmul %237, %76, %cst_83 {dimension_numbers = #tpu.dot_dimension_numbers<[2], [1], [1], [2], [0, 0, 0, 1, 1, 2], [0], [0]>} : vector<2x4x16xf32>, vector<2x16x32xf32>, vector<2x4x32xf32> -> vector<2x4x32xf32>
    "tpu.trace_stop"() : () -> ()
    %239 = vector.shape_cast %238 : vector<2x4x32xf32> to vector<8x32xf32>
    %cst_84 = arith.constant dense<0.000000e+00> : vector<8x32xf32>
    %240 = tpu.matmul %239, %21, %cst_84 {dimension_numbers = #tpu.dot_dimension_numbers<[1], [0], [0], [1], [0, 0, 1, 1], [], []>} : vector<8x32xf32>, vector<32x32xf32>, vector<8x32xf32> -> vector<8x32xf32>
    %241 = vector.broadcast %27 : vector<1x32xf32> to vector<8x32xf32>
    %242 = arith.addf %240, %241 : vector<8x32xf32>
    %cst_85 = arith.constant dense<0.000000e+00> : vector<8x32xf32>
    %243 = tpu.matmul %192, %24, %cst_85 {dimension_numbers = #tpu.dot_dimension_numbers<[1], [0], [0], [1], [0, 0, 1, 1], [], []>} : vector<8x32xf32>, vector<32x32xf32>, vector<8x32xf32> -> vector<8x32xf32>
    %244 = arith.addf %242, %243 : vector<8x32xf32>
    %245 = vector.broadcast %30 : vector<1x32xf32> to vector<8x32xf32>
    %246 = arith.addf %244, %245 : vector<8x32xf32>
    %247 = arith.negf %246 : vector<8x32xf32>
    %248 = math.exp %247 : vector<8x32xf32>
    %cst_86 = arith.constant 1.000000e+00 : f32
    %249 = vector.broadcast %cst_86 : f32 to vector<8x32xf32>
    %250 = arith.addf %249, %248 : vector<8x32xf32>
    %251 = arith.divf %249, %250 : vector<8x32xf32>
    %cst_87 = arith.constant dense<0.000000e+00> : vector<8x32xf32>
    %252 = tpu.matmul %239, %22, %cst_87 {dimension_numbers = #tpu.dot_dimension_numbers<[1], [0], [0], [1], [0, 0, 1, 1], [], []>} : vector<8x32xf32>, vector<32x32xf32>, vector<8x32xf32> -> vector<8x32xf32>
    %253 = vector.broadcast %28 : vector<1x32xf32> to vector<8x32xf32>
    %254 = arith.addf %252, %253 : vector<8x32xf32>
    %cst_88 = arith.constant dense<0.000000e+00> : vector<8x32xf32>
    %255 = tpu.matmul %192, %25, %cst_88 {dimension_numbers = #tpu.dot_dimension_numbers<[1], [0], [0], [1], [0, 0, 1, 1], [], []>} : vector<8x32xf32>, vector<32x32xf32>, vector<8x32xf32> -> vector<8x32xf32>
    %256 = arith.addf %254, %255 : vector<8x32xf32>
    %257 = vector.broadcast %31 : vector<1x32xf32> to vector<8x32xf32>
    %258 = arith.addf %256, %257 : vector<8x32xf32>
    %259 = arith.negf %258 : vector<8x32xf32>
    %260 = math.exp %259 : vector<8x32xf32>
    %cst_89 = arith.constant 1.000000e+00 : f32
    %261 = vector.broadcast %cst_89 : f32 to vector<8x32xf32>
    %262 = arith.addf %261, %260 : vector<8x32xf32>
    %263 = arith.divf %261, %262 : vector<8x32xf32>
    %cst_90 = arith.constant dense<0.000000e+00> : vector<8x32xf32>
    %264 = tpu.matmul %239, %23, %cst_90 {dimension_numbers = #tpu.dot_dimension_numbers<[1], [0], [0], [1], [0, 0, 1, 1], [], []>} : vector<8x32xf32>, vector<32x32xf32>, vector<8x32xf32> -> vector<8x32xf32>
    %265 = vector.broadcast %29 : vector<1x32xf32> to vector<8x32xf32>
    %266 = arith.addf %264, %265 : vector<8x32xf32>
    %cst_91 = arith.constant dense<0.000000e+00> : vector<8x32xf32>
    %267 = tpu.matmul %192, %26, %cst_91 {dimension_numbers = #tpu.dot_dimension_numbers<[1], [0], [0], [1], [0, 0, 1, 1], [], []>} : vector<8x32xf32>, vector<32x32xf32>, vector<8x32xf32> -> vector<8x32xf32>
    %268 = vector.broadcast %32 : vector<1x32xf32> to vector<8x32xf32>
    %269 = arith.addf %267, %268 : vector<8x32xf32>
    %270 = arith.mulf %251, %269 : vector<8x32xf32>
    %271 = arith.addf %266, %270 : vector<8x32xf32>
    %272 = math.tanh %271 : vector<8x32xf32>
    %cst_92 = arith.constant 1.000000e+00 : f32
    %273 = vector.broadcast %cst_92 : f32 to vector<8x32xf32>
    %274 = arith.subf %273, %263 : vector<8x32xf32>
    %275 = arith.mulf %274, %272 : vector<8x32xf32>
    %276 = arith.mulf %263, %192 : vector<8x32xf32>
    %277 = arith.addf %275, %276 : vector<8x32xf32>
    %cst_93 = arith.constant dense<0.000000e+00> : vector<8xf32>
    %278 = vector.multi_reduction <add>, %277, %cst_93 [1] : vector<8x32xf32> to vector<8xf32>
    %279 = vector.shape_cast %278 : vector<8xf32> to vector<8x1xf32>
    %cst_94 = arith.constant 3.200000e+01 : f32
    %280 = vector.broadcast %cst_94 : f32 to vector<8x1xf32>
    %281 = arith.divf %279, %280 : vector<8x1xf32>
    %282 = vector.broadcast %281 : vector<8x1xf32> to vector<8x32xf32>
    %283 = arith.subf %277, %282 : vector<8x32xf32>
    %284 = arith.mulf %283, %283 : vector<8x32xf32>
    %cst_95 = arith.constant dense<0.000000e+00> : vector<8xf32>
    %285 = vector.multi_reduction <add>, %284, %cst_95 [1] : vector<8x32xf32> to vector<8xf32>
    %286 = vector.shape_cast %285 : vector<8xf32> to vector<8x1xf32>
    %cst_96 = arith.constant 3.200000e+01 : f32
    %287 = vector.broadcast %cst_96 : f32 to vector<8x1xf32>
    %288 = arith.divf %286, %287 : vector<8x1xf32>
    %289 = vector.broadcast %281 : vector<8x1xf32> to vector<8x32xf32>
    %290 = arith.subf %277, %289 : vector<8x32xf32>
    %cst_97 = arith.constant 9.99999974E-6 : f32
    %291 = vector.broadcast %cst_97 : f32 to vector<8x1xf32>
    %292 = arith.addf %288, %291 : vector<8x1xf32>
    %293 = math.rsqrt %292 : vector<8x1xf32>
    %294 = vector.broadcast %293 : vector<8x1xf32> to vector<8x32xf32>
    %295 = arith.mulf %290, %294 : vector<8x32xf32>
    %296 = vector.broadcast %13 : vector<1x32xf32> to vector<8x32xf32>
    %297 = arith.mulf %295, %296 : vector<8x32xf32>
    %298 = vector.broadcast %14 : vector<1x32xf32> to vector<8x32xf32>
    %299 = arith.addf %297, %298 : vector<8x32xf32>
    %cst_98 = arith.constant dense<0.000000e+00> : vector<8x128xf32>
    %300 = tpu.matmul %299, %19, %cst_98 {dimension_numbers = #tpu.dot_dimension_numbers<[1], [0], [0], [1], [0, 0, 1, 1], [], []>} : vector<8x32xf32>, vector<32x128xf32>, vector<8x128xf32> -> vector<8x128xf32>
    %301 = vector.broadcast %15 : vector<1x128xf32> to vector<8x128xf32>
    %302 = arith.addf %300, %301 : vector<8x128xf32>
    %cst_99 = arith.constant 0.000000e+00 : f32
    %303 = vector.broadcast %cst_99 : f32 to vector<8x128xf32>
    %304 = arith.maximumf %302, %303 : vector<8x128xf32>
    %cst_100 = arith.constant dense<0.000000e+00> : vector<8x32xf32>
    %305 = tpu.matmul %304, %20, %cst_100 {dimension_numbers = #tpu.dot_dimension_numbers<[1], [0], [0], [1], [0, 0, 1, 1], [], []>} : vector<8x128xf32>, vector<128x32xf32>, vector<8x32xf32> -> vector<8x32xf32>
    %306 = arith.addf %277, %305 : vector<8x32xf32>
    %307 = vector.broadcast %8 : vector<1x32xf32> to vector<8x32xf32>
    %308 = arith.addf %306, %307 : vector<8x32xf32>
    %cst_101 = arith.constant dense<0.000000e+00> : vector<8xf32>
    %309 = vector.multi_reduction <add>, %308, %cst_101 [1] : vector<8x32xf32> to vector<8xf32>
    %310 = vector.shape_cast %309 : vector<8xf32> to vector<8x1xf32>
    %cst_102 = arith.constant 3.200000e+01 : f32
    %311 = vector.broadcast %cst_102 : f32 to vector<8x1xf32>
    %312 = arith.divf %310, %311 : vector<8x1xf32>
    %313 = vector.broadcast %312 : vector<8x1xf32> to vector<8x32xf32>
    %314 = arith.subf %308, %313 : vector<8x32xf32>
    %315 = arith.mulf %314, %314 : vector<8x32xf32>
    %cst_103 = arith.constant dense<0.000000e+00> : vector<8xf32>
    %316 = vector.multi_reduction <add>, %315, %cst_103 [1] : vector<8x32xf32> to vector<8xf32>
    %317 = vector.shape_cast %316 : vector<8xf32> to vector<8x1xf32>
    %cst_104 = arith.constant 3.200000e+01 : f32
    %318 = vector.broadcast %cst_104 : f32 to vector<8x1xf32>
    %319 = arith.divf %317, %318 : vector<8x1xf32>
    %320 = vector.broadcast %312 : vector<8x1xf32> to vector<8x32xf32>
    %321 = arith.subf %308, %320 : vector<8x32xf32>
    %cst_105 = arith.constant 9.99999974E-6 : f32
    %322 = vector.broadcast %cst_105 : f32 to vector<8x1xf32>
    %323 = arith.addf %319, %322 : vector<8x1xf32>
    %324 = math.rsqrt %323 : vector<8x1xf32>
    %325 = vector.broadcast %324 : vector<8x1xf32> to vector<8x32xf32>
    %326 = arith.mulf %321, %325 : vector<8x32xf32>
    %327 = vector.broadcast %11 : vector<1x32xf32> to vector<8x32xf32>
    %328 = arith.mulf %326, %327 : vector<8x32xf32>
    %329 = vector.broadcast %12 : vector<1x32xf32> to vector<8x32xf32>
    %330 = arith.addf %328, %329 : vector<8x32xf32>
    %cst_106 = arith.constant dense<0.000000e+00> : vector<8x32xf32>
    %331 = tpu.matmul %330, %16, %cst_106 {dimension_numbers = #tpu.dot_dimension_numbers<[1], [0], [0], [1], [0, 0, 1, 1], [], []>} : vector<8x32xf32>, vector<32x32xf32>, vector<8x32xf32> -> vector<8x32xf32>
    %332 = vector.broadcast %5 : vector<1x32xf32> to vector<8x32xf32>
    %333 = arith.addf %331, %332 : vector<8x32xf32>
    %334 = vector.shape_cast %333 : vector<8x32xf32> to vector<2x4x32xf32>
    "tpu.trace_start"() <{level = 10 : i32, message = "bsd,bdn->bsn"}> : () -> ()
    %cst_107 = arith.constant dense<0.000000e+00> : vector<2x4x16xf32>
    %335 = tpu.matmul %334, %75, %cst_107 {dimension_numbers = #tpu.dot_dimension_numbers<[2], [1], [1], [2], [0, 0, 0, 1, 1, 2], [0], [0]>} : vector<2x4x32xf32>, vector<2x32x16xf32>, vector<2x4x16xf32> -> vector<2x4x16xf32>
    "tpu.trace_stop"() : () -> ()
    %cst_108 = arith.constant dense<0xFF800000> : vector<2x16xf32>
    %336 = vector.multi_reduction <maximumf>, %335, %cst_108 [1] : vector<2x4x16xf32> to vector<2x16xf32>
    %337 = vector.shape_cast %336 : vector<2x16xf32> to vector<2x1x16xf32>
    %338 = vector.broadcast %337 : vector<2x1x16xf32> to vector<2x4x16xf32>
    %339 = arith.subf %335, %338 : vector<2x4x16xf32>
    %340 = math.exp %339 : vector<2x4x16xf32>
    %cst_109 = arith.constant dense<0.000000e+00> : vector<2x16xf32>
    %341 = vector.multi_reduction <add>, %340, %cst_109 [1] : vector<2x4x16xf32> to vector<2x16xf32>
    %342 = vector.shape_cast %341 : vector<2x16xf32> to vector<2x1x16xf32>
    %343 = tpu.reciprocal %342 {approx = true} : vector<2x1x16xf32> -> vector<2x1x16xf32>
    %344 = vector.broadcast %343 : vector<2x1x16xf32> to vector<2x4x16xf32>
    %345 = arith.mulf %340, %344 : vector<2x4x16xf32>
    %cst_110 = arith.constant 9.99999993E-9 : f32
    %346 = vector.broadcast %cst_110 : f32 to vector<2x4x16xf32>
    %347 = arith.addf %345, %346 : vector<2x4x16xf32>
    %cst_111 = arith.constant 0.000000e+00 : f32
    %348 = vector.broadcast %cst_111 : f32 to vector<2x4x16xf32>
    %349 = arith.select %37, %348, %347 : vector<2x4x16xi1>, vector<2x4x16xf32>
    %cst_112 = arith.constant dense<0.000000e+00> : vector<2x4xf32>
    %350 = vector.multi_reduction <add>, %349, %cst_112 [2] : vector<2x4x16xf32> to vector<2x4xf32>
    %351 = vector.shape_cast %350 : vector<2x4xf32> to vector<2x4x1xf32>
    %352 = vector.broadcast %351 : vector<2x4x1xf32> to vector<2x4x16xf32>
    %353 = arith.divf %349, %352 : vector<2x4x16xf32>
    "tpu.trace_start"() <{level = 10 : i32, message = "bsn,bnd->bsd"}> : () -> ()
    %cst_113 = arith.constant dense<0.000000e+00> : vector<2x4x32xf32>
    %354 = tpu.matmul %353, %76, %cst_113 {dimension_numbers = #tpu.dot_dimension_numbers<[2], [1], [1], [2], [0, 0, 0, 1, 1, 2], [0], [0]>} : vector<2x4x16xf32>, vector<2x16x32xf32>, vector<2x4x32xf32> -> vector<2x4x32xf32>
    "tpu.trace_stop"() : () -> ()
    %355 = vector.shape_cast %354 : vector<2x4x32xf32> to vector<8x32xf32>
    %cst_114 = arith.constant dense<0.000000e+00> : vector<8x32xf32>
    %356 = tpu.matmul %355, %21, %cst_114 {dimension_numbers = #tpu.dot_dimension_numbers<[1], [0], [0], [1], [0, 0, 1, 1], [], []>} : vector<8x32xf32>, vector<32x32xf32>, vector<8x32xf32> -> vector<8x32xf32>
    %357 = vector.broadcast %27 : vector<1x32xf32> to vector<8x32xf32>
    %358 = arith.addf %356, %357 : vector<8x32xf32>
    %cst_115 = arith.constant dense<0.000000e+00> : vector<8x32xf32>
    %359 = tpu.matmul %308, %24, %cst_115 {dimension_numbers = #tpu.dot_dimension_numbers<[1], [0], [0], [1], [0, 0, 1, 1], [], []>} : vector<8x32xf32>, vector<32x32xf32>, vector<8x32xf32> -> vector<8x32xf32>
    %360 = arith.addf %358, %359 : vector<8x32xf32>
    %361 = vector.broadcast %30 : vector<1x32xf32> to vector<8x32xf32>
    %362 = arith.addf %360, %361 : vector<8x32xf32>
    %363 = arith.negf %362 : vector<8x32xf32>
    %364 = math.exp %363 : vector<8x32xf32>
    %cst_116 = arith.constant 1.000000e+00 : f32
    %365 = vector.broadcast %cst_116 : f32 to vector<8x32xf32>
    %366 = arith.addf %365, %364 : vector<8x32xf32>
    %367 = arith.divf %365, %366 : vector<8x32xf32>
    %cst_117 = arith.constant dense<0.000000e+00> : vector<8x32xf32>
    %368 = tpu.matmul %355, %22, %cst_117 {dimension_numbers = #tpu.dot_dimension_numbers<[1], [0], [0], [1], [0, 0, 1, 1], [], []>} : vector<8x32xf32>, vector<32x32xf32>, vector<8x32xf32> -> vector<8x32xf32>
    %369 = vector.broadcast %28 : vector<1x32xf32> to vector<8x32xf32>
    %370 = arith.addf %368, %369 : vector<8x32xf32>
    %cst_118 = arith.constant dense<0.000000e+00> : vector<8x32xf32>
    %371 = tpu.matmul %308, %25, %cst_118 {dimension_numbers = #tpu.dot_dimension_numbers<[1], [0], [0], [1], [0, 0, 1, 1], [], []>} : vector<8x32xf32>, vector<32x32xf32>, vector<8x32xf32> -> vector<8x32xf32>
    %372 = arith.addf %370, %371 : vector<8x32xf32>
    %373 = vector.broadcast %31 : vector<1x32xf32> to vector<8x32xf32>
    %374 = arith.addf %372, %373 : vector<8x32xf32>
    %375 = arith.negf %374 : vector<8x32xf32>
    %376 = math.exp %375 : vector<8x32xf32>
    %cst_119 = arith.constant 1.000000e+00 : f32
    %377 = vector.broadcast %cst_119 : f32 to vector<8x32xf32>
    %378 = arith.addf %377, %376 : vector<8x32xf32>
    %379 = arith.divf %377, %378 : vector<8x32xf32>
    %cst_120 = arith.constant dense<0.000000e+00> : vector<8x32xf32>
    %380 = tpu.matmul %355, %23, %cst_120 {dimension_numbers = #tpu.dot_dimension_numbers<[1], [0], [0], [1], [0, 0, 1, 1], [], []>} : vector<8x32xf32>, vector<32x32xf32>, vector<8x32xf32> -> vector<8x32xf32>
    %381 = vector.broadcast %29 : vector<1x32xf32> to vector<8x32xf32>
    %382 = arith.addf %380, %381 : vector<8x32xf32>
    %cst_121 = arith.constant dense<0.000000e+00> : vector<8x32xf32>
    %383 = tpu.matmul %308, %26, %cst_121 {dimension_numbers = #tpu.dot_dimension_numbers<[1], [0], [0], [1], [0, 0, 1, 1], [], []>} : vector<8x32xf32>, vector<32x32xf32>, vector<8x32xf32> -> vector<8x32xf32>
    %384 = vector.broadcast %32 : vector<1x32xf32> to vector<8x32xf32>
    %385 = arith.addf %383, %384 : vector<8x32xf32>
    %386 = arith.mulf %367, %385 : vector<8x32xf32>
    %387 = arith.addf %382, %386 : vector<8x32xf32>
    %388 = math.tanh %387 : vector<8x32xf32>
    %cst_122 = arith.constant 1.000000e+00 : f32
    %389 = vector.broadcast %cst_122 : f32 to vector<8x32xf32>
    %390 = arith.subf %389, %379 : vector<8x32xf32>
    %391 = arith.mulf %390, %388 : vector<8x32xf32>
    %392 = arith.mulf %379, %308 : vector<8x32xf32>
    %393 = arith.addf %391, %392 : vector<8x32xf32>
    %cst_123 = arith.constant dense<0.000000e+00> : vector<8xf32>
    %394 = vector.multi_reduction <add>, %393, %cst_123 [1] : vector<8x32xf32> to vector<8xf32>
    %395 = vector.shape_cast %394 : vector<8xf32> to vector<8x1xf32>
    %cst_124 = arith.constant 3.200000e+01 : f32
    %396 = vector.broadcast %cst_124 : f32 to vector<8x1xf32>
    %397 = arith.divf %395, %396 : vector<8x1xf32>
    %398 = vector.broadcast %397 : vector<8x1xf32> to vector<8x32xf32>
    %399 = arith.subf %393, %398 : vector<8x32xf32>
    %400 = arith.mulf %399, %399 : vector<8x32xf32>
    %cst_125 = arith.constant dense<0.000000e+00> : vector<8xf32>
    %401 = vector.multi_reduction <add>, %400, %cst_125 [1] : vector<8x32xf32> to vector<8xf32>
    %402 = vector.shape_cast %401 : vector<8xf32> to vector<8x1xf32>
    %cst_126 = arith.constant 3.200000e+01 : f32
    %403 = vector.broadcast %cst_126 : f32 to vector<8x1xf32>
    %404 = arith.divf %402, %403 : vector<8x1xf32>
    %405 = vector.broadcast %397 : vector<8x1xf32> to vector<8x32xf32>
    %406 = arith.subf %393, %405 : vector<8x32xf32>
    %cst_127 = arith.constant 9.99999974E-6 : f32
    %407 = vector.broadcast %cst_127 : f32 to vector<8x1xf32>
    %408 = arith.addf %404, %407 : vector<8x1xf32>
    %409 = math.rsqrt %408 : vector<8x1xf32>
    %410 = vector.broadcast %409 : vector<8x1xf32> to vector<8x32xf32>
    %411 = arith.mulf %406, %410 : vector<8x32xf32>
    %412 = vector.broadcast %13 : vector<1x32xf32> to vector<8x32xf32>
    %413 = arith.mulf %411, %412 : vector<8x32xf32>
    %414 = vector.broadcast %14 : vector<1x32xf32> to vector<8x32xf32>
    %415 = arith.addf %413, %414 : vector<8x32xf32>
    %cst_128 = arith.constant dense<0.000000e+00> : vector<8x128xf32>
    %416 = tpu.matmul %415, %19, %cst_128 {dimension_numbers = #tpu.dot_dimension_numbers<[1], [0], [0], [1], [0, 0, 1, 1], [], []>} : vector<8x32xf32>, vector<32x128xf32>, vector<8x128xf32> -> vector<8x128xf32>
    %417 = vector.broadcast %15 : vector<1x128xf32> to vector<8x128xf32>
    %418 = arith.addf %416, %417 : vector<8x128xf32>
    %cst_129 = arith.constant 0.000000e+00 : f32
    %419 = vector.broadcast %cst_129 : f32 to vector<8x128xf32>
    %420 = arith.maximumf %418, %419 : vector<8x128xf32>
    %cst_130 = arith.constant dense<0.000000e+00> : vector<8x32xf32>
    %421 = tpu.matmul %420, %20, %cst_130 {dimension_numbers = #tpu.dot_dimension_numbers<[1], [0], [0], [1], [0, 0, 1, 1], [], []>} : vector<8x128xf32>, vector<128x32xf32>, vector<8x32xf32> -> vector<8x32xf32>
    %422 = arith.addf %393, %421 : vector<8x32xf32>
    %423 = vector.broadcast %8 : vector<1x32xf32> to vector<8x32xf32>
    %424 = arith.addf %422, %423 : vector<8x32xf32>
    %425 = vector.shape_cast %424 : vector<8x32xf32> to vector<2x4x32xf32>
    %426 = vector.extract_strided_slice %425 {offsets = [0, 0, 0], sizes = [2, 1, 32], strides = [1, 1, 1]} : vector<2x4x32xf32> to vector<2x1x32xf32>
    %c0_131 = arith.constant 0 : index
    %c0_132 = arith.constant 0 : index
    %c0_133 = arith.constant 0 : index
    %427 = vector.load %arg17[%c0_131, %c0_132, %c0_133] : memref<2x1x128xf32, #tpu.memory_space<vmem>>, vector<2x1x32xf32>
    tpu.vector_store %arg17[%c0_131, %c0_132, %c0_133], %426 {strides = array<i32>} : memref<2x1x128xf32, #tpu.memory_space<vmem>>, vector<2x1x32xf32>,
    %428 = vector.extract_strided_slice %425 {offsets = [0, 1, 0], sizes = [2, 1, 32], strides = [1, 1, 1]} : vector<2x4x32xf32> to vector<2x1x32xf32>
    %c0_134 = arith.constant 0 : index
    %c0_135 = arith.constant 0 : index
    %c32 = arith.constant 32 : index
    %429 = vector.load %arg17[%c0_134, %c0_135, %c32] : memref<2x1x128xf32, #tpu.memory_space<vmem>>, vector<2x1x32xf32>
    tpu.vector_store %arg17[%c0_134, %c0_135, %c32], %428 {strides = array<i32>} : memref<2x1x128xf32, #tpu.memory_space<vmem>>, vector<2x1x32xf32>,
    %430 = vector.extract_strided_slice %425 {offsets = [0, 2, 0], sizes = [2, 1, 32], strides = [1, 1, 1]} : vector<2x4x32xf32> to vector<2x1x32xf32>
    %c0_136 = arith.constant 0 : index
    %c0_137 = arith.constant 0 : index
    %c64 = arith.constant 64 : index
    %431 = vector.load %arg17[%c0_136, %c0_137, %c64] : memref<2x1x128xf32, #tpu.memory_space<vmem>>, vector<2x1x32xf32>
    tpu.vector_store %arg17[%c0_136, %c0_137, %c64], %430 {strides = array<i32>} : memref<2x1x128xf32, #tpu.memory_space<vmem>>, vector<2x1x32xf32>,
    %432 = vector.extract_strided_slice %425 {offsets = [0, 3, 0], sizes = [2, 1, 32], strides = [1, 1, 1]} : vector<2x4x32xf32> to vector<2x1x32xf32>
    %c0_138 = arith.constant 0 : index
    %c0_139 = arith.constant 0 : index
    %c96 = arith.constant 96 : index
    %433 = vector.load %arg17[%c0_138, %c0_139, %c96] : memref<2x1x128xf32, #tpu.memory_space<vmem>>, vector<2x1x32xf32>
    tpu.vector_store %arg17[%c0_138, %c0_139, %c96], %432 {strides = array<i32>} : memref<2x1x128xf32, #tpu.memory_space<vmem>>, vector<2x1x32xf32>,
    return
  }
  func.func @transform_0(%arg0: i32) -> (i32, i32, i32) {
    %c0_i32 = arith.constant 0 : i32
    %c0_i32_0 = arith.constant 0 : i32
    %c0_i32_1 = arith.constant 0 : i32
    return %arg0, %c0_i32, %c0_i32_0 : i32, i32, i32
  }
  func.func @transform_1(%arg0: i32) -> (i32, i32, i32) {
    %c0_i32 = arith.constant 0 : i32
    %c0_i32_0 = arith.constant 0 : i32
    %c0_i32_1 = arith.constant 0 : i32
    return %arg0, %c0_i32, %c0_i32_0 : i32, i32, i32
  }
  func.func @transform_2(%arg0: i32) -> (i32, i32, i32) {
    %c0_i32 = arith.constant 0 : i32
    %c0_i32_0 = arith.constant 0 : i32
    %c0_i32_1 = arith.constant 0 : i32
    return %arg0, %c0_i32, %c0_i32_0 : i32, i32, i32
  }
  func.func @transform_3(%arg0: i32) -> (i32, i32) {
    %c0_i32 = arith.constant 0 : i32
    %c0_i32_0 = arith.constant 0 : i32
    %c0_i32_1 = arith.constant 0 : i32
    return %c0_i32, %c0_i32_0 : i32, i32
  }
  func.func @transform_4(%arg0: i32) -> (i32, i32) {
    %c0_i32 = arith.constant 0 : i32
    %c0_i32_0 = arith.constant 0 : i32
    %c0_i32_1 = arith.constant 0 : i32
    return %c0_i32, %c0_i32_0 : i32, i32
  }
  func.func @transform_5(%arg0: i32) -> (i32, i32) {
    %c0_i32 = arith.constant 0 : i32
    %c0_i32_0 = arith.constant 0 : i32
    %c0_i32_1 = arith.constant 0 : i32
    return %c0_i32, %c0_i32_0 : i32, i32
  }
  func.func @transform_6(%arg0: i32) -> (i32, i32) {
    %c0_i32 = arith.constant 0 : i32
    %c0_i32_0 = arith.constant 0 : i32
    %c0_i32_1 = arith.constant 0 : i32
    return %c0_i32, %c0_i32_0 : i32, i32
  }
  func.func @transform_7(%arg0: i32) -> (i32, i32) {
    %c0_i32 = arith.constant 0 : i32
    %c0_i32_0 = arith.constant 0 : i32
    %c0_i32_1 = arith.constant 0 : i32
    return %c0_i32, %c0_i32_0 : i32, i32
  }
  func.func @transform_8(%arg0: i32) -> (i32, i32) {
    %c0_i32 = arith.constant 0 : i32
    %c0_i32_0 = arith.constant 0 : i32
    %c0_i32_1 = arith.constant 0 : i32
    return %c0_i32, %c0_i32_0 : i32, i32
  }
  func.func @transform_9(%arg0: i32) -> (i32, i32) {
    %c0_i32 = arith.constant 0 : i32
    %c0_i32_0 = arith.constant 0 : i32
    %c0_i32_1 = arith.constant 0 : i32
    return %c0_i32, %c0_i32_0 : i32, i32
  }
  func.func @transform_10(%arg0: i32) -> (i32, i32) {
    %c0_i32 = arith.constant 0 : i32
    %c0_i32_0 = arith.constant 0 : i32
    %c0_i32_1 = arith.constant 0 : i32
    return %c0_i32, %c0_i32_0 : i32, i32
  }
  func.func @transform_11(%arg0: i32) -> (i32, i32) {
    %c0_i32 = arith.constant 0 : i32
    %c0_i32_0 = arith.constant 0 : i32
    %c0_i32_1 = arith.constant 0 : i32
    return %c0_i32, %c0_i32_0 : i32, i32
  }
  func.func @transform_12(%arg0: i32) -> (i32, i32) {
    %c0_i32 = arith.constant 0 : i32
    %c0_i32_0 = arith.constant 0 : i32
    %c0_i32_1 = arith.constant 0 : i32
    return %c0_i32, %c0_i32_0 : i32, i32
  }
  func.func @transform_13(%arg0: i32) -> (i32, i32) {
    %c0_i32 = arith.constant 0 : i32
    %c0_i32_0 = arith.constant 0 : i32
    %c0_i32_1 = arith.constant 0 : i32
    return %c0_i32, %c0_i32_0 : i32, i32
  }
  func.func @transform_14(%arg0: i32) -> (i32, i32) {
    %c0_i32 = arith.constant 0 : i32
    %c0_i32_0 = arith.constant 0 : i32
    %c0_i32_1 = arith.constant 0 : i32
    return %c0_i32, %c0_i32_0 : i32, i32
  }
  func.func @transform_15(%arg0: i32) -> (i32, i32) {
    %c0_i32 = arith.constant 0 : i32
    %c0_i32_0 = arith.constant 0 : i32
    %c0_i32_1 = arith.constant 0 : i32
    return %c0_i32, %c0_i32_0 : i32, i32
  }
  func.func @transform_16(%arg0: i32) -> (i32, i32, i32) {
    %c0_i32 = arith.constant 0 : i32
    %c0_i32_0 = arith.constant 0 : i32
    %c0_i32_1 = arith.constant 0 : i32
    return %arg0, %c0_i32, %c0_i32_0 : i32, i32, i32
  }
}

</mosaic_0001>

<llo_original>
// kernel: tpu_custom_call.1
$region0: #{tpu_custom_call.1}
  #allocation0 [shape = 'u32[]', space=smem, size = 0x4, offset = 0x4, fixed_abs, tag = 'smem constant byte address 0x4 - core index']
  #allocation1 [shape = 'u32[144,128]{1,0:T(1,128)}', space=vmem, size = 0x12000, scoped, tag = 'internal scratch']
  %s0 = inlined_call_operand.vmem [shape: f32[8,16,32], index: 0, kind: input, shape index: {}]
  %s1 = inlined_call_operand.hbm [shape: f32[8,1,16], index: 1, kind: input, shape index: {}]
  %s2 = inlined_call_operand.vmem [shape: f32[8,4,32], index: 2, kind: input, shape index: {}]
  %s3 = inlined_call_operand.hbm [shape: f32[32,32], index: 3, kind: input, shape index: {}]
  %s4 = inlined_call_operand.hbm [shape: f32[32,32], index: 4, kind: input, shape index: {}]
  %s5 = inlined_call_operand.hbm [shape: f32[32,32], index: 5, kind: input, shape index: {}]
  %s6 = inlined_call_operand.hbm [shape: f32[32,32], index: 6, kind: input, shape index: {}]
  %s7 = inlined_call_operand.hbm [shape: f32[32,32], index: 7, kind: input, shape index: {}]
  %s8 = inlined_call_operand.hbm [shape: f32[32,32], index: 8, kind: input, shape index: {}]
  %s9 = inlined_call_operand.hbm [shape: f32[32,32], index: 9, kind: input, shape index: {}]
  %s10 = inlined_call_operand.hbm [shape: f32[32,32], index: 10, kind: input, shape index: {}]
  %s11 = inlined_call_operand.hbm [shape: f32[32,32], index: 11, kind: input, shape index: {}]
  %s12 = inlined_call_operand.hbm [shape: f32[32,128], index: 12, kind: input, shape index: {}]
  %s13 = inlined_call_operand.vmem [shape: f32[1,128], index: 13, kind: input, shape index: {}]
  %s14 = inlined_call_operand.vmem [shape: f32[128,32], index: 14, kind: input, shape index: {}]
  %s15 = inlined_call_operand.vmem [shape: f32[16,32], index: 15, kind: input, shape index: {}]
  %s16 = inlined_call_operand.hbm [shape: f32[8,1,128], index: 16, kind: output, shape index: {}]
  %s17 = sld [smem:[#allocation0]]
  $region141: #{tpu_custom_call.1} parent=0
    _
  %s19 = ssub.s32 1, %s17
  %s20 = scalar_select 0, %s19, %s17
  $region1: #{tpu_custom_call.1} parent=0
    #allocation2 [shape = 'u8[2048]{0}', space=vmem, size = 0x800, scoped, tag = 'input window, operand 1']
    #allocation3 [shape = 's32[2]{0}', space=sflag, size = 0x8, scoped, tag = 'scoped memory for tpu_custom_call.1']
    #allocation4 [shape = 's32[2]{0}', space=sflag, size = 0x8, scoped, tag = 'scoped memory for tpu_custom_call.1']
    #allocation5 [shape = 'u8[16384]{0}', space=vmem, size = 0x4000, scoped, tag = 'input window, operand 3, single buffered']
    #allocation6 [shape = 's32[1]{0}', space=sflag, size = 0x4, scoped, tag = 'scoped memory for tpu_custom_call.1']
    #allocation7 [shape = 'u8[16384]{0}', space=vmem, size = 0x4000, scoped, tag = 'input window, operand 4, single buffered']
    #allocation8 [shape = 'u8[16384]{0}', space=vmem, size = 0x4000, scoped, tag = 'input window, operand 5, single buffered']
    #allocation9 [shape = 's32[1]{0}', space=sflag, size = 0x4, scoped, tag = 'scoped memory for tpu_custom_call.1']
    #allocation10 [shape = 'u8[16384]{0}', space=vmem, size = 0x4000, scoped, tag = 'input window, operand 6, single buffered']
    #allocation11 [shape = 'u8[16384]{0}', space=vmem, size = 0x4000, scoped, tag = 'input window, operand 7, single buffered']
    #allocation12 [shape = 's32[1]{0}', space=sflag, size = 0x4, scoped, tag = 'scoped memory for tpu_custom_call.1']
    #allocation13 [shape = 'u8[16384]{0}', space=vmem, size = 0x4000, scoped, tag = 'input window, operand 8, single buffered']
    #allocation14 [shape = 'u8[16384]{0}', space=vmem, size = 0x4000, scoped, tag = 'input window, operand 9, single buffered']
    #allocation15 [shape = 's32[1]{0}', space=sflag, size = 0x4, scoped, tag = 'scoped memory for tpu_custom_call.1']
    #allocation16 [shape = 'u8[16384]{0}', space=vmem, size = 0x4000, scoped, tag = 'input window, operand 10, single buffered']
    #allocation17 [shape = 'u8[16384]{0}', space=vmem, size = 0x4000, scoped, tag = 'input window, operand 11, single buffered']
    #allocation18 [shape = 's32[1]{0}', space=sflag, size = 0x4, scoped, tag = 'scoped memory for tpu_custom_call.1']
    #allocation19 [shape = 'u8[16384]{0}', space=vmem, size = 0x4000, scoped, tag = 'input window, operand 12, single buffered']
    #allocation20 [shape = 'u8[2048]{0}', space=vmem, size = 0x800, scoped, tag = 'output window, operand 0']
    %21 = vsyncpa [#allocation3], 0
    %s22 = scalar_lea.sflag [#allocation3], 1
    %23 = vsyncpa %s22, 0
    %24 = vsyncpa [#allocation6], 0
    %25 = vsyncpa [#allocation9], 0
    %26 = vsyncpa [#allocation12], 0
    %27 = vsyncpa [#allocation15], 0
    %28 = vsyncpa [#allocation18], 0
    %29 = vsyncpa [#allocation4], 0
    %s30 = scalar_lea.sflag [#allocation4], 1
    %31 = vsyncpa %s30, 0
    loop: start=0, step=1, limit=6
    $region2: #{tpu_custom_call.1} parent=1 // loop_pre_header
      _
    $region3: #{tpu_custom_call.1} parent=1 // loop_header
      %s33 = sphi 0, %s37
      %p34 = scmp.ge.s32.totalorder %s33, 6
      %s43 = sphi 0, %s45
      %s46 = sphi 0, %s43
      %s47 = sphi 0, %s46
      %s63 = sphi 0, %s47
      %s69 = sphi 0, %s71
      %s72 = sphi 0, %s69
      %s73 = sphi 0, %s72
      %s89 = sphi 0, %s73
      %s95 = sphi 0, %s97
      %s98 = sphi 0, %s95
      %s99 = sphi 0, %s98
      %s115 = sphi 0, %s99
      %s119 = sphi 0, %s119
      %s121 = sphi 0, %s119
      %s122 = sphi 0, %s121
      %s136 = sphi 0, %s122
      %s140 = sphi 0, %s140
      %s142 = sphi 0, %s140
      %s143 = sphi 0, %s142
      %s157 = sphi 0, %s143
      %s161 = sphi 0, %s161
      %s163 = sphi 0, %s161
      %s164 = sphi 0, %s163
      %s178 = sphi 0, %s164
      %s182 = sphi 0, %s182
      %s184 = sphi 0, %s182
      %s185 = sphi 0, %s184
      %s199 = sphi 0, %s185
      %s203 = sphi 0, %s203
      %s205 = sphi 0, %s203
      %s206 = sphi 0, %s205
      %s220 = sphi 0, %s206
      %s224 = sphi 0, %s224
      %s226 = sphi 0, %s224
      %s227 = sphi 0, %s226
      %s241 = sphi 0, %s227
      %s245 = sphi 0, %s245
      %s247 = sphi 0, %s245
      %s248 = sphi 0, %s247
      %s262 = sphi 0, %s248
      %s266 = sphi 0, %s266
      %s268 = sphi 0, %s266
      %s269 = sphi 0, %s268
      %s283 = sphi 0, %s269
      %s287 = sphi 0, %s287
      %s289 = sphi 0, %s287
      %s290 = sphi 0, %s289
      %s304 = sphi 0, %s290
      %s308 = sphi 0, %s308
      %s310 = sphi 0, %s308
      %s311 = sphi 0, %s310
      %s325 = sphi 0, %s311
      %s329 = sphi 0, %s329
      %s331 = sphi 0, %s329
      %s332 = sphi 0, %s331
      %s346 = sphi 0, %s332
      %s350 = sphi 0, %s350
      %s352 = sphi 0, %s350
      %s353 = sphi 0, %s352
      %s367 = sphi 0, %s353
      %s371 = sphi 0, %s371
      %s373 = sphi 0, %s371
      %s374 = sphi 0, %s373
      %s388 = sphi 0, %s374
      %s394 = sphi 0, %s396
      %s397 = sphi 0, %s394
      %s398 = sphi 0, %s397
      %s414 = sphi 0, %s398
    $region4: #{tpu_custom_call.1} parent=1 // loop_header_branch
      %36 = sbr.rel (%p34) target = $region8
    $region5: #{tpu_custom_call.1} parent=1 // loop_body
      %s38 = ssub.s32 %s33, 1
      %s39 = ssub.s32 %s33, 2
      %s40 = sadd.s32 %s33, 1
      %s41 = ssub.s32 %s33, %s40
      %p42 = scmp.eq.s32.totalorder %s41, 0
      %s44 = sadd.s32 %s43, 1
      %s45 = scalar_select %p42, %s43, %s44
      %p48 = pneg %p42
      %p49 = scmp.eq.s32.totalorder %s33, 3
      %p50 = por %p48, %p49
      %p51 = scmp.ne.s32.totalorder %s43, %s46
      %p52 = scmp.eq.s32.totalorder %s33, 0
      %p53 = por %p51, %p52
      %p54 = scmp.ne.s32.totalorder %s43, %s46
      %p55 = scmp.eq.s32.totalorder %s38, 3
      %p56 = por %p54, %p55
      %p57 = scmp.ne.s32.totalorder %s46, %s47
      %p58 = scmp.eq.s32.totalorder %s38, 0
      %p59 = por %p57, %p58
      %p60 = scmp.ne.s32.totalorder %s46, %s47
      %p61 = scmp.eq.s32.totalorder %s39, 3
      %p62 = por %p60, %p61
      %p64 = scmp.ne.s32.totalorder %s47, %s63
      %p65 = scmp.eq.s32.totalorder %s39, 0
      %p66 = por %p64, %p65
      %s67 = ssub.s32 %s33, %s40
      %p68 = scmp.eq.s32.totalorder %s67, 0
      %s70 = sadd.s32 %s69, 1
      %s71 = scalar_select %p68, %s69, %s70
      %p74 = pneg %p68
      %p75 = scmp.eq.s32.totalorder %s33, 3
      %p76 = por %p74, %p75
      %p77 = scmp.ne.s32.totalorder %s69, %s72
      %p78 = scmp.eq.s32.totalorder %s33, 0
      %p79 = por %p77, %p78
      %p80 = scmp.ne.s32.totalorder %s69, %s72
      %p81 = scmp.eq.s32.totalorder %s38, 3
      %p82 = por %p80, %p81
      %p83 = scmp.ne.s32.totalorder %s72, %s73
      %p84 = scmp.eq.s32.totalorder %s38, 0
      %p85 = por %p83, %p84
      %p86 = scmp.ne.s32.totalorder %s72, %s73
      %p87 = scmp.eq.s32.totalorder %s39, 3
      %p88 = por %p86, %p87
      %p90 = scmp.ne.s32.totalorder %s73, %s89
      %p91 = scmp.eq.s32.totalorder %s39, 0
      %p92 = por %p90, %p91
      %s93 = ssub.s32 %s33, %s40
      %p94 = scmp.eq.s32.totalorder %s93, 0
      %s96 = sadd.s32 %s95, 1
      %s97 = scalar_select %p94, %s95, %s96
      %p100 = pneg %p94
      %p101 = scmp.eq.s32.totalorder %s33, 3
      %p102 = por %p100, %p101
      %p103 = scmp.ne.s32.totalorder %s95, %s98
      %p104 = scmp.eq.s32.totalorder %s33, 0
      %p105 = por %p103, %p104
      %p106 = scmp.ne.s32.totalorder %s95, %s98
      %p107 = scmp.eq.s32.totalorder %s38, 3
      %p108 = por %p106, %p107
      %p109 = scmp.ne.s32.totalorder %s98, %s99
      %p110 = scmp.eq.s32.totalorder %s38, 0
      %p111 = por %p109, %p110
      %p112 = scmp.ne.s32.totalorder %s98, %s99
      %p113 = scmp.eq.s32.totalorder %s39, 3
      %p114 = por %p112, %p113
      %p116 = scmp.ne.s32.totalorder %s99, %s115
      %p117 = scmp.eq.s32.totalorder %s39, 0
      %p118 = por %p116, %p117
      %s120 = sadd.s32 %s119, 1
      %p123 = scmp.eq.s32.totalorder %s33, 3
      %p124 = scmp.ne.s32.totalorder %s119, %s121
      %p125 = scmp.eq.s32.totalorder %s33, 0
      %p126 = por %p124, %p125
      %p127 = scmp.ne.s32.totalorder %s119, %s121
      %p128 = scmp.eq.s32.totalorder %s38, 3
      %p129 = por %p127, %p128
      %p130 = scmp.ne.s32.totalorder %s121, %s122
      %p131 = scmp.eq.s32.totalorder %s38, 0
      %p132 = por %p130, %p131
      %p133 = scmp.ne.s32.totalorder %s121, %s122
      %p134 = scmp.eq.s32.totalorder %s39, 3
      %p135 = por %p133, %p134
      %p137 = scmp.ne.s32.totalorder %s122, %s136
      %p138 = scmp.eq.s32.totalorder %s39, 0
      %p139 = por %p137, %p138
      %s141 = sadd.s32 %s140, 1
      %p144 = scmp.eq.s32.totalorder %s33, 3
      %p145 = scmp.ne.s32.totalorder %s140, %s142
      %p146 = scmp.eq.s32.totalorder %s33, 0
      %p147 = por %p145, %p146
      %p148 = scmp.ne.s32.totalorder %s140, %s142
      %p149 = scmp.eq.s32.totalorder %s38, 3
      %p150 = por %p148, %p149
      %p151 = scmp.ne.s32.totalorder %s142, %s143
      %p152 = scmp.eq.s32.totalorder %s38, 0
      %p153 = por %p151, %p152
      %p154 = scmp.ne.s32.totalorder %s142, %s143
      %p155 = scmp.eq.s32.totalorder %s39, 3
      %p156 = por %p154, %p155
      %p158 = scmp.ne.s32.totalorder %s143, %s157
      %p159 = scmp.eq.s32.totalorder %s39, 0
      %p160 = por %p158, %p159
      %s162 = sadd.s32 %s161, 1
      %p165 = scmp.eq.s32.totalorder %s33, 3
      %p166 = scmp.ne.s32.totalorder %s161, %s163
      %p167 = scmp.eq.s32.totalorder %s33, 0
      %p168 = por %p166, %p167
      %p169 = scmp.ne.s32.totalorder %s161, %s163
      %p170 = scmp.eq.s32.totalorder %s38, 3
      %p171 = por %p169, %p170
      %p172 = scmp.ne.s32.totalorder %s163, %s164
      %p173 = scmp.eq.s32.totalorder %s38, 0
      %p174 = por %p172, %p173
      %p175 = scmp.ne.s32.totalorder %s163, %s164
      %p176 = scmp.eq.s32.totalorder %s39, 3
      %p177 = por %p175, %p176
      %p179 = scmp.ne.s32.totalorder %s164, %s178
      %p180 = scmp.eq.s32.totalorder %s39, 0
      %p181 = por %p179, %p180
      %s183 = sadd.s32 %s182, 1
      %p186 = scmp.eq.s32.totalorder %s33, 3
      %p187 = scmp.ne.s32.totalorder %s182, %s184
      %p188 = scmp.eq.s32.totalorder %s33, 0
      %p189 = por %p187, %p188
      %p190 = scmp.ne.s32.totalorder %s182, %s184
      %p191 = scmp.eq.s32.totalorder %s38, 3
      %p192 = por %p190, %p191
      %p193 = scmp.ne.s32.totalorder %s184, %s185
      %p194 = scmp.eq.s32.totalorder %s38, 0
      %p195 = por %p193, %p194
      %p196 = scmp.ne.s32.totalorder %s184, %s185
      %p197 = scmp.eq.s32.totalorder %s39, 3
      %p198 = por %p196, %p197
      %p200 = scmp.ne.s32.totalorder %s185, %s199
      %p201 = scmp.eq.s32.totalorder %s39, 0
      %p202 = por %p200, %p201
      %s204 = sadd.s32 %s203, 1
      %p207 = scmp.eq.s32.totalorder %s33, 3
      %p208 = scmp.ne.s32.totalorder %s203, %s205
      %p209 = scmp.eq.s32.totalorder %s33, 0
      %p210 = por %p208, %p209
      %p211 = scmp.ne.s32.totalorder %s203, %s205
      %p212 = scmp.eq.s32.totalorder %s38, 3
      %p213 = por %p211, %p212
      %p214 = scmp.ne.s32.totalorder %s205, %s206
      %p215 = scmp.eq.s32.totalorder %s38, 0
      %p216 = por %p214, %p215
      %p217 = scmp.ne.s32.totalorder %s205, %s206
      %p218 = scmp.eq.s32.totalorder %s39, 3
      %p219 = por %p217, %p218
      %p221 = scmp.ne.s32.totalorder %s206, %s220
      %p222 = scmp.eq.s32.totalorder %s39, 0
      %p223 = por %p221, %p222
      %s225 = sadd.s32 %s224, 1
      %p228 = scmp.eq.s32.totalorder %s33, 3
      %p229 = scmp.ne.s32.totalorder %s224, %s226
      %p230 = scmp.eq.s32.totalorder %s33, 0
      %p231 = por %p229, %p230
      %p232 = scmp.ne.s32.totalorder %s224, %s226
      %p233 = scmp.eq.s32.totalorder %s38, 3
      %p234 = por %p232, %p233
      %p235 = scmp.ne.s32.totalorder %s226, %s227
      %p236 = scmp.eq.s32.totalorder %s38, 0
      %p237 = por %p235, %p236
      %p238 = scmp.ne.s32.totalorder %s226, %s227
      %p239 = scmp.eq.s32.totalorder %s39, 3
      %p240 = por %p238, %p239
      %p242 = scmp.ne.s32.totalorder %s227, %s241
      %p243 = scmp.eq.s32.totalorder %s39, 0
      %p244 = por %p242, %p243
      %s246 = sadd.s32 %s245, 1
      %p249 = scmp.eq.s32.totalorder %s33, 3
      %p250 = scmp.ne.s32.totalorder %s245, %s247
      %p251 = scmp.eq.s32.totalorder %s33, 0
      %p252 = por %p250, %p251
      %p253 = scmp.ne.s32.totalorder %s245, %s247
      %p254 = scmp.eq.s32.totalorder %s38, 3
      %p255 = por %p253, %p254
      %p256 = scmp.ne.s32.totalorder %s247, %s248
      %p257 = scmp.eq.s32.totalorder %s38, 0
      %p258 = por %p256, %p257
      %p259 = scmp.ne.s32.totalorder %s247, %s248
      %p260 = scmp.eq.s32.totalorder %s39, 3
      %p261 = por %p259, %p260
      %p263 = scmp.ne.s32.totalorder %s248, %s262
      %p264 = scmp.eq.s32.totalorder %s39, 0
      %p265 = por %p263, %p264
      %s267 = sadd.s32 %s266, 1
      %p270 = scmp.eq.s32.totalorder %s33, 3
      %p271 = scmp.ne.s32.totalorder %s266, %s268
      %p272 = scmp.eq.s32.totalorder %s33, 0
      %p273 = por %p271, %p272
      %p274 = scmp.ne.s32.totalorder %s266, %s268
      %p275 = scmp.eq.s32.totalorder %s38, 3
      %p276 = por %p274, %p275
      %p277 = scmp.ne.s32.totalorder %s268, %s269
      %p278 = scmp.eq.s32.totalorder %s38, 0
      %p279 = por %p277, %p278
      %p280 = scmp.ne.s32.totalorder %s268, %s269
      %p281 = scmp.eq.s32.totalorder %s39, 3
      %p282 = por %p280, %p281
      %p284 = scmp.ne.s32.totalorder %s269, %s283
      %p285 = scmp.eq.s32.totalorder %s39, 0
      %p286 = por %p284, %p285
      %s288 = sadd.s32 %s287, 1
      %p291 = scmp.eq.s32.totalorder %s33, 3
      %p292 = scmp.ne.s32.totalorder %s287, %s289
      %p293 = scmp.eq.s32.totalorder %s33, 0
      %p294 = por %p292, %p293
      %p295 = scmp.ne.s32.totalorder %s287, %s289
      %p296 = scmp.eq.s32.totalorder %s38, 3
      %p297 = por %p295, %p296
      %p298 = scmp.ne.s32.totalorder %s289, %s290
      %p299 = scmp.eq.s32.totalorder %s38, 0
      %p300 = por %p298, %p299
      %p301 = scmp.ne.s32.totalorder %s289, %s290
      %p302 = scmp.eq.s32.totalorder %s39, 3
      %p303 = por %p301, %p302
      %p305 = scmp.ne.s32.totalorder %s290, %s304
      %p306 = scmp.eq.s32.totalorder %s39, 0
      %p307 = por %p305, %p306
      %s309 = sadd.s32 %s308, 1
      %p312 = scmp.eq.s32.totalorder %s33, 3
      %p313 = scmp.ne.s32.totalorder %s308, %s310
      %p314 = scmp.eq.s32.totalorder %s33, 0
      %p315 = por %p313, %p314
      %p316 = scmp.ne.s32.totalorder %s308, %s310
      %p317 = scmp.eq.s32.totalorder %s38, 3
      %p318 = por %p316, %p317
      %p319 = scmp.ne.s32.totalorder %s310, %s311
      %p320 = scmp.eq.s32.totalorder %s38, 0
      %p321 = por %p319, %p320
      %p322 = scmp.ne.s32.totalorder %s310, %s311
      %p323 = scmp.eq.s32.totalorder %s39, 3
      %p324 = por %p322, %p323
      %p326 = scmp.ne.s32.totalorder %s311, %s325
      %p327 = scmp.eq.s32.totalorder %s39, 0
      %p328 = por %p326, %p327
      %s330 = sadd.s32 %s329, 1
      %p333 = scmp.eq.s32.totalorder %s33, 3
      %p334 = scmp.ne.s32.totalorder %s329, %s331
      %p335 = scmp.eq.s32.totalorder %s33, 0
      %p336 = por %p334, %p335
      %p337 = scmp.ne.s32.totalorder %s329, %s331
      %p338 = scmp.eq.s32.totalorder %s38, 3
      %p339 = por %p337, %p338
      %p340 = scmp.ne.s32.totalorder %s331, %s332
      %p341 = scmp.eq.s32.totalorder %s38, 0
      %p342 = por %p340, %p341
      %p343 = scmp.ne.s32.totalorder %s331, %s332
      %p344 = scmp.eq.s32.totalorder %s39, 3
      %p345 = por %p343, %p344
      %p347 = scmp.ne.s32.totalorder %s332, %s346
      %p348 = scmp.eq.s32.totalorder %s39, 0
      %p349 = por %p347, %p348
      %s351 = sadd.s32 %s350, 1
      %p354 = scmp.eq.s32.totalorder %s33, 3
      %p355 = scmp.ne.s32.totalorder %s350, %s352
      %p356 = scmp.eq.s32.totalorder %s33, 0
      %p357 = por %p355, %p356
      %p358 = scmp.ne.s32.totalorder %s350, %s352
      %p359 = scmp.eq.s32.totalorder %s38, 3
      %p360 = por %p358, %p359
      %p361 = scmp.ne.s32.totalorder %s352, %s353
      %p362 = scmp.eq.s32.totalorder %s38, 0
      %p363 = por %p361, %p362
      %p364 = scmp.ne.s32.totalorder %s352, %s353
      %p365 = scmp.eq.s32.totalorder %s39, 3
      %p366 = por %p364, %p365
      %p368 = scmp.ne.s32.totalorder %s353, %s367
      %p369 = scmp.eq.s32.totalorder %s39, 0
      %p370 = por %p368, %p369
      %s372 = sadd.s32 %s371, 1
      %p375 = scmp.eq.s32.totalorder %s33, 3
      %p376 = scmp.ne.s32.totalorder %s371, %s373
      %p377 = scmp.eq.s32.totalorder %s33, 0
      %p378 = por %p376, %p377
      %p379 = scmp.ne.s32.totalorder %s371, %s373
      %p380 = scmp.eq.s32.totalorder %s38, 3
      %p381 = por %p379, %p380
      %p382 = scmp.ne.s32.totalorder %s373, %s374
      %p383 = scmp.eq.s32.totalorder %s38, 0
      %p384 = por %p382, %p383
      %p385 = scmp.ne.s32.totalorder %s373, %s374
      %p386 = scmp.eq.s32.totalorder %s39, 3
      %p387 = por %p385, %p386
      %p389 = scmp.ne.s32.totalorder %s374, %s388
      %p390 = scmp.eq.s32.totalorder %s39, 0
      %p391 = por %p389, %p390
      %s392 = ssub.s32 %s33, %s40
      %p393 = scmp.eq.s32.totalorder %s392, 0
      %s395 = sadd.s32 %s394, 1
      %s396 = scalar_select %p393, %s394, %s395
      %p399 = pneg %p393
      %p400 = scmp.eq.s32.totalorder %s33, 3
      %p401 = por %p399, %p400
      %p402 = scmp.ne.s32.totalorder %s394, %s397
      %p403 = scmp.eq.s32.totalorder %s33, 0
      %p404 = por %p402, %p403
      %p405 = scmp.ne.s32.totalorder %s394, %s397
      %p406 = scmp.eq.s32.totalorder %s38, 3
      %p407 = por %p405, %p406
      %p408 = scmp.ne.s32.totalorder %s397, %s398
      %p409 = scmp.eq.s32.totalorder %s38, 0
      %p410 = por %p408, %p409
      %p411 = scmp.ne.s32.totalorder %s397, %s398
      %p412 = scmp.eq.s32.totalorder %s39, 3
      %p413 = por %p411, %p412
      %p415 = scmp.ne.s32.totalorder %s398, %s414
      %p416 = scmp.eq.s32.totalorder %s39, 0
      %p417 = por %p415, %p416
      %p418 = scmp.le.s32.totalorder 1, %s33
      %p419 = scmp.lt.s32.totalorder %s33, 5
      %p420 = pnand %p418, %p419
      %p421 = pneg %p420
      // Predicated region
      $region9: #{tpu_custom_call.1} parent=5 // pred_check
        _
      $region10: #{tpu_custom_call.1} parent=5 // pred_check_branch
        %423 = sbr.rel (%p420) target = $region12
      $region11: #{tpu_custom_call.1} parent=5 // pred_region
        %s424 = ssub.s32 %s33, 1
        // Predicated region
        $region13: #{tpu_custom_call.1} parent=11 // pred_check
          %p425 = pneg %p132
        $region14: #{tpu_custom_call.1} parent=11 // pred_check_branch
          %427 = sbr.rel (%p425) target = $region16
        $region15: #{tpu_custom_call.1} parent=11 // pred_region
          %s429 = ssub.s32 512, 512
          %430 = vsyncadd [#allocation6], %s429
          %s431 = sshll.u32 [#allocation5], 4
          %s432 = int_to_ptr.vmem [resolvable:$true] %s431
          %437 = dma.hbm_to_vmem [thread:$0]  %s3, 512, %s432, [#allocation6], 128, 128, 8
        $region16: #{tpu_custom_call.1} parent=11 // pred_fallthru
          _
        // Predicated region
        $region17: #{tpu_custom_call.1} parent=11 // pred_check
          %p438 = pneg %p153
        $region18: #{tpu_custom_call.1} parent=11 // pred_check_branch
          %440 = sbr.rel (%p438) target = $region20
        $region19: #{tpu_custom_call.1} parent=11 // pred_region
          %s442 = ssub.s32 512, 512
          %443 = vsyncadd [#allocation6], %s442
          %s444 = sshll.u32 [#allocation7], 4
          %s445 = int_to_ptr.vmem [resolvable:$true] %s444
          %450 = dma.hbm_to_vmem [thread:$0]  %s4, 512, %s445, [#allocation6], 128, 128, 8
        $region20: #{tpu_custom_call.1} parent=11 // pred_fallthru
          _
        // Predicated region
        $region21: #{tpu_custom_call.1} parent=11 // pred_check
          %p451 = pneg %p174
        $region22: #{tpu_custom_call.1} parent=11 // pred_check_branch
          %453 = sbr.rel (%p451) target = $region24
        $region23: #{tpu_custom_call.1} parent=11 // pred_region
          %s455 = ssub.s32 512, 512
          %456 = vsyncadd [#allocation9], %s455
          %s457 = sshll.u32 [#allocation8], 4
          %s458 = int_to_ptr.vmem [resolvable:$true] %s457
          %463 = dma.hbm_to_vmem [thread:$0]  %s5, 512, %s458, [#allocation9], 128, 128, 8
        $region24: #{tpu_custom_call.1} parent=11 // pred_fallthru
          _
        // Predicated region
        $region25: #{tpu_custom_call.1} parent=11 // pred_check
          %p464 = pneg %p195
        $region26: #{tpu_custom_call.1} parent=11 // pred_check_branch
          %466 = sbr.rel (%p464) target = $region28
        $region27: #{tpu_custom_call.1} parent=11 // pred_region
          %s468 = ssub.s32 512, 512
          %469 = vsyncadd [#allocation9], %s468
          %s470 = sshll.u32 [#allocation10], 4
          %s471 = int_to_ptr.vmem [resolvable:$true] %s470
          %476 = dma.hbm_to_vmem [thread:$0]  %s6, 512, %s471, [#allocation9], 128, 128, 8
        $region28: #{tpu_custom_call.1} parent=11 // pred_fallthru
          _
        // Predicated region
        $region29: #{tpu_custom_call.1} parent=11 // pred_check
          %p477 = pneg %p216
        $region30: #{tpu_custom_call.1} parent=11 // pred_check_branch
          %479 = sbr.rel (%p477) target = $region32
        $region31: #{tpu_custom_call.1} parent=11 // pred_region
          %s481 = ssub.s32 512, 512
          %482 = vsyncadd [#allocation12], %s481
          %s483 = sshll.u32 [#allocation11], 4
          %s484 = int_to_ptr.vmem [resolvable:$true] %s483
          %489 = dma.hbm_to_vmem [thread:$0]  %s7, 512, %s484, [#allocation12], 128, 128, 8
        $region32: #{tpu_custom_call.1} parent=11 // pred_fallthru
          _
        // Predicated region
        $region33: #{tpu_custom_call.1} parent=11 // pred_check
          %p490 = pneg %p237
        $region34: #{tpu_custom_call.1} parent=11 // pred_check_branch
          %492 = sbr.rel (%p490) target = $region36
        $region35: #{tpu_custom_call.1} parent=11 // pred_region
          %s494 = ssub.s32 512, 512
          %495 = vsyncadd [#allocation12], %s494
          %s496 = sshll.u32 [#allocation13], 4
          %s497 = int_to_ptr.vmem [resolvable:$true] %s496
          %502 = dma.hbm_to_vmem [thread:$0]  %s8, 512, %s497, [#allocation12], 128, 128, 8
        $region36: #{tpu_custom_call.1} parent=11 // pred_fallthru
          _
        // Predicated region
        $region37: #{tpu_custom_call.1} parent=11 // pred_check
          %p503 = pneg %p258
        $region38: #{tpu_custom_call.1} parent=11 // pred_check_branch
          %505 = sbr.rel (%p503) target = $region40
        $region39: #{tpu_custom_call.1} parent=11 // pred_region
          %s507 = ssub.s32 512, 512
          %508 = vsyncadd [#allocation15], %s507
          %s509 = sshll.u32 [#allocation14], 4
          %s510 = int_to_ptr.vmem [resolvable:$true] %s509
          %515 = dma.hbm_to_vmem [thread:$0]  %s9, 512, %s510, [#allocation15], 128, 128, 8
        $region40: #{tpu_custom_call.1} parent=11 // pred_fallthru
          _
        // Predicated region
        $region41: #{tpu_custom_call.1} parent=11 // pred_check
          %p516 = pneg %p279
        $region42: #{tpu_custom_call.1} parent=11 // pred_check_branch
          %518 = sbr.rel (%p516) target = $region44
        $region43: #{tpu_custom_call.1} parent=11 // pred_region
          %s520 = ssub.s32 512, 512
          %521 = vsyncadd [#allocation15], %s520
          %s522 = sshll.u32 [#allocation16], 4
          %s523 = int_to_ptr.vmem [resolvable:$true] %s522
          %528 = dma.hbm_to_vmem [thread:$0]  %s10, 512, %s523, [#allocation15], 128, 128, 8
        $region44: #{tpu_custom_call.1} parent=11 // pred_fallthru
          _
        // Predicated region
        $region45: #{tpu_custom_call.1} parent=11 // pred_check
          %p529 = pneg %p300
        $region46: #{tpu_custom_call.1} parent=11 // pred_check_branch
          %531 = sbr.rel (%p529) target = $region48
        $region47: #{tpu_custom_call.1} parent=11 // pred_region
          %s533 = ssub.s32 512, 512
          %534 = vsyncadd [#allocation18], %s533
          %s535 = sshll.u32 [#allocation17], 4
          %s536 = int_to_ptr.vmem [resolvable:$true] %s535
          %541 = dma.hbm_to_vmem [thread:$0]  %s11, 512, %s536, [#allocation18], 128, 128, 8
        $region48: #{tpu_custom_call.1} parent=11 // pred_fallthru
          _
        // Predicated region
        $region49: #{tpu_custom_call.1} parent=11 // pred_check
          %p542 = pneg %p321
        $region50: #{tpu_custom_call.1} parent=11 // pred_check_branch
          %544 = sbr.rel (%p542) target = $region52
        $region51: #{tpu_custom_call.1} parent=11 // pred_region
          %s546 = ssub.s32 512, 512
          %547 = vsyncadd [#allocation18], %s546
          %s548 = sshll.u32 [#allocation19], 4
          %s549 = int_to_ptr.vmem [resolvable:$true] %s548
          %554 = dma.hbm_to_vmem [thread:$0]  %s12, 512, %s549, [#allocation18], 128, 128, 8
        $region52: #{tpu_custom_call.1} parent=11 // pred_fallthru
          _
        // Predicated region
        $region53: #{tpu_custom_call.1} parent=11 // pred_check
          %p555 = pneg %p342
        $region54: #{tpu_custom_call.1} parent=11 // pred_check_branch
          %557 = sbr.rel (%p555) target = $region56
        $region55: #{tpu_custom_call.1} parent=11 // pred_region
          _
        $region56: #{tpu_custom_call.1} parent=11 // pred_fallthru
          _
        // Predicated region
        $region57: #{tpu_custom_call.1} parent=11 // pred_check
          %p558 = pneg %p363
        $region58: #{tpu_custom_call.1} parent=11 // pred_check_branch
          %560 = sbr.rel (%p558) target = $region60
        $region59: #{tpu_custom_call.1} parent=11 // pred_region
          _
        $region60: #{tpu_custom_call.1} parent=11 // pred_fallthru
          _
        // Predicated region
        $region61: #{tpu_custom_call.1} parent=11 // pred_check
          %p561 = pneg %p384
        $region62: #{tpu_custom_call.1} parent=11 // pred_check_branch
          %563 = sbr.rel (%p561) target = $region64
        $region63: #{tpu_custom_call.1} parent=11 // pred_region
          _
        $region64: #{tpu_custom_call.1} parent=11 // pred_fallthru
          _
      $region12: #{tpu_custom_call.1} parent=5 // pred_fallthru
        _
      %p564 = scmp.lt.s32.totalorder %s33, 4
      // Predicated region
      $region65: #{tpu_custom_call.1} parent=5 // pred_check
        %p565 = pneg %p564
      $region66: #{tpu_custom_call.1} parent=5 // pred_check_branch
        %567 = sbr.rel (%p565) target = $region68
      $region67: #{tpu_custom_call.1} parent=5 // pred_region
        // Predicated region
        $region69: #{tpu_custom_call.1} parent=67 // pred_check
          %p568 = pneg %p53
        $region70: #{tpu_custom_call.1} parent=67 // pred_check_branch
          %570 = sbr.rel (%p568) target = $region72
        $region71: #{tpu_custom_call.1} parent=67 // pred_region
          %s571 = smul.u32 2, %s33
          %p572 = scmp.lt.s32.totalorder %s571, 7
          %s573 = scalar_select %p572, %s571, 7
          %s574 = smul.addr %s573, 2
          %s575 = smul.addr %s574, 8
          %s576 = scalar_lea.vmem %s0, %s575
          %s577 = smul.u32 2, %s33
        $region72: #{tpu_custom_call.1} parent=67 // pred_fallthru
          _
        // Predicated region
        $region73: #{tpu_custom_call.1} parent=67 // pred_check
          %p578 = pneg %p79
        $region74: #{tpu_custom_call.1} parent=67 // pred_check_branch
          %580 = sbr.rel (%p578) target = $region76
        $region75: #{tpu_custom_call.1} parent=67 // pred_region
          %s581 = sand.u32 %s69, 1
          %s582 = scalar_lea.sflag [#allocation3], %s581
          %s583 = sand.u32 %s69, 1
          %s584 = smul.addr %s583, 2
          %s585 = scalar_lea.vmem [#allocation2], %s584
          %s586 = smul.u32 2, %s33
          %s588 = ssub.s32 32, 32
          %589 = vsyncadd %s582, %s588
          %s590 = smul.addr %s586, 16
          %s591 = scalar_lea.hbm %s1, %s590
          %s592 = sshll.u32 %s585, 4
          %s593 = int_to_ptr.vmem [resolvable:$true] %s592
          %598 = dma.hbm_to_vmem [thread:$0]  %s591, 32, %s593, %s582, 16, 16, 1
        $region76: #{tpu_custom_call.1} parent=67 // pred_fallthru
          _
        // Predicated region
        $region77: #{tpu_custom_call.1} parent=67 // pred_check
          %p599 = pneg %p105
        $region78: #{tpu_custom_call.1} parent=67 // pred_check_branch
          %601 = sbr.rel (%p599) target = $region80
        $region79: #{tpu_custom_call.1} parent=67 // pred_region
          %s602 = smul.u32 2, %s33
          %p603 = scmp.lt.s32.totalorder %s602, 7
          %s604 = scalar_select %p603, %s602, 7
          %s605 = smul.addr %s604, 4
          %s606 = scalar_lea.vmem %s2, %s605
          %s607 = smul.u32 2, %s33
        $region80: #{tpu_custom_call.1} parent=67 // pred_fallthru
          _
      $region68: #{tpu_custom_call.1} parent=5 // pred_fallthru
        _
      %p608 = scmp.le.s32.totalorder 1, %s33
      %p609 = scmp.lt.s32.totalorder %s33, 5
      %p610 = pnand %p608, %p609
      %p611 = pneg %p610
      // Predicated region
      $region81: #{tpu_custom_call.1} parent=5 // pred_check
        _
      $region82: #{tpu_custom_call.1} parent=5 // pred_check_branch
        %613 = sbr.rel (%p610) target = $region84
      $region83: #{tpu_custom_call.1} parent=5 // pred_region
        %s614 = ssub.s32 %s33, 1
        %s615 = sand.u32 %s72, 1
        %s616 = scalar_lea.sflag [#allocation3], %s615
        %s617 = sand.u32 %s72, 1
        %s618 = smul.addr %s617, 2
        %s619 = scalar_lea.vmem [#allocation2], %s618
        // Predicated region
        $region85: #{tpu_custom_call.1} parent=83 // pred_check
          %p620 = pneg %p85
        $region86: #{tpu_custom_call.1} parent=83 // pred_check_branch
          %622 = sbr.rel (%p620) target = $region88
        $region87: #{tpu_custom_call.1} parent=83 // pred_region
          %623 = dma.done %s616, 32
        $region88: #{tpu_custom_call.1} parent=83 // pred_fallthru
          _
        // Predicated region
        $region89: #{tpu_custom_call.1} parent=83 // pred_check
          %p624 = pneg %p132
        $region90: #{tpu_custom_call.1} parent=83 // pred_check_branch
          %626 = sbr.rel (%p624) target = $region92
        $region91: #{tpu_custom_call.1} parent=83 // pred_region
          %627 = dma.done [#allocation6], 512
        $region92: #{tpu_custom_call.1} parent=83 // pred_fallthru
          _
        // Predicated region
        $region93: #{tpu_custom_call.1} parent=83 // pred_check
          %p628 = pneg %p153
        $region94: #{tpu_custom_call.1} parent=83 // pred_check_branch
          %630 = sbr.rel (%p628) target = $region96
        $region95: #{tpu_custom_call.1} parent=83 // pred_region
          %631 = dma.done [#allocation6], 512
        $region96: #{tpu_custom_call.1} parent=83 // pred_fallthru
          _
        // Predicated region
        $region97: #{tpu_custom_call.1} parent=83 // pred_check
          %p632 = pneg %p174
        $region98: #{tpu_custom_call.1} parent=83 // pred_check_branch
          %634 = sbr.rel (%p632) target = $region100
        $region99: #{tpu_custom_call.1} parent=83 // pred_region
          %635 = dma.done [#allocation9], 512
        $region100: #{tpu_custom_call.1} parent=83 // pred_fallthru
          _
        // Predicated region
        $region101: #{tpu_custom_call.1} parent=83 // pred_check
          %p636 = pneg %p195
        $region102: #{tpu_custom_call.1} parent=83 // pred_check_branch
          %638 = sbr.rel (%p636) target = $region104
        $region103: #{tpu_custom_call.1} parent=83 // pred_region
          %639 = dma.done [#allocation9], 512
        $region104: #{tpu_custom_call.1} parent=83 // pred_fallthru
          _
        // Predicated region
        $region105: #{tpu_custom_call.1} parent=83 // pred_check
          %p640 = pneg %p216
        $region106: #{tpu_custom_call.1} parent=83 // pred_check_branch
          %642 = sbr.rel (%p640) target = $region108
        $region107: #{tpu_custom_call.1} parent=83 // pred_region
          %643 = dma.done [#allocation12], 512
        $region108: #{tpu_custom_call.1} parent=83 // pred_fallthru
          _
        // Predicated region
        $region109: #{tpu_custom_call.1} parent=83 // pred_check
          %p644 = pneg %p237
        $region110: #{tpu_custom_call.1} parent=83 // pred_check_branch
          %646 = sbr.rel (%p644) target = $region112
        $region111: #{tpu_custom_call.1} parent=83 // pred_region
          %647 = dma.done [#allocation12], 512
        $region112: #{tpu_custom_call.1} parent=83 // pred_fallthru
          _
        // Predicated region
        $region113: #{tpu_custom_call.1} parent=83 // pred_check
          %p648 = pneg %p258
        $region114: #{tpu_custom_call.1} parent=83 // pred_check_branch
          %650 = sbr.rel (%p648) target = $region116
        $region115: #{tpu_custom_call.1} parent=83 // pred_region
          %651 = dma.done [#allocation15], 512
        $region116: #{tpu_custom_call.1} parent=83 // pred_fallthru
          _
        // Predicated region
        $region117: #{tpu_custom_call.1} parent=83 // pred_check
          %p652 = pneg %p279
        $region118: #{tpu_custom_call.1} parent=83 // pred_check_branch
          %654 = sbr.rel (%p652) target = $region120
        $region119: #{tpu_custom_call.1} parent=83 // pred_region
          %655 = dma.done [#allocation15], 512
        $region120: #{tpu_custom_call.1} parent=83 // pred_fallthru
          _
        // Predicated region
        $region121: #{tpu_custom_call.1} parent=83 // pred_check
          %p656 = pneg %p300
        $region122: #{tpu_custom_call.1} parent=83 // pred_check_branch
          %658 = sbr.rel (%p656) target = $region124
        $region123: #{tpu_custom_call.1} parent=83 // pred_region
          %659 = dma.done [#allocation18], 512
        $region124: #{tpu_custom_call.1} parent=83 // pred_fallthru
          _
        // Predicated region
        $region125: #{tpu_custom_call.1} parent=83 // pred_check
          %p660 = pneg %p321
        $region126: #{tpu_custom_call.1} parent=83 // pred_check_branch
          %662 = sbr.rel (%p660) target = $region128
        $region127: #{tpu_custom_call.1} parent=83 // pred_region
          %663 = dma.done [#allocation18], 512
        $region128: #{tpu_custom_call.1} parent=83 // pred_fallthru
          _
        %s664 = smul.u32 2, %s38
        %p665 = scmp.lt.s32.totalorder %s664, 7
        %s666 = scalar_select %p665, %s664, 7
        %s667 = smul.addr %s666, 2
        %s668 = smul.addr %s667, 8
        %s669 = scalar_lea.vmem %s0, %s668
        %p670 = pneg %p59
        %p671 = pneg %p56
        %s672 = sand.u32 %s72, 1
        %s673 = scalar_lea.sflag [#allocation3], %s672
        %s674 = sand.u32 %s72, 1
        %s675 = smul.addr %s674, 2
        %s676 = scalar_lea.vmem [#allocation2], %s675
        %p677 = pneg %p85
        %p678 = pneg %p82
        %s679 = smul.u32 2, %s38
        %p680 = scmp.lt.s32.totalorder %s679, 7
        %s681 = scalar_select %p680, %s679, 7
        %s682 = smul.addr %s681, 4
        %s683 = scalar_lea.vmem %s2, %s682
        %p684 = pneg %p111
        %p685 = pneg %p108
        %p686 = pneg %p132
        %p687 = pneg %p129
        %p688 = pneg %p153
        %p689 = pneg %p150
        %p690 = pneg %p174
        %p691 = pneg %p171
        %p692 = pneg %p195
        %p693 = pneg %p192
        %p694 = pneg %p216
        %p695 = pneg %p213
        %p696 = pneg %p237
        %p697 = pneg %p234
        %p698 = pneg %p258
        %p699 = pneg %p255
        %p700 = pneg %p279
        %p701 = pneg %p276
        %p702 = pneg %p300
        %p703 = pneg %p297
        %p704 = pneg %p321
        %p705 = pneg %p318
        %p706 = pneg %p342
        %p707 = pneg %p339
        %p708 = pneg %p363
        %p709 = pneg %p360
        %p710 = pneg %p384
        %p711 = pneg %p381
        %p712 = pneg %p410
        %p713 = pneg %p407
        %s714 = sand.u32 %s397, 1
        %s715 = scalar_lea.sflag [#allocation4], %s714
        %s716 = sand.u32 %s397, 1
        %s717 = smul.addr %s716, 2
        %s718 = scalar_lea.vmem [#allocation20], %s717
        %s719 = smul.u32 2, %s38
        %p720 = scmp.lt.s32.totalorder %s719, 7
        %s721 = scalar_select %p720, %s719, 7
        %s722 = smul.addr %s721, 2
        %s723 = smul.addr %s722, 8
        %s724 = scalar_lea.vmem %s0, %s723
        %s725 = smul.u32 2, %s38
        %s726 = smul.u32 2, %s38
        %s727 = smul.u32 2, %s38
        %p728 = scmp.lt.s32.totalorder %s727, 7
        %s729 = scalar_select %p728, %s727, 7
        %s730 = smul.addr %s729, 4
        %s731 = scalar_lea.vmem %s2, %s730
        %s732 = smul.u32 2, %s38
        %s733 = smul.u32 2, %s38
        %v734 = vld [vmem:[%s724] sm:$0xff]
        %v735 = vld [vmem:[%s724 + $0x8] sm:$0xff]
        %v736 = vld [vmem:[%s724 + $0x10] sm:$0xff]
        %v737 = vld [vmem:[%s724 + $0x18] sm:$0xff]
        %v738 = vld [vmem:[%s731] sm:$0xf]
        %v739 = vld [vmem:[%s731 + $0x4] sm:$0xf]
        %v740 = vld [vmem:[%s15] sm:$0xff]
        %v741 = vld [vmem:[%s15 + $0x8] sm:$0xff]
        %v742 = vld [vmem:[%s13] sm:$0x1]
        %v743 = vld [vmem:[#allocation5] sm:$0xff]
        %v744 = vld [vmem:[#allocation5 + $0x8] sm:$0xff]
        %v745 = vld [vmem:[#allocation5 + $0x10] sm:$0xff]
        %v746 = vld [vmem:[#allocation5 + $0x18] sm:$0xff]
        %v747 = vld [vmem:[#allocation7] sm:$0xff]
        %v748 = vld [vmem:[#allocation7 + $0x8] sm:$0xff]
        %v749 = vld [vmem:[#allocation7 + $0x10] sm:$0xff]
        %v750 = vld [vmem:[#allocation7 + $0x18] sm:$0xff]
        %v751 = vld [vmem:[#allocation8] sm:$0xff]
        %v752 = vld [vmem:[#allocation8 + $0x8] sm:$0xff]
        %v753 = vld [vmem:[#allocation8 + $0x10] sm:$0xff]
        %v754 = vld [vmem:[#allocation8 + $0x18] sm:$0xff]
        %v755 = vld [vmem:[#allocation19] sm:$0xff]
        %v756 = vld [vmem:[#allocation19 + $0x8] sm:$0xff]
        %v757 = vld [vmem:[#allocation19 + $0x10] sm:$0xff]
        %v758 = vld [vmem:[#allocation19 + $0x18] sm:$0xff]
        %v759 = vld [vmem:[%s14] sm:$0xff]
        %v760 = vld [vmem:[%s14 + $0x8] sm:$0xff]
        %v761 = vld [vmem:[%s14 + $0x10] sm:$0xff]
        %v762 = vld [vmem:[%s14 + $0x18] sm:$0xff]
        %v763 = vld [vmem:[%s14 + $0x20] sm:$0xff]
        %v764 = vld [vmem:[%s14 + $0x28] sm:$0xff]
        %v765 = vld [vmem:[%s14 + $0x30] sm:$0xff]
        %v766 = vld [vmem:[%s14 + $0x38] sm:$0xff]
        %v767 = vld [vmem:[%s14 + $0x40] sm:$0xff]
        %v768 = vld [vmem:[%s14 + $0x48] sm:$0xff]
        %v769 = vld [vmem:[%s14 + $0x50] sm:$0xff]
        %v770 = vld [vmem:[%s14 + $0x58] sm:$0xff]
        %v771 = vld [vmem:[%s14 + $0x60] sm:$0xff]
        %v772 = vld [vmem:[%s14 + $0x68] sm:$0xff]
        %v773 = vld [vmem:[%s14 + $0x70] sm:$0xff]
        %v774 = vld [vmem:[%s14 + $0x78] sm:$0xff]
        %v775 = vld [vmem:[#allocation10] sm:$0xff]
        %v776 = vld [vmem:[#allocation10 + $0x8] sm:$0xff]
        %v777 = vld [vmem:[#allocation10 + $0x10] sm:$0xff]
        %v778 = vld [vmem:[#allocation10 + $0x18] sm:$0xff]
        %v779 = vld [vmem:[#allocation11] sm:$0xff]
        %v780 = vld [vmem:[#allocation11 + $0x8] sm:$0xff]
        %v781 = vld [vmem:[#allocation11 + $0x10] sm:$0xff]
        %v782 = vld [vmem:[#allocation11 + $0x18] sm:$0xff]
        %v783 = vld [vmem:[#allocation13] sm:$0xff]
        %v784 = vld [vmem:[#allocation13 + $0x8] sm:$0xff]
        %v785 = vld [vmem:[#allocation13 + $0x10] sm:$0xff]
        %v786 = vld [vmem:[#allocation13 + $0x18] sm:$0xff]
        %v787 = vld [vmem:[#allocation14] sm:$0xff]
        %v788 = vld [vmem:[#allocation14 + $0x8] sm:$0xff]
        %v789 = vld [vmem:[#allocation14 + $0x10] sm:$0xff]
        %v790 = vld [vmem:[#allocation14 + $0x18] sm:$0xff]
        %v791 = vld [vmem:[#allocation16] sm:$0xff]
        %v792 = vld [vmem:[#allocation16 + $0x8] sm:$0xff]
        %v793 = vld [vmem:[#allocation16 + $0x10] sm:$0xff]
        %v794 = vld [vmem:[#allocation16 + $0x18] sm:$0xff]
        %v795 = vld [vmem:[#allocation17] sm:$0xff]
        %v796 = vld [vmem:[#allocation17 + $0x8] sm:$0xff]
        %v797 = vld [vmem:[#allocation17 + $0x10] sm:$0xff]
        %v798 = vld [vmem:[#allocation17 + $0x18] sm:$0xff]
        %v799 = vld [vmem:[%s619] sm:$0x1]
        %v800 = vld [vmem:[%s619 + $0x1] sm:$0x1]
        %vm801 = vcmp.eq.f32.partialorder %v799, 0.0
        %vm802 = vcmp.eq.f32.partialorder %v800, 0.0
        %v803 = vsel %vm801, 1, 0
        %v804 = vsel %vm802, 1, 0
        %v805 = vlaneseq
        %v806 = vshrl.u32 %v805, 7
        %v807 = vsub.s32 0, %v806
        %v808 = vrot.slane %v803, %v807
        %v809 = vlaneseq
        %v810 = vshrl.u32 %v809, 7
        %v811 = vsub.s32 0, %v810
        %v812 = vrot.slane %v804, %v811
        %vm813 = vcmp.eq.s32.totalorder %v808, 1
        %vm814 = vcmp.eq.s32.totalorder %v812, 1
        %vm815 = vcmask 261120
        %v816 = vsel %vm815, %v734, 0.0
        %817 = vadd.xlane.f32.xlu0 %v816
        %v818 = vpop.xlane.xlu0 %817
        %v819 = vsel %vm815, %v735, 0.0
        %820 = vadd.xlane.f32.xlu0 %v819
        %v821 = vpop.xlane.xlu0 %820
        %v822 = vsel %vm815, %v736, 0.0
        %823 = vadd.xlane.f32.xlu0 %v822
        %v824 = vpop.xlane.xlu0 %823
        %v825 = vsel %vm815, %v737, 0.0
        %826 = vadd.xlane.f32.xlu0 %v825
        %v827 = vpop.xlane.xlu0 %826
        %v828 = vrcp.pop 32.0
        %v829 = vmul.f32 %v818, %v828
        %v830 = vmul.f32 %v821, %v828
        %v831 = vmul.f32 %v824, %v828
        %v832 = vmul.f32 %v827, %v828
        %v833 = vsub.f32 %v734, %v829
        %v834 = vsub.f32 %v735, %v830
        %v835 = vsub.f32 %v736, %v831
        %v836 = vsub.f32 %v737, %v832
        %v837 = vmul.f32 %v833, %v833
        %v838 = vmul.f32 %v834, %v834
        %v839 = vmul.f32 %v835, %v835
        %v840 = vmul.f32 %v836, %v836
        %v841 = vsel %vm815, %v837, 0.0
        %842 = vadd.xlane.f32.xlu0 %v841
        %v843 = vpop.xlane.xlu0 %842
        %v844 = vsel %vm815, %v838, 0.0
        %845 = vadd.xlane.f32.xlu0 %v844
        %v846 = vpop.xlane.xlu0 %845
        %v847 = vsel %vm815, %v839, 0.0
        %848 = vadd.xlane.f32.xlu0 %v847
        %v849 = vpop.xlane.xlu0 %848
        %v850 = vsel %vm815, %v840, 0.0
        %851 = vadd.xlane.f32.xlu0 %v850
        %v852 = vpop.xlane.xlu0 %851
        %v853 = vmul.f32 %v843, %v828
        %v854 = vmul.f32 %v846, %v828
        %v855 = vmul.f32 %v849, %v828
        %v856 = vmul.f32 %v852, %v828
        %v857 = vadd.f32 %v853, 1e-05
        %v858 = vadd.f32 %v854, 1e-05
        %v859 = vadd.f32 %v855, 1e-05
        %v860 = vadd.f32 %v856, 1e-05
        %v861 = vrsqrt.pop %v857
        %v862 = vrsqrt.pop %v858
        %v863 = vrsqrt.pop %v859
        %v864 = vrsqrt.pop %v860
        %v865 = vmul.f32 %v833, %v861
        %v866 = vmul.f32 %v834, %v862
        %v867 = vmul.f32 %v835, %v863
        %v868 = vmul.f32 %v836, %v864
        %v869 = vlaneseq
        %v870 = vshrl.u32 %v869, 7
        %v871 = vsub.s32 4, %v870
        %v872 = vrot.slane %v740, %v871
        %v873 = vmul.f32 %v865, %v872
        %v874 = vmul.f32 %v866, %v872
        %v875 = vmul.f32 %v867, %v872
        %v876 = vmul.f32 %v868, %v872
        %v877 = vlaneseq
        %v878 = vshrl.u32 %v877, 7
        %v879 = vsub.s32 5, %v878
        %v880 = vrot.slane %v740, %v879
        %v881 = vadd.f32 %v873, %v880
        %v882 = vadd.f32 %v874, %v880
        %v883 = vadd.f32 %v875, %v880
        %v884 = vadd.f32 %v876, %v880
        %v885 = vlaneseq
        %v886 = vshrl.u32 %v885, 7
        %v887 = vsub.s32 1, %v886
        %v888 = vrot.slane %v740, %v887
        %v890 = vsel %vm815, %v881, 0
        %v893 = vsel %vm815, %v882, 0
        %v896 = vsel %vm815, %v883, 0
        %v899 = vsel %vm815, %v884, 0
        %901 = vmatprep.subr.mxu0 0.0
        %902 = vmatpush1.msra.mxu0 %v747
        %903 = vmatprep.subr.mxu0 0.0
        %904 = vmatpush1.msra.mxu0 %v748
        %905 = vmatprep.subr.mxu0 0.0
        %906 = vmatpush1.msra.mxu0 %v749
        %907 = vmatprep.subr.mxu0 0.0
        %908 = vmatpush1.msra.mxu0 %v750
        %909 = vmatprep.subr.mxu0 0.0
        %910 = vmatpush1.msra.mxu0 0.0
        %911 = vmatprep.subr.mxu0 0.0
        %912 = vmatpush1.msra.mxu0 0.0
        %913 = vmatprep.subr.mxu0 0.0
        %914 = vmatpush1.msra.mxu0 0.0
        %915 = vmatprep.subr.mxu0 0.0
        %916 = vmatpush1.msra.mxu0 0.0
        %917 = vmatprep.subr.mxu0 0.0
        %918 = vmatpush1.msra.mxu0 0.0
        %919 = vmatprep.subr.mxu0 0.0
        %920 = vmatpush1.msra.mxu0 0.0
        %921 = vmatprep.subr.mxu0 0.0
        %922 = vmatpush1.msra.mxu0 0.0
        %923 = vmatprep.subr.mxu0 0.0
        %924 = vmatpush1.msra.mxu0 0.0
        %925 = vmatprep.subr.mxu0 0.0
        %926 = vmatpush1.msra.mxu0 0.0
        %927 = vmatprep.subr.mxu0 0.0
        %928 = vmatpush1.msra.mxu0 0.0
        %929 = vmatprep.subr.mxu0 0.0
        %930 = vmatpush1.msra.mxu0 0.0
        %931 = vmatprep.subr.mxu0 0.0
        %932 = vmatpush1.msra.mxu0 0.0
        %933 = vmatprep.subr.mxu0 0.0
        %934 = vmatpush1.msra.mxu0 0.0
        %935 = vmatprep.subr.mxu0 0.0
        %936 = vmatpush1.msra.mxu0 0.0
        %937 = vmatprep.subr.mxu0 0.0
        %938 = vmatpush1.msra.mxu0 0.0
        %939 = vmatprep.subr.mxu0 0.0
        %940 = vmatpush1.msra.mxu0 0.0
        %941 = vmatprep.subr.mxu0 0.0
        %942 = vmatpush1.msra.mxu0 0.0
        %943 = vmatprep.subr.mxu0 0.0
        %944 = vmatpush1.msra.mxu0 0.0
        %945 = vmatprep.subr.mxu0 0.0
        %946 = vmatpush1.msra.mxu0 0.0
        %947 = vmatprep.subr.mxu0 0.0
        %948 = vmatpush1.msra.mxu0 0.0
        %949 = vmatprep.subr.mxu0 0.0
        %950 = vmatpush1.msra.mxu0 0.0
        %951 = vmatprep.subr.mxu0 0.0
        %952 = vmatpush1.msra.mxu0 0.0
        %953 = vmatprep.subr.mxu0 0.0
        %954 = vmatpush1.msra.mxu0 0.0
        %955 = vmatprep.subr.mxu0 0.0
        %956 = vmatpush1.msra.mxu0 0.0
        %957 = vmatprep.subr.mxu0 0.0
        %958 = vmatpush1.msra.mxu0 0.0
        %959 = vmatprep.subr.mxu0 0.0
        %960 = vmatpush1.msra.mxu0 0.0
        %961 = vmatprep.subr.mxu0 0.0
        %962 = vmatpush1.msra.mxu0 0.0
        %963 = vmatprep.subr.mxu0 0.0
        %964 = vmatpush1.msra.mxu0 0.0
        %965 = vmatprep.mubr.f32.mxu0 0.0
        %966 = vmatmul.mubr.f32.gmra.mrb[0].mxu0 %v890
        %v967 = vpop.f32.mrb[0].mxu0
        %v968 = vadd.f32 %v888, %v967
        %v969 = vpop.f32.mrb[0].mxu0
        %970 = vmatprep.mubr.f32.mxu0 0.0
        %971 = vmatmul.mubr.f32.gmra.mrb[0].mxu0 %v893
        %v972 = vpop.f32.mrb[0].mxu0
        %v973 = vadd.f32 %v888, %v972
        %v974 = vpop.f32.mrb[0].mxu0
        %975 = vmatprep.mubr.f32.mxu0 0.0
        %976 = vmatmul.mubr.f32.gmra.mrb[0].mxu0 %v896
        %v977 = vpop.f32.mrb[0].mxu0
        %v978 = vadd.f32 %v888, %v977
        %v979 = vpop.f32.mrb[0].mxu0
        %980 = vmatprep.mubr.f32.mxu0 0.0
        %981 = vmatmul.mubr.f32.gmra.mrb[0].mxu0 %v899
        %v982 = vpop.f32.mrb[0].mxu0
        %v983 = vadd.f32 %v888, %v982
        %v984 = vpop.f32.mrb[0].mxu0
        %985 = vdwg.mxu0
        %v986 = vlaneseq
        %v987 = vshrl.u32 %v986, 7
        %v988 = vsub.s32 2, %v987
        %v989 = vrot.slane %v740, %v988
        %990 = vmatprep.subr.mxu0 0.0
        %991 = vmatpush1.msra.mxu0 %v751
        %992 = vmatprep.subr.mxu0 0.0
        %993 = vmatpush1.msra.mxu0 %v752
        %994 = vmatprep.subr.mxu0 0.0
        %995 = vmatpush1.msra.mxu0 %v753
        %996 = vmatprep.subr.mxu0 0.0
        %997 = vmatpush1.msra.mxu0 %v754
        %998 = vmatprep.subr.mxu0 0.0
        %999 = vmatpush1.msra.mxu0 0.0
        %1000 = vmatprep.subr.mxu0 0.0
        %1001 = vmatpush1.msra.mxu0 0.0
        %1002 = vmatprep.subr.mxu0 0.0
        %1003 = vmatpush1.msra.mxu0 0.0
        %1004 = vmatprep.subr.mxu0 0.0
        %1005 = vmatpush1.msra.mxu0 0.0
        %1006 = vmatprep.subr.mxu0 0.0
        %1007 = vmatpush1.msra.mxu0 0.0
        %1008 = vmatprep.subr.mxu0 0.0
        %1009 = vmatpush1.msra.mxu0 0.0
        %1010 = vmatprep.subr.mxu0 0.0
        %1011 = vmatpush1.msra.mxu0 0.0
        %1012 = vmatprep.subr.mxu0 0.0
        %1013 = vmatpush1.msra.mxu0 0.0
        %1014 = vmatprep.subr.mxu0 0.0
        %1015 = vmatpush1.msra.mxu0 0.0
        %1016 = vmatprep.subr.mxu0 0.0
        %1017 = vmatpush1.msra.mxu0 0.0
        %1018 = vmatprep.subr.mxu0 0.0
        %1019 = vmatpush1.msra.mxu0 0.0
        %1020 = vmatprep.subr.mxu0 0.0
        %1021 = vmatpush1.msra.mxu0 0.0
        %1022 = vmatprep.subr.mxu0 0.0
        %1023 = vmatpush1.msra.mxu0 0.0
        %1024 = vmatprep.subr.mxu0 0.0
        %1025 = vmatpush1.msra.mxu0 0.0
        %1026 = vmatprep.subr.mxu0 0.0
        %1027 = vmatpush1.msra.mxu0 0.0
        %1028 = vmatprep.subr.mxu0 0.0
        %1029 = vmatpush1.msra.mxu0 0.0
        %1030 = vmatprep.subr.mxu0 0.0
        %1031 = vmatpush1.msra.mxu0 0.0
        %1032 = vmatprep.subr.mxu0 0.0
        %1033 = vmatpush1.msra.mxu0 0.0
        %1034 = vmatprep.subr.mxu0 0.0
        %1035 = vmatpush1.msra.mxu0 0.0
        %1036 = vmatprep.subr.mxu0 0.0
        %1037 = vmatpush1.msra.mxu0 0.0
        %1038 = vmatprep.subr.mxu0 0.0
        %1039 = vmatpush1.msra.mxu0 0.0
        %1040 = vmatprep.subr.mxu0 0.0
        %1041 = vmatpush1.msra.mxu0 0.0
        %1042 = vmatprep.subr.mxu0 0.0
        %1043 = vmatpush1.msra.mxu0 0.0
        %1044 = vmatprep.subr.mxu0 0.0
        %1045 = vmatpush1.msra.mxu0 0.0
        %1046 = vmatprep.subr.mxu0 0.0
        %1047 = vmatpush1.msra.mxu0 0.0
        %1048 = vmatprep.subr.mxu0 0.0
        %1049 = vmatpush1.msra.mxu0 0.0
        %1050 = vmatprep.subr.mxu0 0.0
        %1051 = vmatpush1.msra.mxu0 0.0
        %1052 = vmatprep.subr.mxu0 0.0
        %1053 = vmatpush1.msra.mxu0 0.0
        %1054 = vmatprep.mubr.f32.mxu0 0.0
        %1055 = vmatmul.mubr.f32.gmra.mrb[0].mxu0 %v890
        %v1056 = vpop.f32.mrb[0].mxu0
        %v1057 = vadd.f32 %v989, %v1056
        %v1058 = vpop.f32.mrb[0].mxu0
        %1059 = vmatprep.mubr.f32.mxu0 0.0
        %1060 = vmatmul.mubr.f32.gmra.mrb[0].mxu0 %v893
        %v1061 = vpop.f32.mrb[0].mxu0
        %v1062 = vadd.f32 %v989, %v1061
        %v1063 = vpop.f32.mrb[0].mxu0
        %1064 = vmatprep.mubr.f32.mxu0 0.0
        %1065 = vmatmul.mubr.f32.gmra.mrb[0].mxu0 %v896
        %v1066 = vpop.f32.mrb[0].mxu0
        %v1067 = vadd.f32 %v989, %v1066
        %v1068 = vpop.f32.mrb[0].mxu0
        %1069 = vmatprep.mubr.f32.mxu0 0.0
        %1070 = vmatmul.mubr.f32.gmra.mrb[0].mxu0 %v899
        %v1071 = vpop.f32.mrb[0].mxu0
        %v1072 = vadd.f32 %v989, %v1071
        %v1073 = vpop.f32.mrb[0].mxu0
        %1074 = vdwg.mxu0
        %1075 = vxpose.xlu0.b32.start [1/16] %v968, 128
        %1076 = vxpose.xlu0.b32.cont [2/16] %v973, 128
        %1077 = vxpose.xlu0.b32.cont [3/16] 0.0, 128
        %1078 = vxpose.xlu0.b32.cont [4/16] 0.0, 128
        %1079 = vxpose.xlu0.b32.cont [5/16] 0.0, 128
        %1080 = vxpose.xlu0.b32.cont [6/16] 0.0, 128
        %1081 = vxpose.xlu0.b32.cont [7/16] 0.0, 128
        %1082 = vxpose.xlu0.b32.cont [8/16] 0.0, 128
        %1083 = vxpose.xlu0.b32.cont [9/16] 0.0, 128
        %1084 = vxpose.xlu0.b32.cont [10/16] 0.0, 128
        %1085 = vxpose.xlu0.b32.cont [11/16] 0.0, 128
        %1086 = vxpose.xlu0.b32.cont [12/16] 0.0, 128
        %1087 = vxpose.xlu0.b32.cont [13/16] 0.0, 128
        %1088 = vxpose.xlu0.b32.cont [14/16] 0.0, 128
        %1089 = vxpose.xlu0.b32.cont [15/16] 0.0, 128
        %1090 = vxpose.xlu0.b32.end [16/16] 0.0, 128
        %v1091 = vpop.trf.xlu0
        %v1092 = vpop.trf.xlu0
        %v1093 = vpop.trf.xlu0
        %v1094 = vpop.trf.xlu0
        %v1095 = vpop.trf.xlu0
        %v1096 = vpop.trf.xlu0
        %v1097 = vpop.trf.xlu0
        %v1098 = vpop.trf.xlu0
        %v1099 = vpop.trf.xlu0
        %v1100 = vpop.trf.xlu0
        %v1101 = vpop.trf.xlu0
        %v1102 = vpop.trf.xlu0
        %v1103 = vpop.trf.xlu0
        %v1104 = vpop.trf.xlu0
        %v1105 = vpop.trf.xlu0
        %v1106 = vpop.trf.xlu0
        %1107 = vxpose.xlu0.b32.start [1/16] %v978, 128
        %1108 = vxpose.xlu0.b32.cont [2/16] %v983, 128
        %1109 = vxpose.xlu0.b32.cont [3/16] 0.0, 128
        %1110 = vxpose.xlu0.b32.cont [4/16] 0.0, 128
        %1111 = vxpose.xlu0.b32.cont [5/16] 0.0, 128
        %1112 = vxpose.xlu0.b32.cont [6/16] 0.0, 128
        %1113 = vxpose.xlu0.b32.cont [7/16] 0.0, 128
        %1114 = vxpose.xlu0.b32.cont [8/16] 0.0, 128
        %1115 = vxpose.xlu0.b32.cont [9/16] 0.0, 128
        %1116 = vxpose.xlu0.b32.cont [10/16] 0.0, 128
        %1117 = vxpose.xlu0.b32.cont [11/16] 0.0, 128
        %1118 = vxpose.xlu0.b32.cont [12/16] 0.0, 128
        %1119 = vxpose.xlu0.b32.cont [13/16] 0.0, 128
        %1120 = vxpose.xlu0.b32.cont [14/16] 0.0, 128
        %1121 = vxpose.xlu0.b32.cont [15/16] 0.0, 128
        %1122 = vxpose.xlu0.b32.end [16/16] 0.0, 128
        %v1123 = vpop.trf.xlu0
        %v1124 = vpop.trf.xlu0
        %v1125 = vpop.trf.xlu0
        %v1126 = vpop.trf.xlu0
        %v1127 = vpop.trf.xlu0
        %v1128 = vpop.trf.xlu0
        %v1129 = vpop.trf.xlu0
        %v1130 = vpop.trf.xlu0
        %v1131 = vpop.trf.xlu0
        %v1132 = vpop.trf.xlu0
        %v1133 = vpop.trf.xlu0
        %v1134 = vpop.trf.xlu0
        %v1135 = vpop.trf.xlu0
        %v1136 = vpop.trf.xlu0
        %v1137 = vpop.trf.xlu0
        %v1138 = vpop.trf.xlu0
        %v1141 = vcombine.low %v738, %v739
        %v1143 = vsel %vm815, %v1141, 0.0
        %1144 = vadd.xlane.f32.xlu0 %v1143
        %v1145 = vpop.xlane.xlu0 %1144
        %v1146 = vmul.f32 %v1145, %v828
        %v1149 = vunpack.c.l.s4 839922192
        %v1150 = vunpack.c.0.s8 %v1149
        %v1151 = vlaneseq
        %v1152 = vshrl.u32 %v1151, 7
        %v1153 = vsub.s32 %v1150, %v1152
        %v1154 = vrot.slane %v1146, %v1153
        %v1156 = vunpack.c.l.s4 1985246804
        %v1157 = vunpack.c.0.s8 %v1156
        %v1158 = vlaneseq
        %v1159 = vshrl.u32 %v1158, 7
        %v1160 = vsub.s32 %v1157, %v1159
        %v1161 = vrot.slane %v1146, %v1160
        %v1164 = vsub.f32 %v738, %v1154
        %v1165 = vsub.f32 %v739, %v1161
        %v1166 = vmul.f32 %v1164, %v1164
        %v1167 = vmul.f32 %v1165, %v1165
        %v1170 = vcombine.low %v1166, %v1167
        %v1172 = vsel %vm815, %v1170, 0.0
        %1173 = vadd.xlane.f32.xlu0 %v1172
        %v1174 = vpop.xlane.xlu0 %1173
        %v1175 = vmul.f32 %v1174, %v828
        %v1176 = vadd.f32 %v1175, 1e-05
        %v1177 = vrsqrt.pop %v1176
        %v1180 = vunpack.c.l.s4 839922192
        %v1181 = vunpack.c.0.s8 %v1180
        %v1182 = vlaneseq
        %v1183 = vshrl.u32 %v1182, 7
        %v1184 = vsub.s32 %v1181, %v1183
        %v1185 = vrot.slane %v1177, %v1184
        %v1187 = vunpack.c.l.s4 1985246804
        %v1188 = vunpack.c.0.s8 %v1187
        %v1189 = vlaneseq
        %v1190 = vshrl.u32 %v1189, 7
        %v1191 = vsub.s32 %v1188, %v1190
        %v1192 = vrot.slane %v1177, %v1191
        %v1195 = vmul.f32 %v1164, %v1185
        %v1196 = vmul.f32 %v1165, %v1192
        %v1197 = vlaneseq
        %v1198 = vshrl.u32 %v1197, 7
        %v1199 = vsub.s32 6, %v1198
        %v1200 = vrot.slane %v740, %v1199
        %v1202 = vcombine.high %v1200, %v1200
        %v1204 = vmul.f32 %v1195, %v1200
        %v1205 = vmul.f32 %v1196, %v1202
        %v1206 = vlaneseq
        %v1207 = vshrl.u32 %v1206, 7
        %v1208 = vsub.s32 7, %v1207
        %v1209 = vrot.slane %v740, %v1208
        %v1211 = vcombine.high %v1209, %v1209
        %v1213 = vadd.f32 %v1204, %v1209
        %v1214 = vadd.f32 %v1205, %v1211
        %v1215 = vlaneseq
        %v1216 = vshrl.u32 %v1215, 7
        %v1217 = vsub.s32 0, %v1216
        %v1218 = vrot.slane %v740, %v1217
        %v1221 = vcombine.low %v1213, %v1214
        %v1222 = vsel %vm815, %v1221, 0
        %1224 = vmatprep.subr.mxu0 0.0
        %1225 = vmatpush1.msra.mxu0 %v743
        %1226 = vmatprep.subr.mxu0 0.0
        %1227 = vmatpush1.msra.mxu0 %v744
        %1228 = vmatprep.subr.mxu0 0.0
        %1229 = vmatpush1.msra.mxu0 %v745
        %1230 = vmatprep.subr.mxu0 0.0
        %1231 = vmatpush1.msra.mxu0 %v746
        %1232 = vmatprep.subr.mxu0 0.0
        %1233 = vmatpush1.msra.mxu0 0.0
        %1234 = vmatprep.subr.mxu0 0.0
        %1235 = vmatpush1.msra.mxu0 0.0
        %1236 = vmatprep.subr.mxu0 0.0
        %1237 = vmatpush1.msra.mxu0 0.0
        %1238 = vmatprep.subr.mxu0 0.0
        %1239 = vmatpush1.msra.mxu0 0.0
        %1240 = vmatprep.subr.mxu0 0.0
        %1241 = vmatpush1.msra.mxu0 0.0
        %1242 = vmatprep.subr.mxu0 0.0
        %1243 = vmatpush1.msra.mxu0 0.0
        %1244 = vmatprep.subr.mxu0 0.0
        %1245 = vmatpush1.msra.mxu0 0.0
        %1246 = vmatprep.subr.mxu0 0.0
        %1247 = vmatpush1.msra.mxu0 0.0
        %1248 = vmatprep.subr.mxu0 0.0
        %1249 = vmatpush1.msra.mxu0 0.0
        %1250 = vmatprep.subr.mxu0 0.0
        %1251 = vmatpush1.msra.mxu0 0.0
        %1252 = vmatprep.subr.mxu0 0.0
        %1253 = vmatpush1.msra.mxu0 0.0
        %1254 = vmatprep.subr.mxu0 0.0
        %1255 = vmatpush1.msra.mxu0 0.0
        %1256 = vmatprep.subr.mxu0 0.0
        %1257 = vmatpush1.msra.mxu0 0.0
        %1258 = vmatprep.subr.mxu0 0.0
        %1259 = vmatpush1.msra.mxu0 0.0
        %1260 = vmatprep.subr.mxu0 0.0
        %1261 = vmatpush1.msra.mxu0 0.0
        %1262 = vmatprep.subr.mxu0 0.0
        %1263 = vmatpush1.msra.mxu0 0.0
        %1264 = vmatprep.subr.mxu0 0.0
        %1265 = vmatpush1.msra.mxu0 0.0
        %1266 = vmatprep.subr.mxu0 0.0
        %1267 = vmatpush1.msra.mxu0 0.0
        %1268 = vmatprep.subr.mxu0 0.0
        %1269 = vmatpush1.msra.mxu0 0.0
        %1270 = vmatprep.subr.mxu0 0.0
        %1271 = vmatpush1.msra.mxu0 0.0
        %1272 = vmatprep.subr.mxu0 0.0
        %1273 = vmatpush1.msra.mxu0 0.0
        %1274 = vmatprep.subr.mxu0 0.0
        %1275 = vmatpush1.msra.mxu0 0.0
        %1276 = vmatprep.subr.mxu0 0.0
        %1277 = vmatpush1.msra.mxu0 0.0
        %1278 = vmatprep.subr.mxu0 0.0
        %1279 = vmatpush1.msra.mxu0 0.0
        %1280 = vmatprep.subr.mxu0 0.0
        %1281 = vmatpush1.msra.mxu0 0.0
        %1282 = vmatprep.subr.mxu0 0.0
        %1283 = vmatpush1.msra.mxu0 0.0
        %1284 = vmatprep.subr.mxu0 0.0
        %1285 = vmatpush1.msra.mxu0 0.0
        %1286 = vmatprep.subr.mxu0 0.0
        %1287 = vmatpush1.msra.mxu0 0.0
        %1288 = vmatprep.mubr.f32.mxu0 0.0
        %1289 = vmatmul.mubr.f32.gmra.mrb[0].mxu0 %v1222
        %v1290 = vpop.f32.mrb[0].mxu0
        %v1291 = vadd.f32 %v1218, %v1290
        %v1292 = vpop.f32.mrb[0].mxu0
        %1293 = vdwg.mxu0
        %v1295 = vcombine.high %v1291, %v1291
        %v1296 = vsel %vm815, %v1291, 0
        %1298 = vmatprep.subr.mxu0 0.0
        %1299 = vmatpush1.msra.mxu0 %v1091
        %1300 = vmatprep.subr.mxu0 0.0
        %1301 = vmatpush1.msra.mxu0 %v1092
        %1302 = vmatprep.subr.mxu0 0.0
        %1303 = vmatpush1.msra.mxu0 %v1093
        %1304 = vmatprep.subr.mxu0 0.0
        %1305 = vmatpush1.msra.mxu0 %v1094
        %1306 = vmatprep.subr.mxu0 0.0
        %1307 = vmatpush1.msra.mxu0 0.0
        %1308 = vmatprep.subr.mxu0 0.0
        %1309 = vmatpush1.msra.mxu0 0.0
        %1310 = vmatprep.subr.mxu0 0.0
        %1311 = vmatpush1.msra.mxu0 0.0
        %1312 = vmatprep.subr.mxu0 0.0
        %1313 = vmatpush1.msra.mxu0 0.0
        %1314 = vmatprep.subr.mxu0 0.0
        %1315 = vmatpush1.msra.mxu0 0.0
        %1316 = vmatprep.subr.mxu0 0.0
        %1317 = vmatpush1.msra.mxu0 0.0
        %1318 = vmatprep.subr.mxu0 0.0
        %1319 = vmatpush1.msra.mxu0 0.0
        %1320 = vmatprep.subr.mxu0 0.0
        %1321 = vmatpush1.msra.mxu0 0.0
        %1322 = vmatprep.subr.mxu0 0.0
        %1323 = vmatpush1.msra.mxu0 0.0
        %1324 = vmatprep.subr.mxu0 0.0
        %1325 = vmatpush1.msra.mxu0 0.0
        %1326 = vmatprep.subr.mxu0 0.0
        %1327 = vmatpush1.msra.mxu0 0.0
        %1328 = vmatprep.subr.mxu0 0.0
        %1329 = vmatpush1.msra.mxu0 0.0
        %1330 = vmatprep.subr.mxu0 0.0
        %1331 = vmatpush1.msra.mxu0 0.0
        %1332 = vmatprep.subr.mxu0 0.0
        %1333 = vmatpush1.msra.mxu0 0.0
        %1334 = vmatprep.subr.mxu0 0.0
        %1335 = vmatpush1.msra.mxu0 0.0
        %1336 = vmatprep.subr.mxu0 0.0
        %1337 = vmatpush1.msra.mxu0 0.0
        %1338 = vmatprep.subr.mxu0 0.0
        %1339 = vmatpush1.msra.mxu0 0.0
        %1340 = vmatprep.subr.mxu0 0.0
        %1341 = vmatpush1.msra.mxu0 0.0
        %1342 = vmatprep.subr.mxu0 0.0
        %1343 = vmatpush1.msra.mxu0 0.0
        %1344 = vmatprep.subr.mxu0 0.0
        %1345 = vmatpush1.msra.mxu0 0.0
        %1346 = vmatprep.subr.mxu0 0.0
        %1347 = vmatpush1.msra.mxu0 0.0
        %1348 = vmatprep.subr.mxu0 0.0
        %1349 = vmatpush1.msra.mxu0 0.0
        %1350 = vmatprep.subr.mxu0 0.0
        %1351 = vmatpush1.msra.mxu0 0.0
        %1352 = vmatprep.subr.mxu0 0.0
        %1353 = vmatpush1.msra.mxu0 0.0
        %1354 = vmatprep.subr.mxu0 0.0
        %1355 = vmatpush1.msra.mxu0 0.0
        %1356 = vmatprep.subr.mxu0 0.0
        %1357 = vmatpush1.msra.mxu0 0.0
        %1358 = vmatprep.subr.mxu0 0.0
        %1359 = vmatpush1.msra.mxu0 0.0
        %1360 = vmatprep.subr.mxu0 0.0
        %1361 = vmatpush1.msra.mxu0 0.0
        %1362 = vmatprep.mubr.f32.mxu0 0.0
        %1363 = vmatmul.mubr.f32.gmra.mrb[0].mxu0 %v1296
        %v1364 = vpop.f32.mrb[0].mxu0
        %v1365 = vadd.f32 0.0, %v1364
        %v1366 = vpop.f32.mrb[0].mxu0
        %1367 = vdwg.mxu0
        %v1368 = vsel %vm815, %v1295, 0
        %1370 = vmatprep.subr.mxu0 0.0
        %1371 = vmatpush1.msra.mxu0 %v1123
        %1372 = vmatprep.subr.mxu0 0.0
        %1373 = vmatpush1.msra.mxu0 %v1124
        %1374 = vmatprep.subr.mxu0 0.0
        %1375 = vmatpush1.msra.mxu0 %v1125
        %1376 = vmatprep.subr.mxu0 0.0
        %1377 = vmatpush1.msra.mxu0 %v1126
        %1378 = vmatprep.subr.mxu0 0.0
        %1379 = vmatpush1.msra.mxu0 0.0
        %1380 = vmatprep.subr.mxu0 0.0
        %1381 = vmatpush1.msra.mxu0 0.0
        %1382 = vmatprep.subr.mxu0 0.0
        %1383 = vmatpush1.msra.mxu0 0.0
        %1384 = vmatprep.subr.mxu0 0.0
        %1385 = vmatpush1.msra.mxu0 0.0
        %1386 = vmatprep.subr.mxu0 0.0
        %1387 = vmatpush1.msra.mxu0 0.0
        %1388 = vmatprep.subr.mxu0 0.0
        %1389 = vmatpush1.msra.mxu0 0.0
        %1390 = vmatprep.subr.mxu0 0.0
        %1391 = vmatpush1.msra.mxu0 0.0
        %1392 = vmatprep.subr.mxu0 0.0
        %1393 = vmatpush1.msra.mxu0 0.0
        %1394 = vmatprep.subr.mxu0 0.0
        %1395 = vmatpush1.msra.mxu0 0.0
        %1396 = vmatprep.subr.mxu0 0.0
        %1397 = vmatpush1.msra.mxu0 0.0
        %1398 = vmatprep.subr.mxu0 0.0
        %1399 = vmatpush1.msra.mxu0 0.0
        %1400 = vmatprep.subr.mxu0 0.0
        %1401 = vmatpush1.msra.mxu0 0.0
        %1402 = vmatprep.subr.mxu0 0.0
        %1403 = vmatpush1.msra.mxu0 0.0
        %1404 = vmatprep.subr.mxu0 0.0
        %1405 = vmatpush1.msra.mxu0 0.0
        %1406 = vmatprep.subr.mxu0 0.0
        %1407 = vmatpush1.msra.mxu0 0.0
        %1408 = vmatprep.subr.mxu0 0.0
        %1409 = vmatpush1.msra.mxu0 0.0
        %1410 = vmatprep.subr.mxu0 0.0
        %1411 = vmatpush1.msra.mxu0 0.0
        %1412 = vmatprep.subr.mxu0 0.0
        %1413 = vmatpush1.msra.mxu0 0.0
        %1414 = vmatprep.subr.mxu0 0.0
        %1415 = vmatpush1.msra.mxu0 0.0
        %1416 = vmatprep.subr.mxu0 0.0
        %1417 = vmatpush1.msra.mxu0 0.0
        %1418 = vmatprep.subr.mxu0 0.0
        %1419 = vmatpush1.msra.mxu0 0.0
        %1420 = vmatprep.subr.mxu0 0.0
        %1421 = vmatpush1.msra.mxu0 0.0
        %1422 = vmatprep.subr.mxu0 0.0
        %1423 = vmatpush1.msra.mxu0 0.0
        %1424 = vmatprep.subr.mxu0 0.0
        %1425 = vmatpush1.msra.mxu0 0.0
        %1426 = vmatprep.subr.mxu0 0.0
        %1427 = vmatpush1.msra.mxu0 0.0
        %1428 = vmatprep.subr.mxu0 0.0
        %1429 = vmatpush1.msra.mxu0 0.0
        %1430 = vmatprep.subr.mxu0 0.0
        %1431 = vmatpush1.msra.mxu0 0.0
        %1432 = vmatprep.subr.mxu0 0.0
        %1433 = vmatpush1.msra.mxu0 0.0
        %1434 = vmatprep.mubr.f32.mxu0 0.0
        %1435 = vmatmul.mubr.f32.gmra.mrb[0].mxu0 %v1368
        %v1436 = vpop.f32.mrb[0].mxu0
        %v1437 = vadd.f32 0.0, %v1436
        %v1438 = vpop.f32.mrb[0].mxu0
        %1439 = vdwg.mxu0
        %vm1440 = vcmask 125952
        %v1441 = vsel %vm1440, %v1365, -inf
        %v1442 = vrot.slane %v1441, 4
        %v1443 = vmax.f32 %v1441, %v1442
        %v1444 = vrot.slane %v1443, 2
        %v1445 = vmax.f32 %v1443, %v1444
        %v1446 = vrot.slane %v1445, 1
        %v1447 = vmax.f32 %v1445, %v1446
        %v1448 = vsel %vm1440, %v1437, -inf
        %v1449 = vrot.slane %v1448, 4
        %v1450 = vmax.f32 %v1448, %v1449
        %v1451 = vrot.slane %v1450, 2
        %v1452 = vmax.f32 %v1450, %v1451
        %v1453 = vrot.slane %v1452, 1
        %v1454 = vmax.f32 %v1452, %v1453
        %v1455 = vsub.f32 %v1365, %v1447
        %v1456 = vsub.f32 %v1437, %v1454
        %v1457 = vmul.f32 %v1455, 1.442695
        %v1458 = vpow.pop %v1457
        %v1459 = vmul.f32 %v1456, 1.442695
        %v1460 = vpow.pop %v1459
        %v1461 = vsel %vm1440, %v1458, 0.0
        %v1462 = vrot.slane %v1461, 4
        %v1463 = vadd.f32 %v1461, %v1462
        %v1464 = vrot.slane %v1463, 2
        %v1465 = vadd.f32 %v1463, %v1464
        %v1466 = vrot.slane %v1465, 1
        %v1467 = vadd.f32 %v1465, %v1466
        %v1468 = vsel %vm1440, %v1460, 0.0
        %v1469 = vrot.slane %v1468, 4
        %v1470 = vadd.f32 %v1468, %v1469
        %v1471 = vrot.slane %v1470, 2
        %v1472 = vadd.f32 %v1470, %v1471
        %v1473 = vrot.slane %v1472, 1
        %v1474 = vadd.f32 %v1472, %v1473
        %v1475 = vrcp.pop %v1467
        %v1476 = vrcp.pop %v1474
        %v1477 = vmul.f32 %v1458, %v1475
        %v1478 = vmul.f32 %v1460, %v1476
        %v1479 = vadd.f32 %v1477, 1e-08
        %v1480 = vadd.f32 %v1478, 1e-08
        %v1481 = vsel %vm813, 0.0, %v1479
        %v1482 = vsel %vm814, 0.0, %v1480
        %v1483 = vsel %vm1440, %v1481, 0.0
        %1484 = vadd.xlane.f32.xlu0 %v1483
        %v1485 = vpop.xlane.xlu0 %1484
        %v1486 = vsel %vm1440, %v1482, 0.0
        %1487 = vadd.xlane.f32.xlu0 %v1486
        %v1488 = vpop.xlane.xlu0 %1487
        %v1489 = vrcp.pop %v1485
        %v1490 = vmul.f32 %v1481, %v1489
        %v1491 = vrcp.pop %v1488
        %v1492 = vmul.f32 %v1482, %v1491
        %vm1493 = vcmask 130048
        %v1495 = vsel %vm1493, %v1490, 0
        %1497 = vmatprep.subr.mxu0 0.0
        %1498 = vmatpush1.msra.mxu0 %v1057
        %1499 = vmatprep.subr.mxu0 0.0
        %1500 = vmatpush1.msra.mxu0 %v1062
        %1501 = vmatprep.subr.mxu0 0.0
        %1502 = vmatpush1.msra.mxu0 0.0
        %1503 = vmatprep.subr.mxu0 0.0
        %1504 = vmatpush1.msra.mxu0 0.0
        %1505 = vmatprep.subr.mxu0 0.0
        %1506 = vmatpush1.msra.mxu0 0.0
        %1507 = vmatprep.subr.mxu0 0.0
        %1508 = vmatpush1.msra.mxu0 0.0
        %1509 = vmatprep.subr.mxu0 0.0
        %1510 = vmatpush1.msra.mxu0 0.0
        %1511 = vmatprep.subr.mxu0 0.0
        %1512 = vmatpush1.msra.mxu0 0.0
        %1513 = vmatprep.subr.mxu0 0.0
        %1514 = vmatpush1.msra.mxu0 0.0
        %1515 = vmatprep.subr.mxu0 0.0
        %1516 = vmatpush1.msra.mxu0 0.0
        %1517 = vmatprep.subr.mxu0 0.0
        %1518 = vmatpush1.msra.mxu0 0.0
        %1519 = vmatprep.subr.mxu0 0.0
        %1520 = vmatpush1.msra.mxu0 0.0
        %1521 = vmatprep.subr.mxu0 0.0
        %1522 = vmatpush1.msra.mxu0 0.0
        %1523 = vmatprep.subr.mxu0 0.0
        %1524 = vmatpush1.msra.mxu0 0.0
        %1525 = vmatprep.subr.mxu0 0.0
        %1526 = vmatpush1.msra.mxu0 0.0
        %1527 = vmatprep.subr.mxu0 0.0
        %1528 = vmatpush1.msra.mxu0 0.0
        %1529 = vmatprep.subr.mxu0 0.0
        %1530 = vmatpush1.msra.mxu0 0.0
        %1531 = vmatprep.subr.mxu0 0.0
        %1532 = vmatpush1.msra.mxu0 0.0
        %1533 = vmatprep.subr.mxu0 0.0
        %1534 = vmatpush1.msra.mxu0 0.0
        %1535 = vmatprep.subr.mxu0 0.0
        %1536 = vmatpush1.msra.mxu0 0.0
        %1537 = vmatprep.subr.mxu0 0.0
        %1538 = vmatpush1.msra.mxu0 0.0
        %1539 = vmatprep.subr.mxu0 0.0
        %1540 = vmatpush1.msra.mxu0 0.0
        %1541 = vmatprep.subr.mxu0 0.0
        %1542 = vmatpush1.msra.mxu0 0.0
        %1543 = vmatprep.subr.mxu0 0.0
        %1544 = vmatpush1.msra.mxu0 0.0
        %1545 = vmatprep.subr.mxu0 0.0
        %1546 = vmatpush1.msra.mxu0 0.0
        %1547 = vmatprep.subr.mxu0 0.0
        %1548 = vmatpush1.msra.mxu0 0.0
        %1549 = vmatprep.subr.mxu0 0.0
        %1550 = vmatpush1.msra.mxu0 0.0
        %1551 = vmatprep.subr.mxu0 0.0
        %1552 = vmatpush1.msra.mxu0 0.0
        %1553 = vmatprep.subr.mxu0 0.0
        %1554 = vmatpush1.msra.mxu0 0.0
        %1555 = vmatprep.subr.mxu0 0.0
        %1556 = vmatpush1.msra.mxu0 0.0
        %1557 = vmatprep.subr.mxu0 0.0
        %1558 = vmatpush1.msra.mxu0 0.0
        %1559 = vmatprep.subr.mxu0 0.0
        %1560 = vmatpush1.msra.mxu0 0.0
        %1561 = vmatprep.mubr.f32.mxu0 0.0
        %1562 = vmatmul.mubr.f32.gmra.mrb[0].mxu0 %v1495
        %v1563 = vpop.f32.mrb[0].mxu0
        %v1564 = vadd.f32 0.0, %v1563
        %v1565 = vpop.f32.mrb[0].mxu0
        %1566 = vdwg.mxu0
        %v1568 = vsel %vm1493, %v1492, 0
        %1570 = vmatprep.subr.mxu0 0.0
        %1571 = vmatpush1.msra.mxu0 %v1067
        %1572 = vmatprep.subr.mxu0 0.0
        %1573 = vmatpush1.msra.mxu0 %v1072
        %1574 = vmatprep.subr.mxu0 0.0
        %1575 = vmatpush1.msra.mxu0 0.0
        %1576 = vmatprep.subr.mxu0 0.0
        %1577 = vmatpush1.msra.mxu0 0.0
        %1578 = vmatprep.subr.mxu0 0.0
        %1579 = vmatpush1.msra.mxu0 0.0
        %1580 = vmatprep.subr.mxu0 0.0
        %1581 = vmatpush1.msra.mxu0 0.0
        %1582 = vmatprep.subr.mxu0 0.0
        %1583 = vmatpush1.msra.mxu0 0.0
        %1584 = vmatprep.subr.mxu0 0.0
        %1585 = vmatpush1.msra.mxu0 0.0
        %1586 = vmatprep.subr.mxu0 0.0
        %1587 = vmatpush1.msra.mxu0 0.0
        %1588 = vmatprep.subr.mxu0 0.0
        %1589 = vmatpush1.msra.mxu0 0.0
        %1590 = vmatprep.subr.mxu0 0.0
        %1591 = vmatpush1.msra.mxu0 0.0
        %1592 = vmatprep.subr.mxu0 0.0
        %1593 = vmatpush1.msra.mxu0 0.0
        %1594 = vmatprep.subr.mxu0 0.0
        %1595 = vmatpush1.msra.mxu0 0.0
        %1596 = vmatprep.subr.mxu0 0.0
        %1597 = vmatpush1.msra.mxu0 0.0
        %1598 = vmatprep.subr.mxu0 0.0
        %1599 = vmatpush1.msra.mxu0 0.0
        %1600 = vmatprep.subr.mxu0 0.0
        %1601 = vmatpush1.msra.mxu0 0.0
        %1602 = vmatprep.subr.mxu0 0.0
        %1603 = vmatpush1.msra.mxu0 0.0
        %1604 = vmatprep.subr.mxu0 0.0
        %1605 = vmatpush1.msra.mxu0 0.0
        %1606 = vmatprep.subr.mxu0 0.0
        %1607 = vmatpush1.msra.mxu0 0.0
        %1608 = vmatprep.subr.mxu0 0.0
        %1609 = vmatpush1.msra.mxu0 0.0
        %1610 = vmatprep.subr.mxu0 0.0
        %1611 = vmatpush1.msra.mxu0 0.0
        %1612 = vmatprep.subr.mxu0 0.0
        %1613 = vmatpush1.msra.mxu0 0.0
        %1614 = vmatprep.subr.mxu0 0.0
        %1615 = vmatpush1.msra.mxu0 0.0
        %1616 = vmatprep.subr.mxu0 0.0
        %1617 = vmatpush1.msra.mxu0 0.0
        %1618 = vmatprep.subr.mxu0 0.0
        %1619 = vmatpush1.msra.mxu0 0.0
        %1620 = vmatprep.subr.mxu0 0.0
        %1621 = vmatpush1.msra.mxu0 0.0
        %1622 = vmatprep.subr.mxu0 0.0
        %1623 = vmatpush1.msra.mxu0 0.0
        %1624 = vmatprep.subr.mxu0 0.0
        %1625 = vmatpush1.msra.mxu0 0.0
        %1626 = vmatprep.subr.mxu0 0.0
        %1627 = vmatpush1.msra.mxu0 0.0
        %1628 = vmatprep.subr.mxu0 0.0
        %1629 = vmatpush1.msra.mxu0 0.0
        %1630 = vmatprep.subr.mxu0 0.0
        %1631 = vmatpush1.msra.mxu0 0.0
        %1632 = vmatprep.subr.mxu0 0.0
        %1633 = vmatpush1.msra.mxu0 0.0
        %1634 = vmatprep.mubr.f32.mxu0 0.0
        %1635 = vmatmul.mubr.f32.gmra.mrb[0].mxu0 %v1568
        %v1636 = vpop.f32.mrb[0].mxu0
        %v1637 = vadd.f32 0.0, %v1636
        %v1638 = vpop.f32.mrb[0].mxu0
        %1639 = vdwg.mxu0
        %v1640 = vlaneseq
        %v1641 = vshrl.u32 %v1640, 7
        %v1642 = vsub.s32 2, %v1641
        %v1643 = vrot.slane %v741, %v1642
        %v1646 = vcombine.low %v1564, %v1637
        %v1647 = vsel %vm815, %v1646, 0
        %1649 = vmatprep.subr.mxu0 0.0
        %1650 = vmatpush1.msra.mxu0 %v775
        %1651 = vmatprep.subr.mxu0 0.0
        %1652 = vmatpush1.msra.mxu0 %v776
        %1653 = vmatprep.subr.mxu0 0.0
        %1654 = vmatpush1.msra.mxu0 %v777
        %1655 = vmatprep.subr.mxu0 0.0
        %1656 = vmatpush1.msra.mxu0 %v778
        %1657 = vmatprep.subr.mxu0 0.0
        %1658 = vmatpush1.msra.mxu0 0.0
        %1659 = vmatprep.subr.mxu0 0.0
        %1660 = vmatpush1.msra.mxu0 0.0
        %1661 = vmatprep.subr.mxu0 0.0
        %1662 = vmatpush1.msra.mxu0 0.0
        %1663 = vmatprep.subr.mxu0 0.0
        %1664 = vmatpush1.msra.mxu0 0.0
        %1665 = vmatprep.subr.mxu0 0.0
        %1666 = vmatpush1.msra.mxu0 0.0
        %1667 = vmatprep.subr.mxu0 0.0
        %1668 = vmatpush1.msra.mxu0 0.0
        %1669 = vmatprep.subr.mxu0 0.0
        %1670 = vmatpush1.msra.mxu0 0.0
        %1671 = vmatprep.subr.mxu0 0.0
        %1672 = vmatpush1.msra.mxu0 0.0
        %1673 = vmatprep.subr.mxu0 0.0
        %1674 = vmatpush1.msra.mxu0 0.0
        %1675 = vmatprep.subr.mxu0 0.0
        %1676 = vmatpush1.msra.mxu0 0.0
        %1677 = vmatprep.subr.mxu0 0.0
        %1678 = vmatpush1.msra.mxu0 0.0
        %1679 = vmatprep.subr.mxu0 0.0
        %1680 = vmatpush1.msra.mxu0 0.0
        %1681 = vmatprep.subr.mxu0 0.0
        %1682 = vmatpush1.msra.mxu0 0.0
        %1683 = vmatprep.subr.mxu0 0.0
        %1684 = vmatpush1.msra.mxu0 0.0
        %1685 = vmatprep.subr.mxu0 0.0
        %1686 = vmatpush1.msra.mxu0 0.0
        %1687 = vmatprep.subr.mxu0 0.0
        %1688 = vmatpush1.msra.mxu0 0.0
        %1689 = vmatprep.subr.mxu0 0.0
        %1690 = vmatpush1.msra.mxu0 0.0
        %1691 = vmatprep.subr.mxu0 0.0
        %1692 = vmatpush1.msra.mxu0 0.0
        %1693 = vmatprep.subr.mxu0 0.0
        %1694 = vmatpush1.msra.mxu0 0.0
        %1695 = vmatprep.subr.mxu0 0.0
        %1696 = vmatpush1.msra.mxu0 0.0
        %1697 = vmatprep.subr.mxu0 0.0
        %1698 = vmatpush1.msra.mxu0 0.0
        %1699 = vmatprep.subr.mxu0 0.0
        %1700 = vmatpush1.msra.mxu0 0.0
        %1701 = vmatprep.subr.mxu0 0.0
        %1702 = vmatpush1.msra.mxu0 0.0
        %1703 = vmatprep.subr.mxu0 0.0
        %1704 = vmatpush1.msra.mxu0 0.0
        %1705 = vmatprep.subr.mxu0 0.0
        %1706 = vmatpush1.msra.mxu0 0.0
        %1707 = vmatprep.subr.mxu0 0.0
        %1708 = vmatpush1.msra.mxu0 0.0
        %1709 = vmatprep.subr.mxu0 0.0
        %1710 = vmatpush1.msra.mxu0 0.0
        %1711 = vmatprep.subr.mxu0 0.0
        %1712 = vmatpush1.msra.mxu0 0.0
        %1713 = vmatprep.mubr.f32.mxu0 0.0
        %1714 = vmatmul.mubr.f32.gmra.mrb[0].mxu0 %v1647
        %v1715 = vpop.f32.mrb[0].mxu0
        %v1716 = vadd.f32 %v1643, %v1715
        %v1717 = vpop.f32.mrb[0].mxu0
        %1718 = vdwg.mxu0
        %v1719 = vsel %vm815, %v1141, 0
        %1721 = vmatprep.subr.mxu0 0.0
        %1722 = vmatpush1.msra.mxu0 %v787
        %1723 = vmatprep.subr.mxu0 0.0
        %1724 = vmatpush1.msra.mxu0 %v788
        %1725 = vmatprep.subr.mxu0 0.0
        %1726 = vmatpush1.msra.mxu0 %v789
        %1727 = vmatprep.subr.mxu0 0.0
        %1728 = vmatpush1.msra.mxu0 %v790
        %1729 = vmatprep.subr.mxu0 0.0
        %1730 = vmatpush1.msra.mxu0 0.0
        %1731 = vmatprep.subr.mxu0 0.0
        %1732 = vmatpush1.msra.mxu0 0.0
        %1733 = vmatprep.subr.mxu0 0.0
        %1734 = vmatpush1.msra.mxu0 0.0
        %1735 = vmatprep.subr.mxu0 0.0
        %1736 = vmatpush1.msra.mxu0 0.0
        %1737 = vmatprep.subr.mxu0 0.0
        %1738 = vmatpush1.msra.mxu0 0.0
        %1739 = vmatprep.subr.mxu0 0.0
        %1740 = vmatpush1.msra.mxu0 0.0
        %1741 = vmatprep.subr.mxu0 0.0
        %1742 = vmatpush1.msra.mxu0 0.0
        %1743 = vmatprep.subr.mxu0 0.0
        %1744 = vmatpush1.msra.mxu0 0.0
        %1745 = vmatprep.subr.mxu0 0.0
        %1746 = vmatpush1.msra.mxu0 0.0
        %1747 = vmatprep.subr.mxu0 0.0
        %1748 = vmatpush1.msra.mxu0 0.0
        %1749 = vmatprep.subr.mxu0 0.0
        %1750 = vmatpush1.msra.mxu0 0.0
        %1751 = vmatprep.subr.mxu0 0.0
        %1752 = vmatpush1.msra.mxu0 0.0
        %1753 = vmatprep.subr.mxu0 0.0
        %1754 = vmatpush1.msra.mxu0 0.0
        %1755 = vmatprep.subr.mxu0 0.0
        %1756 = vmatpush1.msra.mxu0 0.0
        %1757 = vmatprep.subr.mxu0 0.0
        %1758 = vmatpush1.msra.mxu0 0.0
        %1759 = vmatprep.subr.mxu0 0.0
        %1760 = vmatpush1.msra.mxu0 0.0
        %1761 = vmatprep.subr.mxu0 0.0
        %1762 = vmatpush1.msra.mxu0 0.0
        %1763 = vmatprep.subr.mxu0 0.0
        %1764 = vmatpush1.msra.mxu0 0.0
        %1765 = vmatprep.subr.mxu0 0.0
        %1766 = vmatpush1.msra.mxu0 0.0
        %1767 = vmatprep.subr.mxu0 0.0
        %1768 = vmatpush1.msra.mxu0 0.0
        %1769 = vmatprep.subr.mxu0 0.0
        %1770 = vmatpush1.msra.mxu0 0.0
        %1771 = vmatprep.subr.mxu0 0.0
        %1772 = vmatpush1.msra.mxu0 0.0
        %1773 = vmatprep.subr.mxu0 0.0
        %1774 = vmatpush1.msra.mxu0 0.0
        %1775 = vmatprep.subr.mxu0 0.0
        %1776 = vmatpush1.msra.mxu0 0.0
        %1777 = vmatprep.subr.mxu0 0.0
        %1778 = vmatpush1.msra.mxu0 0.0
        %1779 = vmatprep.subr.mxu0 0.0
        %1780 = vmatpush1.msra.mxu0 0.0
        %1781 = vmatprep.subr.mxu0 0.0
        %1782 = vmatpush1.msra.mxu0 0.0
        %1783 = vmatprep.subr.mxu0 0.0
        %1784 = vmatpush1.msra.mxu0 0.0
        %1785 = vmatprep.mubr.f32.mxu0 0.0
        %1786 = vmatmul.mubr.f32.gmra.mrb[0].mxu0 %v1719
        %v1787 = vpop.f32.mrb[0].mxu0
        %v1788 = vadd.f32 0.0, %v1787
        %v1789 = vpop.f32.mrb[0].mxu0
        %1790 = vdwg.mxu0
        %v1791 = vadd.f32 %v1716, %v1788
        %v1792 = vlaneseq
        %v1793 = vshrl.u32 %v1792, 7
        %v1794 = vsub.s32 5, %v1793
        %v1795 = vrot.slane %v741, %v1794
        %v1796 = vadd.f32 %v1791, %v1795
        %v1797 = vxor.u32 %v1796, 2147483648
        %v1798 = vmul.f32 %v1797, 1.442695
        %v1799 = vpow.pop %v1798
        %v1800 = vadd.f32 %v1799, 1.0
        %v1801 = vrcp.pop %v1800
        %v1802 = vmul.f32 1.0, %v1801
        %v1803 = vlaneseq
        %v1804 = vshrl.u32 %v1803, 7
        %v1805 = vsub.s32 3, %v1804
        %v1806 = vrot.slane %v741, %v1805
        %1807 = vmatprep.subr.mxu0 0.0
        %1808 = vmatpush1.msra.mxu0 %v779
        %1809 = vmatprep.subr.mxu0 0.0
        %1810 = vmatpush1.msra.mxu0 %v780
        %1811 = vmatprep.subr.mxu0 0.0
        %1812 = vmatpush1.msra.mxu0 %v781
        %1813 = vmatprep.subr.mxu0 0.0
        %1814 = vmatpush1.msra.mxu0 %v782
        %1815 = vmatprep.subr.mxu0 0.0
        %1816 = vmatpush1.msra.mxu0 0.0
        %1817 = vmatprep.subr.mxu0 0.0
        %1818 = vmatpush1.msra.mxu0 0.0
        %1819 = vmatprep.subr.mxu0 0.0
        %1820 = vmatpush1.msra.mxu0 0.0
        %1821 = vmatprep.subr.mxu0 0.0
        %1822 = vmatpush1.msra.mxu0 0.0
        %1823 = vmatprep.subr.mxu0 0.0
        %1824 = vmatpush1.msra.mxu0 0.0
        %1825 = vmatprep.subr.mxu0 0.0
        %1826 = vmatpush1.msra.mxu0 0.0
        %1827 = vmatprep.subr.mxu0 0.0
        %1828 = vmatpush1.msra.mxu0 0.0
        %1829 = vmatprep.subr.mxu0 0.0
        %1830 = vmatpush1.msra.mxu0 0.0
        %1831 = vmatprep.subr.mxu0 0.0
        %1832 = vmatpush1.msra.mxu0 0.0
        %1833 = vmatprep.subr.mxu0 0.0
        %1834 = vmatpush1.msra.mxu0 0.0
        %1835 = vmatprep.subr.mxu0 0.0
        %1836 = vmatpush1.msra.mxu0 0.0
        %1837 = vmatprep.subr.mxu0 0.0
        %1838 = vmatpush1.msra.mxu0 0.0
        %1839 = vmatprep.subr.mxu0 0.0
        %1840 = vmatpush1.msra.mxu0 0.0
        %1841 = vmatprep.subr.mxu0 0.0
        %1842 = vmatpush1.msra.mxu0 0.0
        %1843 = vmatprep.subr.mxu0 0.0
        %1844 = vmatpush1.msra.mxu0 0.0
        %1845 = vmatprep.subr.mxu0 0.0
        %1846 = vmatpush1.msra.mxu0 0.0
        %1847 = vmatprep.subr.mxu0 0.0
        %1848 = vmatpush1.msra.mxu0 0.0
        %1849 = vmatprep.subr.mxu0 0.0
        %1850 = vmatpush1.msra.mxu0 0.0
        %1851 = vmatprep.subr.mxu0 0.0
        %1852 = vmatpush1.msra.mxu0 0.0
        %1853 = vmatprep.subr.mxu0 0.0
        %1854 = vmatpush1.msra.mxu0 0.0
        %1855 = vmatprep.subr.mxu0 0.0
        %1856 = vmatpush1.msra.mxu0 0.0
        %1857 = vmatprep.subr.mxu0 0.0
        %1858 = vmatpush1.msra.mxu0 0.0
        %1859 = vmatprep.subr.mxu0 0.0
        %1860 = vmatpush1.msra.mxu0 0.0
        %1861 = vmatprep.subr.mxu0 0.0
        %1862 = vmatpush1.msra.mxu0 0.0
        %1863 = vmatprep.subr.mxu0 0.0
        %1864 = vmatpush1.msra.mxu0 0.0
        %1865 = vmatprep.subr.mxu0 0.0
        %1866 = vmatpush1.msra.mxu0 0.0
        %1867 = vmatprep.subr.mxu0 0.0
        %1868 = vmatpush1.msra.mxu0 0.0
        %1869 = vmatprep.subr.mxu0 0.0
        %1870 = vmatpush1.msra.mxu0 0.0
        %1871 = vmatprep.mubr.f32.mxu0 0.0
        %1872 = vmatmul.mubr.f32.gmra.mrb[0].mxu0 %v1647
        %v1873 = vpop.f32.mrb[0].mxu0
        %v1874 = vadd.f32 %v1806, %v1873
        %v1875 = vpop.f32.mrb[0].mxu0
        %1876 = vdwg.mxu0
        %1877 = vmatprep.subr.mxu0 0.0
        %1878 = vmatpush1.msra.mxu0 %v791
        %1879 = vmatprep.subr.mxu0 0.0
        %1880 = vmatpush1.msra.mxu0 %v792
        %1881 = vmatprep.subr.mxu0 0.0
        %1882 = vmatpush1.msra.mxu0 %v793
        %1883 = vmatprep.subr.mxu0 0.0
        %1884 = vmatpush1.msra.mxu0 %v794
        %1885 = vmatprep.subr.mxu0 0.0
        %1886 = vmatpush1.msra.mxu0 0.0
        %1887 = vmatprep.subr.mxu0 0.0
        %1888 = vmatpush1.msra.mxu0 0.0
        %1889 = vmatprep.subr.mxu0 0.0
        %1890 = vmatpush1.msra.mxu0 0.0
        %1891 = vmatprep.subr.mxu0 0.0
        %1892 = vmatpush1.msra.mxu0 0.0
        %1893 = vmatprep.subr.mxu0 0.0
        %1894 = vmatpush1.msra.mxu0 0.0
        %1895 = vmatprep.subr.mxu0 0.0
        %1896 = vmatpush1.msra.mxu0 0.0
        %1897 = vmatprep.subr.mxu0 0.0
        %1898 = vmatpush1.msra.mxu0 0.0
        %1899 = vmatprep.subr.mxu0 0.0
        %1900 = vmatpush1.msra.mxu0 0.0
        %1901 = vmatprep.subr.mxu0 0.0
        %1902 = vmatpush1.msra.mxu0 0.0
        %1903 = vmatprep.subr.mxu0 0.0
        %1904 = vmatpush1.msra.mxu0 0.0
        %1905 = vmatprep.subr.mxu0 0.0
        %1906 = vmatpush1.msra.mxu0 0.0
        %1907 = vmatprep.subr.mxu0 0.0
        %1908 = vmatpush1.msra.mxu0 0.0
        %1909 = vmatprep.subr.mxu0 0.0
        %1910 = vmatpush1.msra.mxu0 0.0
        %1911 = vmatprep.subr.mxu0 0.0
        %1912 = vmatpush1.msra.mxu0 0.0
        %1913 = vmatprep.subr.mxu0 0.0
        %1914 = vmatpush1.msra.mxu0 0.0
        %1915 = vmatprep.subr.mxu0 0.0
        %1916 = vmatpush1.msra.mxu0 0.0
        %1917 = vmatprep.subr.mxu0 0.0
        %1918 = vmatpush1.msra.mxu0 0.0
        %1919 = vmatprep.subr.mxu0 0.0
        %1920 = vmatpush1.msra.mxu0 0.0
        %1921 = vmatprep.subr.mxu0 0.0
        %1922 = vmatpush1.msra.mxu0 0.0
        %1923 = vmatprep.subr.mxu0 0.0
        %1924 = vmatpush1.msra.mxu0 0.0
        %1925 = vmatprep.subr.mxu0 0.0
        %1926 = vmatpush1.msra.mxu0 0.0
        %1927 = vmatprep.subr.mxu0 0.0
        %1928 = vmatpush1.msra.mxu0 0.0
        %1929 = vmatprep.subr.mxu0 0.0
        %1930 = vmatpush1.msra.mxu0 0.0
        %1931 = vmatprep.subr.mxu0 0.0
        %1932 = vmatpush1.msra.mxu0 0.0
        %1933 = vmatprep.subr.mxu0 0.0
        %1934 = vmatpush1.msra.mxu0 0.0
        %1935 = vmatprep.subr.mxu0 0.0
        %1936 = vmatpush1.msra.mxu0 0.0
        %1937 = vmatprep.subr.mxu0 0.0
        %1938 = vmatpush1.msra.mxu0 0.0
        %1939 = vmatprep.subr.mxu0 0.0
        %1940 = vmatpush1.msra.mxu0 0.0
        %1941 = vmatprep.mubr.f32.mxu0 0.0
        %1942 = vmatmul.mubr.f32.gmra.mrb[0].mxu0 %v1719
        %v1943 = vpop.f32.mrb[0].mxu0
        %v1944 = vadd.f32 0.0, %v1943
        %v1945 = vpop.f32.mrb[0].mxu0
        %1946 = vdwg.mxu0
        %v1947 = vadd.f32 %v1874, %v1944
        %v1948 = vlaneseq
        %v1949 = vshrl.u32 %v1948, 7
        %v1950 = vsub.s32 6, %v1949
        %v1951 = vrot.slane %v741, %v1950
        %v1952 = vadd.f32 %v1947, %v1951
        %v1953 = vxor.u32 %v1952, 2147483648
        %v1954 = vmul.f32 %v1953, 1.442695
        %v1955 = vpow.pop %v1954
        %v1956 = vadd.f32 %v1955, 1.0
        %v1957 = vrcp.pop %v1956
        %v1958 = vmul.f32 1.0, %v1957
        %v1959 = vlaneseq
        %v1960 = vshrl.u32 %v1959, 7
        %v1961 = vsub.s32 4, %v1960
        %v1962 = vrot.slane %v741, %v1961
        %1963 = vmatprep.subr.mxu0 0.0
        %1964 = vmatpush1.msra.mxu0 %v783
        %1965 = vmatprep.subr.mxu0 0.0
        %1966 = vmatpush1.msra.mxu0 %v784
        %1967 = vmatprep.subr.mxu0 0.0
        %1968 = vmatpush1.msra.mxu0 %v785
        %1969 = vmatprep.subr.mxu0 0.0
        %1970 = vmatpush1.msra.mxu0 %v786
        %1971 = vmatprep.subr.mxu0 0.0
        %1972 = vmatpush1.msra.mxu0 0.0
        %1973 = vmatprep.subr.mxu0 0.0
        %1974 = vmatpush1.msra.mxu0 0.0
        %1975 = vmatprep.subr.mxu0 0.0
        %1976 = vmatpush1.msra.mxu0 0.0
        %1977 = vmatprep.subr.mxu0 0.0
        %1978 = vmatpush1.msra.mxu0 0.0
        %1979 = vmatprep.subr.mxu0 0.0
        %1980 = vmatpush1.msra.mxu0 0.0
        %1981 = vmatprep.subr.mxu0 0.0
        %1982 = vmatpush1.msra.mxu0 0.0
        %1983 = vmatprep.subr.mxu0 0.0
        %1984 = vmatpush1.msra.mxu0 0.0
        %1985 = vmatprep.subr.mxu0 0.0
        %1986 = vmatpush1.msra.mxu0 0.0
        %1987 = vmatprep.subr.mxu0 0.0
        %1988 = vmatpush1.msra.mxu0 0.0
        %1989 = vmatprep.subr.mxu0 0.0
        %1990 = vmatpush1.msra.mxu0 0.0
        %1991 = vmatprep.subr.mxu0 0.0
        %1992 = vmatpush1.msra.mxu0 0.0
        %1993 = vmatprep.subr.mxu0 0.0
        %1994 = vmatpush1.msra.mxu0 0.0
        %1995 = vmatprep.subr.mxu0 0.0
        %1996 = vmatpush1.msra.mxu0 0.0
        %1997 = vmatprep.subr.mxu0 0.0
        %1998 = vmatpush1.msra.mxu0 0.0
        %1999 = vmatprep.subr.mxu0 0.0
        %2000 = vmatpush1.msra.mxu0 0.0
        %2001 = vmatprep.subr.mxu0 0.0
        %2002 = vmatpush1.msra.mxu0 0.0
        %2003 = vmatprep.subr.mxu0 0.0
        %2004 = vmatpush1.msra.mxu0 0.0
        %2005 = vmatprep.subr.mxu0 0.0
        %2006 = vmatpush1.msra.mxu0 0.0
        %2007 = vmatprep.subr.mxu0 0.0
        %2008 = vmatpush1.msra.mxu0 0.0
        %2009 = vmatprep.subr.mxu0 0.0
        %2010 = vmatpush1.msra.mxu0 0.0
        %2011 = vmatprep.subr.mxu0 0.0
        %2012 = vmatpush1.msra.mxu0 0.0
        %2013 = vmatprep.subr.mxu0 0.0
        %2014 = vmatpush1.msra.mxu0 0.0
        %2015 = vmatprep.subr.mxu0 0.0
        %2016 = vmatpush1.msra.mxu0 0.0
        %2017 = vmatprep.subr.mxu0 0.0
        %2018 = vmatpush1.msra.mxu0 0.0
        %2019 = vmatprep.subr.mxu0 0.0
        %2020 = vmatpush1.msra.mxu0 0.0
        %2021 = vmatprep.subr.mxu0 0.0
        %2022 = vmatpush1.msra.mxu0 0.0
        %2023 = vmatprep.subr.mxu0 0.0
        %2024 = vmatpush1.msra.mxu0 0.0
        %2025 = vmatprep.subr.mxu0 0.0
        %2026 = vmatpush1.msra.mxu0 0.0
        %2027 = vmatprep.mubr.f32.mxu0 0.0
        %2028 = vmatmul.mubr.f32.gmra.mrb[0].mxu0 %v1647
        %v2029 = vpop.f32.mrb[0].mxu0
        %v2030 = vadd.f32 %v1962, %v2029
        %v2031 = vpop.f32.mrb[0].mxu0
        %2032 = vdwg.mxu0
        %v2033 = vlaneseq
        %v2034 = vshrl.u32 %v2033, 7
        %v2035 = vsub.s32 7, %v2034
        %v2036 = vrot.slane %v741, %v2035
        %2037 = vmatprep.subr.mxu0 0.0
        %2038 = vmatpush1.msra.mxu0 %v795
        %2039 = vmatprep.subr.mxu0 0.0
        %2040 = vmatpush1.msra.mxu0 %v796
        %2041 = vmatprep.subr.mxu0 0.0
        %2042 = vmatpush1.msra.mxu0 %v797
        %2043 = vmatprep.subr.mxu0 0.0
        %2044 = vmatpush1.msra.mxu0 %v798
        %2045 = vmatprep.subr.mxu0 0.0
        %2046 = vmatpush1.msra.mxu0 0.0
        %2047 = vmatprep.subr.mxu0 0.0
        %2048 = vmatpush1.msra.mxu0 0.0
        %2049 = vmatprep.subr.mxu0 0.0
        %2050 = vmatpush1.msra.mxu0 0.0
        %2051 = vmatprep.subr.mxu0 0.0
        %2052 = vmatpush1.msra.mxu0 0.0
        %2053 = vmatprep.subr.mxu0 0.0
        %2054 = vmatpush1.msra.mxu0 0.0
        %2055 = vmatprep.subr.mxu0 0.0
        %2056 = vmatpush1.msra.mxu0 0.0
        %2057 = vmatprep.subr.mxu0 0.0
        %2058 = vmatpush1.msra.mxu0 0.0
        %2059 = vmatprep.subr.mxu0 0.0
        %2060 = vmatpush1.msra.mxu0 0.0
        %2061 = vmatprep.subr.mxu0 0.0
        %2062 = vmatpush1.msra.mxu0 0.0
        %2063 = vmatprep.subr.mxu0 0.0
        %2064 = vmatpush1.msra.mxu0 0.0
        %2065 = vmatprep.subr.mxu0 0.0
        %2066 = vmatpush1.msra.mxu0 0.0
        %2067 = vmatprep.subr.mxu0 0.0
        %2068 = vmatpush1.msra.mxu0 0.0
        %2069 = vmatprep.subr.mxu0 0.0
        %2070 = vmatpush1.msra.mxu0 0.0
        %2071 = vmatprep.subr.mxu0 0.0
        %2072 = vmatpush1.msra.mxu0 0.0
        %2073 = vmatprep.subr.mxu0 0.0
        %2074 = vmatpush1.msra.mxu0 0.0
        %2075 = vmatprep.subr.mxu0 0.0
        %2076 = vmatpush1.msra.mxu0 0.0
        %2077 = vmatprep.subr.mxu0 0.0
        %2078 = vmatpush1.msra.mxu0 0.0
        %2079 = vmatprep.subr.mxu0 0.0
        %2080 = vmatpush1.msra.mxu0 0.0
        %2081 = vmatprep.subr.mxu0 0.0
        %2082 = vmatpush1.msra.mxu0 0.0
        %2083 = vmatprep.subr.mxu0 0.0
        %2084 = vmatpush1.msra.mxu0 0.0
        %2085 = vmatprep.subr.mxu0 0.0
        %2086 = vmatpush1.msra.mxu0 0.0
        %2087 = vmatprep.subr.mxu0 0.0
        %2088 = vmatpush1.msra.mxu0 0.0
        %2089 = vmatprep.subr.mxu0 0.0
        %2090 = vmatpush1.msra.mxu0 0.0
        %2091 = vmatprep.subr.mxu0 0.0
        %2092 = vmatpush1.msra.mxu0 0.0
        %2093 = vmatprep.subr.mxu0 0.0
        %2094 = vmatpush1.msra.mxu0 0.0
        %2095 = vmatprep.subr.mxu0 0.0
        %2096 = vmatpush1.msra.mxu0 0.0
        %2097 = vmatprep.subr.mxu0 0.0
        %2098 = vmatpush1.msra.mxu0 0.0
        %2099 = vmatprep.subr.mxu0 0.0
        %2100 = vmatpush1.msra.mxu0 0.0
        %2101 = vmatprep.mubr.f32.mxu0 0.0
        %2102 = vmatmul.mubr.f32.gmra.mrb[0].mxu0 %v1719
        %v2103 = vpop.f32.mrb[0].mxu0
        %v2104 = vadd.f32 %v2036, %v2103
        %v2105 = vpop.f32.mrb[0].mxu0
        %2106 = vdwg.mxu0
        %v2107 = vmul.f32 %v1802, %v2104
        %v2108 = vadd.f32 %v2030, %v2107
        %v2109 = vtanh.pop %v2108
        %v2110 = vsub.f32 1.0, %v1958
        %v2111 = vmul.f32 %v2110, %v2109
        %v2112 = vmul.f32 %v1958, %v1141
        %v2113 = vadd.f32 %v2111, %v2112
        %v2114 = vsel %vm815, %v2113, 0.0
        %2115 = vadd.xlane.f32.xlu0 %v2114
        %v2116 = vpop.xlane.xlu0 %2115
        %v2117 = vmul.f32 %v2116, %v828
        %v2118 = vsub.f32 %v2113, %v2117
        %v2119 = vmul.f32 %v2118, %v2118
        %v2120 = vsel %vm815, %v2119, 0.0
        %2121 = vadd.xlane.f32.xlu0 %v2120
        %v2122 = vpop.xlane.xlu0 %2121
        %v2123 = vmul.f32 %v2122, %v828
        %v2124 = vadd.f32 %v2123, 1e-05
        %v2125 = vrsqrt.pop %v2124
        %v2126 = vmul.f32 %v2118, %v2125
        %v2127 = vlaneseq
        %v2128 = vshrl.u32 %v2127, 7
        %v2129 = vsub.s32 0, %v2128
        %v2130 = vrot.slane %v741, %v2129
        %v2131 = vmul.f32 %v2126, %v2130
        %v2132 = vlaneseq
        %v2133 = vshrl.u32 %v2132, 7
        %v2134 = vsub.s32 1, %v2133
        %v2135 = vrot.slane %v741, %v2134
        %v2136 = vadd.f32 %v2131, %v2135
        %v2138 = vlaneseq
        %v2139 = vshrl.u32 %v2138, 7
        %v2140 = vsub.s32 0, %v2139
        %v2141 = vrot.slane %v742, %v2140
        %v2144 = vsel %vm815, %v2136, 0
        %2146 = vmatprep.subr.mxu0 0.0
        %2147 = vmatpush1.msra.mxu0 %v755
        %2148 = vmatprep.subr.mxu0 0.0
        %2149 = vmatpush1.msra.mxu0 %v756
        %2150 = vmatprep.subr.mxu0 0.0
        %2151 = vmatpush1.msra.mxu0 %v757
        %2152 = vmatprep.subr.mxu0 0.0
        %2153 = vmatpush1.msra.mxu0 %v758
        %2154 = vmatprep.subr.mxu0 0.0
        %2155 = vmatpush1.msra.mxu0 0.0
        %2156 = vmatprep.subr.mxu0 0.0
        %2157 = vmatpush1.msra.mxu0 0.0
        %2158 = vmatprep.subr.mxu0 0.0
        %2159 = vmatpush1.msra.mxu0 0.0
        %2160 = vmatprep.subr.mxu0 0.0
        %2161 = vmatpush1.msra.mxu0 0.0
        %2162 = vmatprep.subr.mxu0 0.0
        %2163 = vmatpush1.msra.mxu0 0.0
        %2164 = vmatprep.subr.mxu0 0.0
        %2165 = vmatpush1.msra.mxu0 0.0
        %2166 = vmatprep.subr.mxu0 0.0
        %2167 = vmatpush1.msra.mxu0 0.0
        %2168 = vmatprep.subr.mxu0 0.0
        %2169 = vmatpush1.msra.mxu0 0.0
        %2170 = vmatprep.subr.mxu0 0.0
        %2171 = vmatpush1.msra.mxu0 0.0
        %2172 = vmatprep.subr.mxu0 0.0
        %2173 = vmatpush1.msra.mxu0 0.0
        %2174 = vmatprep.subr.mxu0 0.0
        %2175 = vmatpush1.msra.mxu0 0.0
        %2176 = vmatprep.subr.mxu0 0.0
        %2177 = vmatpush1.msra.mxu0 0.0
        %2178 = vmatprep.subr.mxu0 0.0
        %2179 = vmatpush1.msra.mxu0 0.0
        %2180 = vmatprep.subr.mxu0 0.0
        %2181 = vmatpush1.msra.mxu0 0.0
        %2182 = vmatprep.subr.mxu0 0.0
        %2183 = vmatpush1.msra.mxu0 0.0
        %2184 = vmatprep.subr.mxu0 0.0
        %2185 = vmatpush1.msra.mxu0 0.0
        %2186 = vmatprep.subr.mxu0 0.0
        %2187 = vmatpush1.msra.mxu0 0.0
        %2188 = vmatprep.subr.mxu0 0.0
        %2189 = vmatpush1.msra.mxu0 0.0
        %2190 = vmatprep.subr.mxu0 0.0
        %2191 = vmatpush1.msra.mxu0 0.0
        %2192 = vmatprep.subr.mxu0 0.0
        %2193 = vmatpush1.msra.mxu0 0.0
        %2194 = vmatprep.subr.mxu0 0.0
        %2195 = vmatpush1.msra.mxu0 0.0
        %2196 = vmatprep.subr.mxu0 0.0
        %2197 = vmatpush1.msra.mxu0 0.0
        %2198 = vmatprep.subr.mxu0 0.0
        %2199 = vmatpush1.msra.mxu0 0.0
        %2200 = vmatprep.subr.mxu0 0.0
        %2201 = vmatpush1.msra.mxu0 0.0
        %2202 = vmatprep.subr.mxu0 0.0
        %2203 = vmatpush1.msra.mxu0 0.0
        %2204 = vmatprep.subr.mxu0 0.0
        %2205 = vmatpush1.msra.mxu0 0.0
        %2206 = vmatprep.subr.mxu0 0.0
        %2207 = vmatpush1.msra.mxu0 0.0
        %2208 = vmatprep.subr.mxu0 0.0
        %2209 = vmatpush1.msra.mxu0 0.0
        %2210 = vmatprep.mubr.f32.mxu0 0.0
        %2211 = vmatmul.mubr.f32.gmra.mrb[0].mxu0 %v2144
        %v2212 = vpop.f32.mrb[0].mxu0
        %v2213 = vadd.f32 %v2141, %v2212
        %v2214 = vpop.f32.mrb[0].mxu0
        %2215 = vdwg.mxu0
        %v2216 = vmax.f32 %v2213, 0.0
        %2217 = vmatprep.subr.mxu0 0.0
        %2218 = vmatpush1.msra.mxu0 %v759
        %2219 = vmatprep.subr.mxu0 0.0
        %2220 = vmatpush1.msra.mxu0 %v760
        %2221 = vmatprep.subr.mxu0 0.0
        %2222 = vmatpush1.msra.mxu0 %v761
        %2223 = vmatprep.subr.mxu0 0.0
        %2224 = vmatpush1.msra.mxu0 %v762
        %2225 = vmatprep.subr.mxu0 0.0
        %2226 = vmatpush1.msra.mxu0 %v763
        %2227 = vmatprep.subr.mxu0 0.0
        %2228 = vmatpush1.msra.mxu0 %v764
        %2229 = vmatprep.subr.mxu0 0.0
        %2230 = vmatpush1.msra.mxu0 %v765
        %2231 = vmatprep.subr.mxu0 0.0
        %2232 = vmatpush1.msra.mxu0 %v766
        %2233 = vmatprep.subr.mxu0 0.0
        %2234 = vmatpush1.msra.mxu0 %v767
        %2235 = vmatprep.subr.mxu0 0.0
        %2236 = vmatpush1.msra.mxu0 %v768
        %2237 = vmatprep.subr.mxu0 0.0
        %2238 = vmatpush1.msra.mxu0 %v769
        %2239 = vmatprep.subr.mxu0 0.0
        %2240 = vmatpush1.msra.mxu0 %v770
        %2241 = vmatprep.subr.mxu0 0.0
        %2242 = vmatpush1.msra.mxu0 %v771
        %2243 = vmatprep.subr.mxu0 0.0
        %2244 = vmatpush1.msra.mxu0 %v772
        %2245 = vmatprep.subr.mxu0 0.0
        %2246 = vmatpush1.msra.mxu0 %v773
        %2247 = vmatprep.subr.mxu0 0.0
        %2248 = vmatpush1.msra.mxu0 %v774
        %2249 = vmatprep.subr.mxu0 0.0
        %2250 = vmatpush1.msra.mxu0 0.0
        %2251 = vmatprep.subr.mxu0 0.0
        %2252 = vmatpush1.msra.mxu0 0.0
        %2253 = vmatprep.subr.mxu0 0.0
        %2254 = vmatpush1.msra.mxu0 0.0
        %2255 = vmatprep.subr.mxu0 0.0
        %2256 = vmatpush1.msra.mxu0 0.0
        %2257 = vmatprep.subr.mxu0 0.0
        %2258 = vmatpush1.msra.mxu0 0.0
        %2259 = vmatprep.subr.mxu0 0.0
        %2260 = vmatpush1.msra.mxu0 0.0
        %2261 = vmatprep.subr.mxu0 0.0
        %2262 = vmatpush1.msra.mxu0 0.0
        %2263 = vmatprep.subr.mxu0 0.0
        %2264 = vmatpush1.msra.mxu0 0.0
        %2265 = vmatprep.subr.mxu0 0.0
        %2266 = vmatpush1.msra.mxu0 0.0
        %2267 = vmatprep.subr.mxu0 0.0
        %2268 = vmatpush1.msra.mxu0 0.0
        %2269 = vmatprep.subr.mxu0 0.0
        %2270 = vmatpush1.msra.mxu0 0.0
        %2271 = vmatprep.subr.mxu0 0.0
        %2272 = vmatpush1.msra.mxu0 0.0
        %2273 = vmatprep.subr.mxu0 0.0
        %2274 = vmatpush1.msra.mxu0 0.0
        %2275 = vmatprep.subr.mxu0 0.0
        %2276 = vmatpush1.msra.mxu0 0.0
        %2277 = vmatprep.subr.mxu0 0.0
        %2278 = vmatpush1.msra.mxu0 0.0
        %2279 = vmatprep.subr.mxu0 0.0
        %2280 = vmatpush1.msra.mxu0 0.0
        %2281 = vmatprep.mubr.f32.mxu0 0.0
        %2282 = vmatmul.mubr.f32.gmra.mrb[0].mxu0 %v2216
        %v2283 = vpop.f32.mrb[0].mxu0
        %v2284 = vadd.f32 0.0, %v2283
        %v2285 = vpop.f32.mrb[0].mxu0
        %2286 = vdwg.mxu0
        %v2287 = vadd.f32 %v2113, %v2284
        %v2288 = vlaneseq
        %v2289 = vshrl.u32 %v2288, 7
        %v2290 = vsub.s32 3, %v2289
        %v2291 = vrot.slane %v740, %v2290
        %v2292 = vadd.f32 %v2287, %v2291
        %v2293 = vsel %vm815, %v2292, 0.0
        %2294 = vadd.xlane.f32.xlu0 %v2293
        %v2295 = vpop.xlane.xlu0 %2294
        %v2296 = vmul.f32 %v2295, %v828
        %v2297 = vsub.f32 %v2292, %v2296
        %v2298 = vmul.f32 %v2297, %v2297
        %v2299 = vsel %vm815, %v2298, 0.0
        %2300 = vadd.xlane.f32.xlu0 %v2299
        %v2301 = vpop.xlane.xlu0 %2300
        %v2302 = vmul.f32 %v2301, %v828
        %v2303 = vadd.f32 %v2302, 1e-05
        %v2304 = vrsqrt.pop %v2303
        %v2305 = vmul.f32 %v2297, %v2304
        %v2306 = vmul.f32 %v2305, %v1200
        %v2307 = vadd.f32 %v2306, %v1209
        %v2309 = vsel %vm815, %v2307, 0
        %2311 = vmatprep.subr.mxu0 0.0
        %2312 = vmatpush1.msra.mxu0 %v743
        %2313 = vmatprep.subr.mxu0 0.0
        %2314 = vmatpush1.msra.mxu0 %v744
        %2315 = vmatprep.subr.mxu0 0.0
        %2316 = vmatpush1.msra.mxu0 %v745
        %2317 = vmatprep.subr.mxu0 0.0
        %2318 = vmatpush1.msra.mxu0 %v746
        %2319 = vmatprep.subr.mxu0 0.0
        %2320 = vmatpush1.msra.mxu0 0.0
        %2321 = vmatprep.subr.mxu0 0.0
        %2322 = vmatpush1.msra.mxu0 0.0
        %2323 = vmatprep.subr.mxu0 0.0
        %2324 = vmatpush1.msra.mxu0 0.0
        %2325 = vmatprep.subr.mxu0 0.0
        %2326 = vmatpush1.msra.mxu0 0.0
        %2327 = vmatprep.subr.mxu0 0.0
        %2328 = vmatpush1.msra.mxu0 0.0
        %2329 = vmatprep.subr.mxu0 0.0
        %2330 = vmatpush1.msra.mxu0 0.0
        %2331 = vmatprep.subr.mxu0 0.0
        %2332 = vmatpush1.msra.mxu0 0.0
        %2333 = vmatprep.subr.mxu0 0.0
        %2334 = vmatpush1.msra.mxu0 0.0
        %2335 = vmatprep.subr.mxu0 0.0
        %2336 = vmatpush1.msra.mxu0 0.0
        %2337 = vmatprep.subr.mxu0 0.0
        %2338 = vmatpush1.msra.mxu0 0.0
        %2339 = vmatprep.subr.mxu0 0.0
        %2340 = vmatpush1.msra.mxu0 0.0
        %2341 = vmatprep.subr.mxu0 0.0
        %2342 = vmatpush1.msra.mxu0 0.0
        %2343 = vmatprep.subr.mxu0 0.0
        %2344 = vmatpush1.msra.mxu0 0.0
        %2345 = vmatprep.subr.mxu0 0.0
        %2346 = vmatpush1.msra.mxu0 0.0
        %2347 = vmatprep.subr.mxu0 0.0
        %2348 = vmatpush1.msra.mxu0 0.0
        %2349 = vmatprep.subr.mxu0 0.0
        %2350 = vmatpush1.msra.mxu0 0.0
        %2351 = vmatprep.subr.mxu0 0.0
        %2352 = vmatpush1.msra.mxu0 0.0
        %2353 = vmatprep.subr.mxu0 0.0
        %2354 = vmatpush1.msra.mxu0 0.0
        %2355 = vmatprep.subr.mxu0 0.0
        %2356 = vmatpush1.msra.mxu0 0.0
        %2357 = vmatprep.subr.mxu0 0.0
        %2358 = vmatpush1.msra.mxu0 0.0
        %2359 = vmatprep.subr.mxu0 0.0
        %2360 = vmatpush1.msra.mxu0 0.0
        %2361 = vmatprep.subr.mxu0 0.0
        %2362 = vmatpush1.msra.mxu0 0.0
        %2363 = vmatprep.subr.mxu0 0.0
        %2364 = vmatpush1.msra.mxu0 0.0
        %2365 = vmatprep.subr.mxu0 0.0
        %2366 = vmatpush1.msra.mxu0 0.0
        %2367 = vmatprep.subr.mxu0 0.0
        %2368 = vmatpush1.msra.mxu0 0.0
        %2369 = vmatprep.subr.mxu0 0.0
        %2370 = vmatpush1.msra.mxu0 0.0
        %2371 = vmatprep.subr.mxu0 0.0
        %2372 = vmatpush1.msra.mxu0 0.0
        %2373 = vmatprep.subr.mxu0 0.0
        %2374 = vmatpush1.msra.mxu0 0.0
        %2375 = vmatprep.mubr.f32.mxu0 0.0
        %2376 = vmatmul.mubr.f32.gmra.mrb[0].mxu0 %v2309
        %v2377 = vpop.f32.mrb[0].mxu0
        %v2378 = vadd.f32 %v1218, %v2377
        %v2379 = vpop.f32.mrb[0].mxu0
        %2380 = vdwg.mxu0
        %v2382 = vcombine.high %v2378, %v2378
        %v2383 = vsel %vm815, %v2378, 0
        %2385 = vmatprep.subr.mxu0 0.0
        %2386 = vmatpush1.msra.mxu0 %v1091
        %2387 = vmatprep.subr.mxu0 0.0
        %2388 = vmatpush1.msra.mxu0 %v1092
        %2389 = vmatprep.subr.mxu0 0.0
        %2390 = vmatpush1.msra.mxu0 %v1093
        %2391 = vmatprep.subr.mxu0 0.0
        %2392 = vmatpush1.msra.mxu0 %v1094
        %2393 = vmatprep.subr.mxu0 0.0
        %2394 = vmatpush1.msra.mxu0 0.0
        %2395 = vmatprep.subr.mxu0 0.0
        %2396 = vmatpush1.msra.mxu0 0.0
        %2397 = vmatprep.subr.mxu0 0.0
        %2398 = vmatpush1.msra.mxu0 0.0
        %2399 = vmatprep.subr.mxu0 0.0
        %2400 = vmatpush1.msra.mxu0 0.0
        %2401 = vmatprep.subr.mxu0 0.0
        %2402 = vmatpush1.msra.mxu0 0.0
        %2403 = vmatprep.subr.mxu0 0.0
        %2404 = vmatpush1.msra.mxu0 0.0
        %2405 = vmatprep.subr.mxu0 0.0
        %2406 = vmatpush1.msra.mxu0 0.0
        %2407 = vmatprep.subr.mxu0 0.0
        %2408 = vmatpush1.msra.mxu0 0.0
        %2409 = vmatprep.subr.mxu0 0.0
        %2410 = vmatpush1.msra.mxu0 0.0
        %2411 = vmatprep.subr.mxu0 0.0
        %2412 = vmatpush1.msra.mxu0 0.0
        %2413 = vmatprep.subr.mxu0 0.0
        %2414 = vmatpush1.msra.mxu0 0.0
        %2415 = vmatprep.subr.mxu0 0.0
        %2416 = vmatpush1.msra.mxu0 0.0
        %2417 = vmatprep.subr.mxu0 0.0
        %2418 = vmatpush1.msra.mxu0 0.0
        %2419 = vmatprep.subr.mxu0 0.0
        %2420 = vmatpush1.msra.mxu0 0.0
        %2421 = vmatprep.subr.mxu0 0.0
        %2422 = vmatpush1.msra.mxu0 0.0
        %2423 = vmatprep.subr.mxu0 0.0
        %2424 = vmatpush1.msra.mxu0 0.0
        %2425 = vmatprep.subr.mxu0 0.0
        %2426 = vmatpush1.msra.mxu0 0.0
        %2427 = vmatprep.subr.mxu0 0.0
        %2428 = vmatpush1.msra.mxu0 0.0
        %2429 = vmatprep.subr.mxu0 0.0
        %2430 = vmatpush1.msra.mxu0 0.0
        %2431 = vmatprep.subr.mxu0 0.0
        %2432 = vmatpush1.msra.mxu0 0.0
        %2433 = vmatprep.subr.mxu0 0.0
        %2434 = vmatpush1.msra.mxu0 0.0
        %2435 = vmatprep.subr.mxu0 0.0
        %2436 = vmatpush1.msra.mxu0 0.0
        %2437 = vmatprep.subr.mxu0 0.0
        %2438 = vmatpush1.msra.mxu0 0.0
        %2439 = vmatprep.subr.mxu0 0.0
        %2440 = vmatpush1.msra.mxu0 0.0
        %2441 = vmatprep.subr.mxu0 0.0
        %2442 = vmatpush1.msra.mxu0 0.0
        %2443 = vmatprep.subr.mxu0 0.0
        %2444 = vmatpush1.msra.mxu0 0.0
        %2445 = vmatprep.subr.mxu0 0.0
        %2446 = vmatpush1.msra.mxu0 0.0
        %2447 = vmatprep.subr.mxu0 0.0
        %2448 = vmatpush1.msra.mxu0 0.0
        %2449 = vmatprep.mubr.f32.mxu0 0.0
        %2450 = vmatmul.mubr.f32.gmra.mrb[0].mxu0 %v2383
        %v2451 = vpop.f32.mrb[0].mxu0
        %v2452 = vadd.f32 0.0, %v2451
        %v2453 = vpop.f32.mrb[0].mxu0
        %2454 = vdwg.mxu0
        %v2455 = vsel %vm815, %v2382, 0
        %2457 = vmatprep.subr.mxu0 0.0
        %2458 = vmatpush1.msra.mxu0 %v1123
        %2459 = vmatprep.subr.mxu0 0.0
        %2460 = vmatpush1.msra.mxu0 %v1124
        %2461 = vmatprep.subr.mxu0 0.0
        %2462 = vmatpush1.msra.mxu0 %v1125
        %2463 = vmatprep.subr.mxu0 0.0
        %2464 = vmatpush1.msra.mxu0 %v1126
        %2465 = vmatprep.subr.mxu0 0.0
        %2466 = vmatpush1.msra.mxu0 0.0
        %2467 = vmatprep.subr.mxu0 0.0
        %2468 = vmatpush1.msra.mxu0 0.0
        %2469 = vmatprep.subr.mxu0 0.0
        %2470 = vmatpush1.msra.mxu0 0.0
        %2471 = vmatprep.subr.mxu0 0.0
        %2472 = vmatpush1.msra.mxu0 0.0
        %2473 = vmatprep.subr.mxu0 0.0
        %2474 = vmatpush1.msra.mxu0 0.0
        %2475 = vmatprep.subr.mxu0 0.0
        %2476 = vmatpush1.msra.mxu0 0.0
        %2477 = vmatprep.subr.mxu0 0.0
        %2478 = vmatpush1.msra.mxu0 0.0
        %2479 = vmatprep.subr.mxu0 0.0
        %2480 = vmatpush1.msra.mxu0 0.0
        %2481 = vmatprep.subr.mxu0 0.0
        %2482 = vmatpush1.msra.mxu0 0.0
        %2483 = vmatprep.subr.mxu0 0.0
        %2484 = vmatpush1.msra.mxu0 0.0
        %2485 = vmatprep.subr.mxu0 0.0
        %2486 = vmatpush1.msra.mxu0 0.0
        %2487 = vmatprep.subr.mxu0 0.0
        %2488 = vmatpush1.msra.mxu0 0.0
        %2489 = vmatprep.subr.mxu0 0.0
        %2490 = vmatpush1.msra.mxu0 0.0
        %2491 = vmatprep.subr.mxu0 0.0
        %2492 = vmatpush1.msra.mxu0 0.0
        %2493 = vmatprep.subr.mxu0 0.0
        %2494 = vmatpush1.msra.mxu0 0.0
        %2495 = vmatprep.subr.mxu0 0.0
        %2496 = vmatpush1.msra.mxu0 0.0
        %2497 = vmatprep.subr.mxu0 0.0
        %2498 = vmatpush1.msra.mxu0 0.0
        %2499 = vmatprep.subr.mxu0 0.0
        %2500 = vmatpush1.msra.mxu0 0.0
        %2501 = vmatprep.subr.mxu0 0.0
        %2502 = vmatpush1.msra.mxu0 0.0
        %2503 = vmatprep.subr.mxu0 0.0
        %2504 = vmatpush1.msra.mxu0 0.0
        %2505 = vmatprep.subr.mxu0 0.0
        %2506 = vmatpush1.msra.mxu0 0.0
        %2507 = vmatprep.subr.mxu0 0.0
        %2508 = vmatpush1.msra.mxu0 0.0
        %2509 = vmatprep.subr.mxu0 0.0
        %2510 = vmatpush1.msra.mxu0 0.0
        %2511 = vmatprep.subr.mxu0 0.0
        %2512 = vmatpush1.msra.mxu0 0.0
        %2513 = vmatprep.subr.mxu0 0.0
        %2514 = vmatpush1.msra.mxu0 0.0
        %2515 = vmatprep.subr.mxu0 0.0
        %2516 = vmatpush1.msra.mxu0 0.0
        %2517 = vmatprep.subr.mxu0 0.0
        %2518 = vmatpush1.msra.mxu0 0.0
        %2519 = vmatprep.subr.mxu0 0.0
        %2520 = vmatpush1.msra.mxu0 0.0
        %2521 = vmatprep.mubr.f32.mxu0 0.0
        %2522 = vmatmul.mubr.f32.gmra.mrb[0].mxu0 %v2455
        %v2523 = vpop.f32.mrb[0].mxu0
        %v2524 = vadd.f32 0.0, %v2523
        %v2525 = vpop.f32.mrb[0].mxu0
        %2526 = vdwg.mxu0
        %v2527 = vsel %vm1440, %v2452, -inf
        %v2528 = vrot.slane %v2527, 4
        %v2529 = vmax.f32 %v2527, %v2528
        %v2530 = vrot.slane %v2529, 2
        %v2531 = vmax.f32 %v2529, %v2530
        %v2532 = vrot.slane %v2531, 1
        %v2533 = vmax.f32 %v2531, %v2532
        %v2534 = vsel %vm1440, %v2524, -inf
        %v2535 = vrot.slane %v2534, 4
        %v2536 = vmax.f32 %v2534, %v2535
        %v2537 = vrot.slane %v2536, 2
        %v2538 = vmax.f32 %v2536, %v2537
        %v2539 = vrot.slane %v2538, 1
        %v2540 = vmax.f32 %v2538, %v2539
        %v2541 = vsub.f32 %v2452, %v2533
        %v2542 = vsub.f32 %v2524, %v2540
        %v2543 = vmul.f32 %v2541, 1.442695
        %v2544 = vpow.pop %v2543
        %v2545 = vmul.f32 %v2542, 1.442695
        %v2546 = vpow.pop %v2545
        %v2547 = vsel %vm1440, %v2544, 0.0
        %v2548 = vrot.slane %v2547, 4
        %v2549 = vadd.f32 %v2547, %v2548
        %v2550 = vrot.slane %v2549, 2
        %v2551 = vadd.f32 %v2549, %v2550
        %v2552 = vrot.slane %v2551, 1
        %v2553 = vadd.f32 %v2551, %v2552
        %v2554 = vsel %vm1440, %v2546, 0.0
        %v2555 = vrot.slane %v2554, 4
        %v2556 = vadd.f32 %v2554, %v2555
        %v2557 = vrot.slane %v2556, 2
        %v2558 = vadd.f32 %v2556, %v2557
        %v2559 = vrot.slane %v2558, 1
        %v2560 = vadd.f32 %v2558, %v2559
        %v2561 = vrcp.pop %v2553
        %v2562 = vrcp.pop %v2560
        %v2563 = vmul.f32 %v2544, %v2561
        %v2564 = vmul.f32 %v2546, %v2562
        %v2565 = vadd.f32 %v2563, 1e-08
        %v2566 = vadd.f32 %v2564, 1e-08
        %v2567 = vsel %vm813, 0.0, %v2565
        %v2568 = vsel %vm814, 0.0, %v2566
        %v2569 = vsel %vm1440, %v2567, 0.0
        %2570 = vadd.xlane.f32.xlu0 %v2569
        %v2571 = vpop.xlane.xlu0 %2570
        %v2572 = vsel %vm1440, %v2568, 0.0
        %2573 = vadd.xlane.f32.xlu0 %v2572
        %v2574 = vpop.xlane.xlu0 %2573
        %v2575 = vrcp.pop %v2571
        %v2576 = vmul.f32 %v2567, %v2575
        %v2577 = vrcp.pop %v2574
        %v2578 = vmul.f32 %v2568, %v2577
        %v2580 = vsel %vm1493, %v2576, 0
        %2582 = vmatprep.subr.mxu0 0.0
        %2583 = vmatpush1.msra.mxu0 %v1057
        %2584 = vmatprep.subr.mxu0 0.0
        %2585 = vmatpush1.msra.mxu0 %v1062
        %2586 = vmatprep.subr.mxu0 0.0
        %2587 = vmatpush1.msra.mxu0 0.0
        %2588 = vmatprep.subr.mxu0 0.0
        %2589 = vmatpush1.msra.mxu0 0.0
        %2590 = vmatprep.subr.mxu0 0.0
        %2591 = vmatpush1.msra.mxu0 0.0
        %2592 = vmatprep.subr.mxu0 0.0
        %2593 = vmatpush1.msra.mxu0 0.0
        %2594 = vmatprep.subr.mxu0 0.0
        %2595 = vmatpush1.msra.mxu0 0.0
        %2596 = vmatprep.subr.mxu0 0.0
        %2597 = vmatpush1.msra.mxu0 0.0
        %2598 = vmatprep.subr.mxu0 0.0
        %2599 = vmatpush1.msra.mxu0 0.0
        %2600 = vmatprep.subr.mxu0 0.0
        %2601 = vmatpush1.msra.mxu0 0.0
        %2602 = vmatprep.subr.mxu0 0.0
        %2603 = vmatpush1.msra.mxu0 0.0
        %2604 = vmatprep.subr.mxu0 0.0
        %2605 = vmatpush1.msra.mxu0 0.0
        %2606 = vmatprep.subr.mxu0 0.0
        %2607 = vmatpush1.msra.mxu0 0.0
        %2608 = vmatprep.subr.mxu0 0.0
        %2609 = vmatpush1.msra.mxu0 0.0
        %2610 = vmatprep.subr.mxu0 0.0
        %2611 = vmatpush1.msra.mxu0 0.0
        %2612 = vmatprep.subr.mxu0 0.0
        %2613 = vmatpush1.msra.mxu0 0.0
        %2614 = vmatprep.subr.mxu0 0.0
        %2615 = vmatpush1.msra.mxu0 0.0
        %2616 = vmatprep.subr.mxu0 0.0
        %2617 = vmatpush1.msra.mxu0 0.0
        %2618 = vmatprep.subr.mxu0 0.0
        %2619 = vmatpush1.msra.mxu0 0.0
        %2620 = vmatprep.subr.mxu0 0.0
        %2621 = vmatpush1.msra.mxu0 0.0
        %2622 = vmatprep.subr.mxu0 0.0
        %2623 = vmatpush1.msra.mxu0 0.0
        %2624 = vmatprep.subr.mxu0 0.0
        %2625 = vmatpush1.msra.mxu0 0.0
        %2626 = vmatprep.subr.mxu0 0.0
        %2627 = vmatpush1.msra.mxu0 0.0
        %2628 = vmatprep.subr.mxu0 0.0
        %2629 = vmatpush1.msra.mxu0 0.0
        %2630 = vmatprep.subr.mxu0 0.0
        %2631 = vmatpush1.msra.mxu0 0.0
        %2632 = vmatprep.subr.mxu0 0.0
        %2633 = vmatpush1.msra.mxu0 0.0
        %2634 = vmatprep.subr.mxu0 0.0
        %2635 = vmatpush1.msra.mxu0 0.0
        %2636 = vmatprep.subr.mxu0 0.0
        %2637 = vmatpush1.msra.mxu0 0.0
        %2638 = vmatprep.subr.mxu0 0.0
        %2639 = vmatpush1.msra.mxu0 0.0
        %2640 = vmatprep.subr.mxu0 0.0
        %2641 = vmatpush1.msra.mxu0 0.0
        %2642 = vmatprep.subr.mxu0 0.0
        %2643 = vmatpush1.msra.mxu0 0.0
        %2644 = vmatprep.subr.mxu0 0.0
        %2645 = vmatpush1.msra.mxu0 0.0
        %2646 = vmatprep.mubr.f32.mxu0 0.0
        %2647 = vmatmul.mubr.f32.gmra.mrb[0].mxu0 %v2580
        %v2648 = vpop.f32.mrb[0].mxu0
        %v2649 = vadd.f32 0.0, %v2648
        %v2650 = vpop.f32.mrb[0].mxu0
        %2651 = vdwg.mxu0
        %v2653 = vsel %vm1493, %v2578, 0
        %2655 = vmatprep.subr.mxu0 0.0
        %2656 = vmatpush1.msra.mxu0 %v1067
        %2657 = vmatprep.subr.mxu0 0.0
        %2658 = vmatpush1.msra.mxu0 %v1072
        %2659 = vmatprep.subr.mxu0 0.0
        %2660 = vmatpush1.msra.mxu0 0.0
        %2661 = vmatprep.subr.mxu0 0.0
        %2662 = vmatpush1.msra.mxu0 0.0
        %2663 = vmatprep.subr.mxu0 0.0
        %2664 = vmatpush1.msra.mxu0 0.0
        %2665 = vmatprep.subr.mxu0 0.0
        %2666 = vmatpush1.msra.mxu0 0.0
        %2667 = vmatprep.subr.mxu0 0.0
        %2668 = vmatpush1.msra.mxu0 0.0
        %2669 = vmatprep.subr.mxu0 0.0
        %2670 = vmatpush1.msra.mxu0 0.0
        %2671 = vmatprep.subr.mxu0 0.0
        %2672 = vmatpush1.msra.mxu0 0.0
        %2673 = vmatprep.subr.mxu0 0.0
        %2674 = vmatpush1.msra.mxu0 0.0
        %2675 = vmatprep.subr.mxu0 0.0
        %2676 = vmatpush1.msra.mxu0 0.0
        %2677 = vmatprep.subr.mxu0 0.0
        %2678 = vmatpush1.msra.mxu0 0.0
        %2679 = vmatprep.subr.mxu0 0.0
        %2680 = vmatpush1.msra.mxu0 0.0
        %2681 = vmatprep.subr.mxu0 0.0
        %2682 = vmatpush1.msra.mxu0 0.0
        %2683 = vmatprep.subr.mxu0 0.0
        %2684 = vmatpush1.msra.mxu0 0.0
        %2685 = vmatprep.subr.mxu0 0.0
        %2686 = vmatpush1.msra.mxu0 0.0
        %2687 = vmatprep.subr.mxu0 0.0
        %2688 = vmatpush1.msra.mxu0 0.0
        %2689 = vmatprep.subr.mxu0 0.0
        %2690 = vmatpush1.msra.mxu0 0.0
        %2691 = vmatprep.subr.mxu0 0.0
        %2692 = vmatpush1.msra.mxu0 0.0
        %2693 = vmatprep.subr.mxu0 0.0
        %2694 = vmatpush1.msra.mxu0 0.0
        %2695 = vmatprep.subr.mxu0 0.0
        %2696 = vmatpush1.msra.mxu0 0.0
        %2697 = vmatprep.subr.mxu0 0.0
        %2698 = vmatpush1.msra.mxu0 0.0
        %2699 = vmatprep.subr.mxu0 0.0
        %2700 = vmatpush1.msra.mxu0 0.0
        %2701 = vmatprep.subr.mxu0 0.0
        %2702 = vmatpush1.msra.mxu0 0.0
        %2703 = vmatprep.subr.mxu0 0.0
        %2704 = vmatpush1.msra.mxu0 0.0
        %2705 = vmatprep.subr.mxu0 0.0
        %2706 = vmatpush1.msra.mxu0 0.0
        %2707 = vmatprep.subr.mxu0 0.0
        %2708 = vmatpush1.msra.mxu0 0.0
        %2709 = vmatprep.subr.mxu0 0.0
        %2710 = vmatpush1.msra.mxu0 0.0
        %2711 = vmatprep.subr.mxu0 0.0
        %2712 = vmatpush1.msra.mxu0 0.0
        %2713 = vmatprep.subr.mxu0 0.0
        %2714 = vmatpush1.msra.mxu0 0.0
        %2715 = vmatprep.subr.mxu0 0.0
        %2716 = vmatpush1.msra.mxu0 0.0
        %2717 = vmatprep.subr.mxu0 0.0
        %2718 = vmatpush1.msra.mxu0 0.0
        %2719 = vmatprep.mubr.f32.mxu0 0.0
        %2720 = vmatmul.mubr.f32.gmra.mrb[0].mxu0 %v2653
        %v2721 = vpop.f32.mrb[0].mxu0
        %v2722 = vadd.f32 0.0, %v2721
        %v2723 = vpop.f32.mrb[0].mxu0
        %2724 = vdwg.mxu0
        %v2727 = vcombine.low %v2649, %v2722
        %v2728 = vsel %vm815, %v2727, 0
        %2730 = vmatprep.subr.mxu0 0.0
        %2731 = vmatpush1.msra.mxu0 %v775
        %2732 = vmatprep.subr.mxu0 0.0
        %2733 = vmatpush1.msra.mxu0 %v776
        %2734 = vmatprep.subr.mxu0 0.0
        %2735 = vmatpush1.msra.mxu0 %v777
        %2736 = vmatprep.subr.mxu0 0.0
        %2737 = vmatpush1.msra.mxu0 %v778
        %2738 = vmatprep.subr.mxu0 0.0
        %2739 = vmatpush1.msra.mxu0 0.0
        %2740 = vmatprep.subr.mxu0 0.0
        %2741 = vmatpush1.msra.mxu0 0.0
        %2742 = vmatprep.subr.mxu0 0.0
        %2743 = vmatpush1.msra.mxu0 0.0
        %2744 = vmatprep.subr.mxu0 0.0
        %2745 = vmatpush1.msra.mxu0 0.0
        %2746 = vmatprep.subr.mxu0 0.0
        %2747 = vmatpush1.msra.mxu0 0.0
        %2748 = vmatprep.subr.mxu0 0.0
        %2749 = vmatpush1.msra.mxu0 0.0
        %2750 = vmatprep.subr.mxu0 0.0
        %2751 = vmatpush1.msra.mxu0 0.0
        %2752 = vmatprep.subr.mxu0 0.0
        %2753 = vmatpush1.msra.mxu0 0.0
        %2754 = vmatprep.subr.mxu0 0.0
        %2755 = vmatpush1.msra.mxu0 0.0
        %2756 = vmatprep.subr.mxu0 0.0
        %2757 = vmatpush1.msra.mxu0 0.0
        %2758 = vmatprep.subr.mxu0 0.0
        %2759 = vmatpush1.msra.mxu0 0.0
        %2760 = vmatprep.subr.mxu0 0.0
        %2761 = vmatpush1.msra.mxu0 0.0
        %2762 = vmatprep.subr.mxu0 0.0
        %2763 = vmatpush1.msra.mxu0 0.0
        %2764 = vmatprep.subr.mxu0 0.0
        %2765 = vmatpush1.msra.mxu0 0.0
        %2766 = vmatprep.subr.mxu0 0.0
        %2767 = vmatpush1.msra.mxu0 0.0
        %2768 = vmatprep.subr.mxu0 0.0
        %2769 = vmatpush1.msra.mxu0 0.0
        %2770 = vmatprep.subr.mxu0 0.0
        %2771 = vmatpush1.msra.mxu0 0.0
        %2772 = vmatprep.subr.mxu0 0.0
        %2773 = vmatpush1.msra.mxu0 0.0
        %2774 = vmatprep.subr.mxu0 0.0
        %2775 = vmatpush1.msra.mxu0 0.0
        %2776 = vmatprep.subr.mxu0 0.0
        %2777 = vmatpush1.msra.mxu0 0.0
        %2778 = vmatprep.subr.mxu0 0.0
        %2779 = vmatpush1.msra.mxu0 0.0
        %2780 = vmatprep.subr.mxu0 0.0
        %2781 = vmatpush1.msra.mxu0 0.0
        %2782 = vmatprep.subr.mxu0 0.0
        %2783 = vmatpush1.msra.mxu0 0.0
        %2784 = vmatprep.subr.mxu0 0.0
        %2785 = vmatpush1.msra.mxu0 0.0
        %2786 = vmatprep.subr.mxu0 0.0
        %2787 = vmatpush1.msra.mxu0 0.0
        %2788 = vmatprep.subr.mxu0 0.0
        %2789 = vmatpush1.msra.mxu0 0.0
        %2790 = vmatprep.subr.mxu0 0.0
        %2791 = vmatpush1.msra.mxu0 0.0
        %2792 = vmatprep.subr.mxu0 0.0
        %2793 = vmatpush1.msra.mxu0 0.0
        %2794 = vmatprep.mubr.f32.mxu0 0.0
        %2795 = vmatmul.mubr.f32.gmra.mrb[0].mxu0 %v2728
        %v2796 = vpop.f32.mrb[0].mxu0
        %v2797 = vadd.f32 %v1643, %v2796
        %v2798 = vpop.f32.mrb[0].mxu0
        %2799 = vdwg.mxu0
        %v2801 = vsel %vm815, %v2292, 0
        %2803 = vmatprep.subr.mxu0 0.0
        %2804 = vmatpush1.msra.mxu0 %v787
        %2805 = vmatprep.subr.mxu0 0.0
        %2806 = vmatpush1.msra.mxu0 %v788
        %2807 = vmatprep.subr.mxu0 0.0
        %2808 = vmatpush1.msra.mxu0 %v789
        %2809 = vmatprep.subr.mxu0 0.0
        %2810 = vmatpush1.msra.mxu0 %v790
        %2811 = vmatprep.subr.mxu0 0.0
        %2812 = vmatpush1.msra.mxu0 0.0
        %2813 = vmatprep.subr.mxu0 0.0
        %2814 = vmatpush1.msra.mxu0 0.0
        %2815 = vmatprep.subr.mxu0 0.0
        %2816 = vmatpush1.msra.mxu0 0.0
        %2817 = vmatprep.subr.mxu0 0.0
        %2818 = vmatpush1.msra.mxu0 0.0
        %2819 = vmatprep.subr.mxu0 0.0
        %2820 = vmatpush1.msra.mxu0 0.0
        %2821 = vmatprep.subr.mxu0 0.0
        %2822 = vmatpush1.msra.mxu0 0.0
        %2823 = vmatprep.subr.mxu0 0.0
        %2824 = vmatpush1.msra.mxu0 0.0
        %2825 = vmatprep.subr.mxu0 0.0
        %2826 = vmatpush1.msra.mxu0 0.0
        %2827 = vmatprep.subr.mxu0 0.0
        %2828 = vmatpush1.msra.mxu0 0.0
        %2829 = vmatprep.subr.mxu0 0.0
        %2830 = vmatpush1.msra.mxu0 0.0
        %2831 = vmatprep.subr.mxu0 0.0
        %2832 = vmatpush1.msra.mxu0 0.0
        %2833 = vmatprep.subr.mxu0 0.0
        %2834 = vmatpush1.msra.mxu0 0.0
        %2835 = vmatprep.subr.mxu0 0.0
        %2836 = vmatpush1.msra.mxu0 0.0
        %2837 = vmatprep.subr.mxu0 0.0
        %2838 = vmatpush1.msra.mxu0 0.0
        %2839 = vmatprep.subr.mxu0 0.0
        %2840 = vmatpush1.msra.mxu0 0.0
        %2841 = vmatprep.subr.mxu0 0.0
        %2842 = vmatpush1.msra.mxu0 0.0
        %2843 = vmatprep.subr.mxu0 0.0
        %2844 = vmatpush1.msra.mxu0 0.0
        %2845 = vmatprep.subr.mxu0 0.0
        %2846 = vmatpush1.msra.mxu0 0.0
        %2847 = vmatprep.subr.mxu0 0.0
        %2848 = vmatpush1.msra.mxu0 0.0
        %2849 = vmatprep.subr.mxu0 0.0
        %2850 = vmatpush1.msra.mxu0 0.0
        %2851 = vmatprep.subr.mxu0 0.0
        %2852 = vmatpush1.msra.mxu0 0.0
        %2853 = vmatprep.subr.mxu0 0.0
        %2854 = vmatpush1.msra.mxu0 0.0
        %2855 = vmatprep.subr.mxu0 0.0
        %2856 = vmatpush1.msra.mxu0 0.0
        %2857 = vmatprep.subr.mxu0 0.0
        %2858 = vmatpush1.msra.mxu0 0.0
        %2859 = vmatprep.subr.mxu0 0.0
        %2860 = vmatpush1.msra.mxu0 0.0
        %2861 = vmatprep.subr.mxu0 0.0
        %2862 = vmatpush1.msra.mxu0 0.0
        %2863 = vmatprep.subr.mxu0 0.0
        %2864 = vmatpush1.msra.mxu0 0.0
        %2865 = vmatprep.subr.mxu0 0.0
        %2866 = vmatpush1.msra.mxu0 0.0
        %2867 = vmatprep.mubr.f32.mxu0 0.0
        %2868 = vmatmul.mubr.f32.gmra.mrb[0].mxu0 %v2801
        %v2869 = vpop.f32.mrb[0].mxu0
        %v2870 = vadd.f32 0.0, %v2869
        %v2871 = vpop.f32.mrb[0].mxu0
        %2872 = vdwg.mxu0
        %v2873 = vadd.f32 %v2797, %v2870
        %v2874 = vadd.f32 %v2873, %v1795
        %v2875 = vxor.u32 %v2874, 2147483648
        %v2876 = vmul.f32 %v2875, 1.442695
        %v2877 = vpow.pop %v2876
        %v2878 = vadd.f32 %v2877, 1.0
        %v2879 = vrcp.pop %v2878
        %v2880 = vmul.f32 1.0, %v2879
        %2881 = vmatprep.subr.mxu0 0.0
        %2882 = vmatpush1.msra.mxu0 %v779
        %2883 = vmatprep.subr.mxu0 0.0
        %2884 = vmatpush1.msra.mxu0 %v780
        %2885 = vmatprep.subr.mxu0 0.0
        %2886 = vmatpush1.msra.mxu0 %v781
        %2887 = vmatprep.subr.mxu0 0.0
        %2888 = vmatpush1.msra.mxu0 %v782
        %2889 = vmatprep.subr.mxu0 0.0
        %2890 = vmatpush1.msra.mxu0 0.0
        %2891 = vmatprep.subr.mxu0 0.0
        %2892 = vmatpush1.msra.mxu0 0.0
        %2893 = vmatprep.subr.mxu0 0.0
        %2894 = vmatpush1.msra.mxu0 0.0
        %2895 = vmatprep.subr.mxu0 0.0
        %2896 = vmatpush1.msra.mxu0 0.0
        %2897 = vmatprep.subr.mxu0 0.0
        %2898 = vmatpush1.msra.mxu0 0.0
        %2899 = vmatprep.subr.mxu0 0.0
        %2900 = vmatpush1.msra.mxu0 0.0
        %2901 = vmatprep.subr.mxu0 0.0
        %2902 = vmatpush1.msra.mxu0 0.0
        %2903 = vmatprep.subr.mxu0 0.0
        %2904 = vmatpush1.msra.mxu0 0.0
        %2905 = vmatprep.subr.mxu0 0.0
        %2906 = vmatpush1.msra.mxu0 0.0
        %2907 = vmatprep.subr.mxu0 0.0
        %2908 = vmatpush1.msra.mxu0 0.0
        %2909 = vmatprep.subr.mxu0 0.0
        %2910 = vmatpush1.msra.mxu0 0.0
        %2911 = vmatprep.subr.mxu0 0.0
        %2912 = vmatpush1.msra.mxu0 0.0
        %2913 = vmatprep.subr.mxu0 0.0
        %2914 = vmatpush1.msra.mxu0 0.0
        %2915 = vmatprep.subr.mxu0 0.0
        %2916 = vmatpush1.msra.mxu0 0.0
        %2917 = vmatprep.subr.mxu0 0.0
        %2918 = vmatpush1.msra.mxu0 0.0
        %2919 = vmatprep.subr.mxu0 0.0
        %2920 = vmatpush1.msra.mxu0 0.0
        %2921 = vmatprep.subr.mxu0 0.0
        %2922 = vmatpush1.msra.mxu0 0.0
        %2923 = vmatprep.subr.mxu0 0.0
        %2924 = vmatpush1.msra.mxu0 0.0
        %2925 = vmatprep.subr.mxu0 0.0
        %2926 = vmatpush1.msra.mxu0 0.0
        %2927 = vmatprep.subr.mxu0 0.0
        %2928 = vmatpush1.msra.mxu0 0.0
        %2929 = vmatprep.subr.mxu0 0.0
        %2930 = vmatpush1.msra.mxu0 0.0
        %2931 = vmatprep.subr.mxu0 0.0
        %2932 = vmatpush1.msra.mxu0 0.0
        %2933 = vmatprep.subr.mxu0 0.0
        %2934 = vmatpush1.msra.mxu0 0.0
        %2935 = vmatprep.subr.mxu0 0.0
        %2936 = vmatpush1.msra.mxu0 0.0
        %2937 = vmatprep.subr.mxu0 0.0
        %2938 = vmatpush1.msra.mxu0 0.0
        %2939 = vmatprep.subr.mxu0 0.0
        %2940 = vmatpush1.msra.mxu0 0.0
        %2941 = vmatprep.subr.mxu0 0.0
        %2942 = vmatpush1.msra.mxu0 0.0
        %2943 = vmatprep.subr.mxu0 0.0
        %2944 = vmatpush1.msra.mxu0 0.0
        %2945 = vmatprep.mubr.f32.mxu0 0.0
        %2946 = vmatmul.mubr.f32.gmra.mrb[0].mxu0 %v2728
        %v2947 = vpop.f32.mrb[0].mxu0
        %v2948 = vadd.f32 %v1806, %v2947
        %v2949 = vpop.f32.mrb[0].mxu0
        %2950 = vdwg.mxu0
        %2951 = vmatprep.subr.mxu0 0.0
        %2952 = vmatpush1.msra.mxu0 %v791
        %2953 = vmatprep.subr.mxu0 0.0
        %2954 = vmatpush1.msra.mxu0 %v792
        %2955 = vmatprep.subr.mxu0 0.0
        %2956 = vmatpush1.msra.mxu0 %v793
        %2957 = vmatprep.subr.mxu0 0.0
        %2958 = vmatpush1.msra.mxu0 %v794
        %2959 = vmatprep.subr.mxu0 0.0
        %2960 = vmatpush1.msra.mxu0 0.0
        %2961 = vmatprep.subr.mxu0 0.0
        %2962 = vmatpush1.msra.mxu0 0.0
        %2963 = vmatprep.subr.mxu0 0.0
        %2964 = vmatpush1.msra.mxu0 0.0
        %2965 = vmatprep.subr.mxu0 0.0
        %2966 = vmatpush1.msra.mxu0 0.0
        %2967 = vmatprep.subr.mxu0 0.0
        %2968 = vmatpush1.msra.mxu0 0.0
        %2969 = vmatprep.subr.mxu0 0.0
        %2970 = vmatpush1.msra.mxu0 0.0
        %2971 = vmatprep.subr.mxu0 0.0
        %2972 = vmatpush1.msra.mxu0 0.0
        %2973 = vmatprep.subr.mxu0 0.0
        %2974 = vmatpush1.msra.mxu0 0.0
        %2975 = vmatprep.subr.mxu0 0.0
        %2976 = vmatpush1.msra.mxu0 0.0
        %2977 = vmatprep.subr.mxu0 0.0
        %2978 = vmatpush1.msra.mxu0 0.0
        %2979 = vmatprep.subr.mxu0 0.0
        %2980 = vmatpush1.msra.mxu0 0.0
        %2981 = vmatprep.subr.mxu0 0.0
        %2982 = vmatpush1.msra.mxu0 0.0
        %2983 = vmatprep.subr.mxu0 0.0
        %2984 = vmatpush1.msra.mxu0 0.0
        %2985 = vmatprep.subr.mxu0 0.0
        %2986 = vmatpush1.msra.mxu0 0.0
        %2987 = vmatprep.subr.mxu0 0.0
        %2988 = vmatpush1.msra.mxu0 0.0
        %2989 = vmatprep.subr.mxu0 0.0
        %2990 = vmatpush1.msra.mxu0 0.0
        %2991 = vmatprep.subr.mxu0 0.0
        %2992 = vmatpush1.msra.mxu0 0.0
        %2993 = vmatprep.subr.mxu0 0.0
        %2994 = vmatpush1.msra.mxu0 0.0
        %2995 = vmatprep.subr.mxu0 0.0
        %2996 = vmatpush1.msra.mxu0 0.0
        %2997 = vmatprep.subr.mxu0 0.0
        %2998 = vmatpush1.msra.mxu0 0.0
        %2999 = vmatprep.subr.mxu0 0.0
        %3000 = vmatpush1.msra.mxu0 0.0
        %3001 = vmatprep.subr.mxu0 0.0
        %3002 = vmatpush1.msra.mxu0 0.0
        %3003 = vmatprep.subr.mxu0 0.0
        %3004 = vmatpush1.msra.mxu0 0.0
        %3005 = vmatprep.subr.mxu0 0.0
        %3006 = vmatpush1.msra.mxu0 0.0
        %3007 = vmatprep.subr.mxu0 0.0
        %3008 = vmatpush1.msra.mxu0 0.0
        %3009 = vmatprep.subr.mxu0 0.0
        %3010 = vmatpush1.msra.mxu0 0.0
        %3011 = vmatprep.subr.mxu0 0.0
        %3012 = vmatpush1.msra.mxu0 0.0
        %3013 = vmatprep.subr.mxu0 0.0
        %3014 = vmatpush1.msra.mxu0 0.0
        %3015 = vmatprep.mubr.f32.mxu0 0.0
        %3016 = vmatmul.mubr.f32.gmra.mrb[0].mxu0 %v2801
        %v3017 = vpop.f32.mrb[0].mxu0
        %v3018 = vadd.f32 0.0, %v3017
        %v3019 = vpop.f32.mrb[0].mxu0
        %3020 = vdwg.mxu0
        %v3021 = vadd.f32 %v2948, %v3018
        %v3022 = vadd.f32 %v3021, %v1951
        %v3023 = vxor.u32 %v3022, 2147483648
        %v3024 = vmul.f32 %v3023, 1.442695
        %v3025 = vpow.pop %v3024
        %v3026 = vadd.f32 %v3025, 1.0
        %v3027 = vrcp.pop %v3026
        %v3028 = vmul.f32 1.0, %v3027
        %3029 = vmatprep.subr.mxu0 0.0
        %3030 = vmatpush1.msra.mxu0 %v783
        %3031 = vmatprep.subr.mxu0 0.0
        %3032 = vmatpush1.msra.mxu0 %v784
        %3033 = vmatprep.subr.mxu0 0.0
        %3034 = vmatpush1.msra.mxu0 %v785
        %3035 = vmatprep.subr.mxu0 0.0
        %3036 = vmatpush1.msra.mxu0 %v786
        %3037 = vmatprep.subr.mxu0 0.0
        %3038 = vmatpush1.msra.mxu0 0.0
        %3039 = vmatprep.subr.mxu0 0.0
        %3040 = vmatpush1.msra.mxu0 0.0
        %3041 = vmatprep.subr.mxu0 0.0
        %3042 = vmatpush1.msra.mxu0 0.0
        %3043 = vmatprep.subr.mxu0 0.0
        %3044 = vmatpush1.msra.mxu0 0.0
        %3045 = vmatprep.subr.mxu0 0.0
        %3046 = vmatpush1.msra.mxu0 0.0
        %3047 = vmatprep.subr.mxu0 0.0
        %3048 = vmatpush1.msra.mxu0 0.0
        %3049 = vmatprep.subr.mxu0 0.0
        %3050 = vmatpush1.msra.mxu0 0.0
        %3051 = vmatprep.subr.mxu0 0.0
        %3052 = vmatpush1.msra.mxu0 0.0
        %3053 = vmatprep.subr.mxu0 0.0
        %3054 = vmatpush1.msra.mxu0 0.0
        %3055 = vmatprep.subr.mxu0 0.0
        %3056 = vmatpush1.msra.mxu0 0.0
        %3057 = vmatprep.subr.mxu0 0.0
        %3058 = vmatpush1.msra.mxu0 0.0
        %3059 = vmatprep.subr.mxu0 0.0
        %3060 = vmatpush1.msra.mxu0 0.0
        %3061 = vmatprep.subr.mxu0 0.0
        %3062 = vmatpush1.msra.mxu0 0.0
        %3063 = vmatprep.subr.mxu0 0.0
        %3064 = vmatpush1.msra.mxu0 0.0
        %3065 = vmatprep.subr.mxu0 0.0
        %3066 = vmatpush1.msra.mxu0 0.0
        %3067 = vmatprep.subr.mxu0 0.0
        %3068 = vmatpush1.msra.mxu0 0.0
        %3069 = vmatprep.subr.mxu0 0.0
        %3070 = vmatpush1.msra.mxu0 0.0
        %3071 = vmatprep.subr.mxu0 0.0
        %3072 = vmatpush1.msra.mxu0 0.0
        %3073 = vmatprep.subr.mxu0 0.0
        %3074 = vmatpush1.msra.mxu0 0.0
        %3075 = vmatprep.subr.mxu0 0.0
        %3076 = vmatpush1.msra.mxu0 0.0
        %3077 = vmatprep.subr.mxu0 0.0
        %3078 = vmatpush1.msra.mxu0 0.0
        %3079 = vmatprep.subr.mxu0 0.0
        %3080 = vmatpush1.msra.mxu0 0.0
        %3081 = vmatprep.subr.mxu0 0.0
        %3082 = vmatpush1.msra.mxu0 0.0
        %3083 = vmatprep.subr.mxu0 0.0
        %3084 = vmatpush1.msra.mxu0 0.0
        %3085 = vmatprep.subr.mxu0 0.0
        %3086 = vmatpush1.msra.mxu0 0.0
        %3087 = vmatprep.subr.mxu0 0.0
        %3088 = vmatpush1.msra.mxu0 0.0
        %3089 = vmatprep.subr.mxu0 0.0
        %3090 = vmatpush1.msra.mxu0 0.0
        %3091 = vmatprep.subr.mxu0 0.0
        %3092 = vmatpush1.msra.mxu0 0.0
        %3093 = vmatprep.mubr.f32.mxu0 0.0
        %3094 = vmatmul.mubr.f32.gmra.mrb[0].mxu0 %v2728
        %v3095 = vpop.f32.mrb[0].mxu0
        %v3096 = vadd.f32 %v1962, %v3095
        %v3097 = vpop.f32.mrb[0].mxu0
        %3098 = vdwg.mxu0
        %3099 = vmatprep.subr.mxu0 0.0
        %3100 = vmatpush1.msra.mxu0 %v795
        %3101 = vmatprep.subr.mxu0 0.0
        %3102 = vmatpush1.msra.mxu0 %v796
        %3103 = vmatprep.subr.mxu0 0.0
        %3104 = vmatpush1.msra.mxu0 %v797
        %3105 = vmatprep.subr.mxu0 0.0
        %3106 = vmatpush1.msra.mxu0 %v798
        %3107 = vmatprep.subr.mxu0 0.0
        %3108 = vmatpush1.msra.mxu0 0.0
        %3109 = vmatprep.subr.mxu0 0.0
        %3110 = vmatpush1.msra.mxu0 0.0
        %3111 = vmatprep.subr.mxu0 0.0
        %3112 = vmatpush1.msra.mxu0 0.0
        %3113 = vmatprep.subr.mxu0 0.0
        %3114 = vmatpush1.msra.mxu0 0.0
        %3115 = vmatprep.subr.mxu0 0.0
        %3116 = vmatpush1.msra.mxu0 0.0
        %3117 = vmatprep.subr.mxu0 0.0
        %3118 = vmatpush1.msra.mxu0 0.0
        %3119 = vmatprep.subr.mxu0 0.0
        %3120 = vmatpush1.msra.mxu0 0.0
        %3121 = vmatprep.subr.mxu0 0.0
        %3122 = vmatpush1.msra.mxu0 0.0
        %3123 = vmatprep.subr.mxu0 0.0
        %3124 = vmatpush1.msra.mxu0 0.0
        %3125 = vmatprep.subr.mxu0 0.0
        %3126 = vmatpush1.msra.mxu0 0.0
        %3127 = vmatprep.subr.mxu0 0.0
        %3128 = vmatpush1.msra.mxu0 0.0
        %3129 = vmatprep.subr.mxu0 0.0
        %3130 = vmatpush1.msra.mxu0 0.0
        %3131 = vmatprep.subr.mxu0 0.0
        %3132 = vmatpush1.msra.mxu0 0.0
        %3133 = vmatprep.subr.mxu0 0.0
        %3134 = vmatpush1.msra.mxu0 0.0
        %3135 = vmatprep.subr.mxu0 0.0
        %3136 = vmatpush1.msra.mxu0 0.0
        %3137 = vmatprep.subr.mxu0 0.0
        %3138 = vmatpush1.msra.mxu0 0.0
        %3139 = vmatprep.subr.mxu0 0.0
        %3140 = vmatpush1.msra.mxu0 0.0
        %3141 = vmatprep.subr.mxu0 0.0
        %3142 = vmatpush1.msra.mxu0 0.0
        %3143 = vmatprep.subr.mxu0 0.0
        %3144 = vmatpush1.msra.mxu0 0.0
        %3145 = vmatprep.subr.mxu0 0.0
        %3146 = vmatpush1.msra.mxu0 0.0
        %3147 = vmatprep.subr.mxu0 0.0
        %3148 = vmatpush1.msra.mxu0 0.0
        %3149 = vmatprep.subr.mxu0 0.0
        %3150 = vmatpush1.msra.mxu0 0.0
        %3151 = vmatprep.subr.mxu0 0.0
        %3152 = vmatpush1.msra.mxu0 0.0
        %3153 = vmatprep.subr.mxu0 0.0
        %3154 = vmatpush1.msra.mxu0 0.0
        %3155 = vmatprep.subr.mxu0 0.0
        %3156 = vmatpush1.msra.mxu0 0.0
        %3157 = vmatprep.subr.mxu0 0.0
        %3158 = vmatpush1.msra.mxu0 0.0
        %3159 = vmatprep.subr.mxu0 0.0
        %3160 = vmatpush1.msra.mxu0 0.0
        %3161 = vmatprep.subr.mxu0 0.0
        %3162 = vmatpush1.msra.mxu0 0.0
        %3163 = vmatprep.mubr.f32.mxu0 0.0
        %3164 = vmatmul.mubr.f32.gmra.mrb[0].mxu0 %v2801
        %v3165 = vpop.f32.mrb[0].mxu0
        %v3166 = vadd.f32 %v2036, %v3165
        %v3167 = vpop.f32.mrb[0].mxu0
        %3168 = vdwg.mxu0
        %v3169 = vmul.f32 %v2880, %v3166
        %v3170 = vadd.f32 %v3096, %v3169
        %v3171 = vtanh.pop %v3170
        %v3172 = vsub.f32 1.0, %v3028
        %v3173 = vmul.f32 %v3172, %v3171
        %v3174 = vmul.f32 %v3028, %v2292
        %v3175 = vadd.f32 %v3173, %v3174
        %v3176 = vsel %vm815, %v3175, 0.0
        %3177 = vadd.xlane.f32.xlu0 %v3176
        %v3178 = vpop.xlane.xlu0 %3177
        %v3179 = vmul.f32 %v3178, %v828
        %v3180 = vsub.f32 %v3175, %v3179
        %v3181 = vmul.f32 %v3180, %v3180
        %v3182 = vsel %vm815, %v3181, 0.0
        %3183 = vadd.xlane.f32.xlu0 %v3182
        %v3184 = vpop.xlane.xlu0 %3183
        %v3185 = vmul.f32 %v3184, %v828
        %v3186 = vadd.f32 %v3185, 1e-05
        %v3187 = vrsqrt.pop %v3186
        %v3188 = vmul.f32 %v3180, %v3187
        %v3189 = vmul.f32 %v3188, %v2130
        %v3190 = vadd.f32 %v3189, %v2135
        %v3192 = vsel %vm815, %v3190, 0
        %3194 = vmatprep.subr.mxu0 0.0
        %3195 = vmatpush1.msra.mxu0 %v755
        %3196 = vmatprep.subr.mxu0 0.0
        %3197 = vmatpush1.msra.mxu0 %v756
        %3198 = vmatprep.subr.mxu0 0.0
        %3199 = vmatpush1.msra.mxu0 %v757
        %3200 = vmatprep.subr.mxu0 0.0
        %3201 = vmatpush1.msra.mxu0 %v758
        %3202 = vmatprep.subr.mxu0 0.0
        %3203 = vmatpush1.msra.mxu0 0.0
        %3204 = vmatprep.subr.mxu0 0.0
        %3205 = vmatpush1.msra.mxu0 0.0
        %3206 = vmatprep.subr.mxu0 0.0
        %3207 = vmatpush1.msra.mxu0 0.0
        %3208 = vmatprep.subr.mxu0 0.0
        %3209 = vmatpush1.msra.mxu0 0.0
        %3210 = vmatprep.subr.mxu0 0.0
        %3211 = vmatpush1.msra.mxu0 0.0
        %3212 = vmatprep.subr.mxu0 0.0
        %3213 = vmatpush1.msra.mxu0 0.0
        %3214 = vmatprep.subr.mxu0 0.0
        %3215 = vmatpush1.msra.mxu0 0.0
        %3216 = vmatprep.subr.mxu0 0.0
        %3217 = vmatpush1.msra.mxu0 0.0
        %3218 = vmatprep.subr.mxu0 0.0
        %3219 = vmatpush1.msra.mxu0 0.0
        %3220 = vmatprep.subr.mxu0 0.0
        %3221 = vmatpush1.msra.mxu0 0.0
        %3222 = vmatprep.subr.mxu0 0.0
        %3223 = vmatpush1.msra.mxu0 0.0
        %3224 = vmatprep.subr.mxu0 0.0
        %3225 = vmatpush1.msra.mxu0 0.0
        %3226 = vmatprep.subr.mxu0 0.0
        %3227 = vmatpush1.msra.mxu0 0.0
        %3228 = vmatprep.subr.mxu0 0.0
        %3229 = vmatpush1.msra.mxu0 0.0
        %3230 = vmatprep.subr.mxu0 0.0
        %3231 = vmatpush1.msra.mxu0 0.0
        %3232 = vmatprep.subr.mxu0 0.0
        %3233 = vmatpush1.msra.mxu0 0.0
        %3234 = vmatprep.subr.mxu0 0.0
        %3235 = vmatpush1.msra.mxu0 0.0
        %3236 = vmatprep.subr.mxu0 0.0
        %3237 = vmatpush1.msra.mxu0 0.0
        %3238 = vmatprep.subr.mxu0 0.0
        %3239 = vmatpush1.msra.mxu0 0.0
        %3240 = vmatprep.subr.mxu0 0.0
        %3241 = vmatpush1.msra.mxu0 0.0
        %3242 = vmatprep.subr.mxu0 0.0
        %3243 = vmatpush1.msra.mxu0 0.0
        %3244 = vmatprep.subr.mxu0 0.0
        %3245 = vmatpush1.msra.mxu0 0.0
        %3246 = vmatprep.subr.mxu0 0.0
        %3247 = vmatpush1.msra.mxu0 0.0
        %3248 = vmatprep.subr.mxu0 0.0
        %3249 = vmatpush1.msra.mxu0 0.0
        %3250 = vmatprep.subr.mxu0 0.0
        %3251 = vmatpush1.msra.mxu0 0.0
        %3252 = vmatprep.subr.mxu0 0.0
        %3253 = vmatpush1.msra.mxu0 0.0
        %3254 = vmatprep.subr.mxu0 0.0
        %3255 = vmatpush1.msra.mxu0 0.0
        %3256 = vmatprep.subr.mxu0 0.0
        %3257 = vmatpush1.msra.mxu0 0.0
        %3258 = vmatprep.mubr.f32.mxu0 0.0
        %3259 = vmatmul.mubr.f32.gmra.mrb[0].mxu0 %v3192
        %v3260 = vpop.f32.mrb[0].mxu0
        %v3261 = vadd.f32 %v2141, %v3260
        %v3262 = vpop.f32.mrb[0].mxu0
        %3263 = vdwg.mxu0
        %v3264 = vmax.f32 %v3261, 0.0
        %3265 = vmatprep.subr.mxu0 0.0
        %3266 = vmatpush1.msra.mxu0 %v759
        %3267 = vmatprep.subr.mxu0 0.0
        %3268 = vmatpush1.msra.mxu0 %v760
        %3269 = vmatprep.subr.mxu0 0.0
        %3270 = vmatpush1.msra.mxu0 %v761
        %3271 = vmatprep.subr.mxu0 0.0
        %3272 = vmatpush1.msra.mxu0 %v762
        %3273 = vmatprep.subr.mxu0 0.0
        %3274 = vmatpush1.msra.mxu0 %v763
        %3275 = vmatprep.subr.mxu0 0.0
        %3276 = vmatpush1.msra.mxu0 %v764
        %3277 = vmatprep.subr.mxu0 0.0
        %3278 = vmatpush1.msra.mxu0 %v765
        %3279 = vmatprep.subr.mxu0 0.0
        %3280 = vmatpush1.msra.mxu0 %v766
        %3281 = vmatprep.subr.mxu0 0.0
        %3282 = vmatpush1.msra.mxu0 %v767
        %3283 = vmatprep.subr.mxu0 0.0
        %3284 = vmatpush1.msra.mxu0 %v768
        %3285 = vmatprep.subr.mxu0 0.0
        %3286 = vmatpush1.msra.mxu0 %v769
        %3287 = vmatprep.subr.mxu0 0.0
        %3288 = vmatpush1.msra.mxu0 %v770
        %3289 = vmatprep.subr.mxu0 0.0
        %3290 = vmatpush1.msra.mxu0 %v771
        %3291 = vmatprep.subr.mxu0 0.0
        %3292 = vmatpush1.msra.mxu0 %v772
        %3293 = vmatprep.subr.mxu0 0.0
        %3294 = vmatpush1.msra.mxu0 %v773
        %3295 = vmatprep.subr.mxu0 0.0
        %3296 = vmatpush1.msra.mxu0 %v774
        %3297 = vmatprep.subr.mxu0 0.0
        %3298 = vmatpush1.msra.mxu0 0.0
        %3299 = vmatprep.subr.mxu0 0.0
        %3300 = vmatpush1.msra.mxu0 0.0
        %3301 = vmatprep.subr.mxu0 0.0
        %3302 = vmatpush1.msra.mxu0 0.0
        %3303 = vmatprep.subr.mxu0 0.0
        %3304 = vmatpush1.msra.mxu0 0.0
        %3305 = vmatprep.subr.mxu0 0.0
        %3306 = vmatpush1.msra.mxu0 0.0
        %3307 = vmatprep.subr.mxu0 0.0
        %3308 = vmatpush1.msra.mxu0 0.0
        %3309 = vmatprep.subr.mxu0 0.0
        %3310 = vmatpush1.msra.mxu0 0.0
        %3311 = vmatprep.subr.mxu0 0.0
        %3312 = vmatpush1.msra.mxu0 0.0
        %3313 = vmatprep.subr.mxu0 0.0
        %3314 = vmatpush1.msra.mxu0 0.0
        %3315 = vmatprep.subr.mxu0 0.0
        %3316 = vmatpush1.msra.mxu0 0.0
        %3317 = vmatprep.subr.mxu0 0.0
        %3318 = vmatpush1.msra.mxu0 0.0
        %3319 = vmatprep.subr.mxu0 0.0
        %3320 = vmatpush1.msra.mxu0 0.0
        %3321 = vmatprep.subr.mxu0 0.0
        %3322 = vmatpush1.msra.mxu0 0.0
        %3323 = vmatprep.subr.mxu0 0.0
        %3324 = vmatpush1.msra.mxu0 0.0
        %3325 = vmatprep.subr.mxu0 0.0
        %3326 = vmatpush1.msra.mxu0 0.0
        %3327 = vmatprep.subr.mxu0 0.0
        %3328 = vmatpush1.msra.mxu0 0.0
        %3329 = vmatprep.mubr.f32.mxu0 0.0
        %3330 = vmatmul.mubr.f32.gmra.mrb[0].mxu0 %v3264
        %v3331 = vpop.f32.mrb[0].mxu0
        %v3332 = vadd.f32 0.0, %v3331
        %v3333 = vpop.f32.mrb[0].mxu0
        %3334 = vdwg.mxu0
        %v3335 = vadd.f32 %v3175, %v3332
        %v3336 = vadd.f32 %v3335, %v2291
        %v3337 = vsel %vm815, %v3336, 0.0
        %3338 = vadd.xlane.f32.xlu0 %v3337
        %v3339 = vpop.xlane.xlu0 %3338
        %v3340 = vmul.f32 %v3339, %v828
        %v3341 = vsub.f32 %v3336, %v3340
        %v3342 = vmul.f32 %v3341, %v3341
        %v3343 = vsel %vm815, %v3342, 0.0
        %3344 = vadd.xlane.f32.xlu0 %v3343
        %v3345 = vpop.xlane.xlu0 %3344
        %v3346 = vmul.f32 %v3345, %v828
        %v3347 = vadd.f32 %v3346, 1e-05
        %v3348 = vrsqrt.pop %v3347
        %v3349 = vmul.f32 %v3341, %v3348
        %v3350 = vmul.f32 %v3349, %v1200
        %v3351 = vadd.f32 %v3350, %v1209
        %v3353 = vsel %vm815, %v3351, 0
        %3355 = vmatprep.subr.mxu0 0.0
        %3356 = vmatpush1.msra.mxu0 %v743
        %3357 = vmatprep.subr.mxu0 0.0
        %3358 = vmatpush1.msra.mxu0 %v744
        %3359 = vmatprep.subr.mxu0 0.0
        %3360 = vmatpush1.msra.mxu0 %v745
        %3361 = vmatprep.subr.mxu0 0.0
        %3362 = vmatpush1.msra.mxu0 %v746
        %3363 = vmatprep.subr.mxu0 0.0
        %3364 = vmatpush1.msra.mxu0 0.0
        %3365 = vmatprep.subr.mxu0 0.0
        %3366 = vmatpush1.msra.mxu0 0.0
        %3367 = vmatprep.subr.mxu0 0.0
        %3368 = vmatpush1.msra.mxu0 0.0
        %3369 = vmatprep.subr.mxu0 0.0
        %3370 = vmatpush1.msra.mxu0 0.0
        %3371 = vmatprep.subr.mxu0 0.0
        %3372 = vmatpush1.msra.mxu0 0.0
        %3373 = vmatprep.subr.mxu0 0.0
        %3374 = vmatpush1.msra.mxu0 0.0
        %3375 = vmatprep.subr.mxu0 0.0
        %3376 = vmatpush1.msra.mxu0 0.0
        %3377 = vmatprep.subr.mxu0 0.0
        %3378 = vmatpush1.msra.mxu0 0.0
        %3379 = vmatprep.subr.mxu0 0.0
        %3380 = vmatpush1.msra.mxu0 0.0
        %3381 = vmatprep.subr.mxu0 0.0
        %3382 = vmatpush1.msra.mxu0 0.0
        %3383 = vmatprep.subr.mxu0 0.0
        %3384 = vmatpush1.msra.mxu0 0.0
        %3385 = vmatprep.subr.mxu0 0.0
        %3386 = vmatpush1.msra.mxu0 0.0
        %3387 = vmatprep.subr.mxu0 0.0
        %3388 = vmatpush1.msra.mxu0 0.0
        %3389 = vmatprep.subr.mxu0 0.0
        %3390 = vmatpush1.msra.mxu0 0.0
        %3391 = vmatprep.subr.mxu0 0.0
        %3392 = vmatpush1.msra.mxu0 0.0
        %3393 = vmatprep.subr.mxu0 0.0
        %3394 = vmatpush1.msra.mxu0 0.0
        %3395 = vmatprep.subr.mxu0 0.0
        %3396 = vmatpush1.msra.mxu0 0.0
        %3397 = vmatprep.subr.mxu0 0.0
        %3398 = vmatpush1.msra.mxu0 0.0
        %3399 = vmatprep.subr.mxu0 0.0
        %3400 = vmatpush1.msra.mxu0 0.0
        %3401 = vmatprep.subr.mxu0 0.0
        %3402 = vmatpush1.msra.mxu0 0.0
        %3403 = vmatprep.subr.mxu0 0.0
        %3404 = vmatpush1.msra.mxu0 0.0
        %3405 = vmatprep.subr.mxu0 0.0
        %3406 = vmatpush1.msra.mxu0 0.0
        %3407 = vmatprep.subr.mxu0 0.0
        %3408 = vmatpush1.msra.mxu0 0.0
        %3409 = vmatprep.subr.mxu0 0.0
        %3410 = vmatpush1.msra.mxu0 0.0
        %3411 = vmatprep.subr.mxu0 0.0
        %3412 = vmatpush1.msra.mxu0 0.0
        %3413 = vmatprep.subr.mxu0 0.0
        %3414 = vmatpush1.msra.mxu0 0.0
        %3415 = vmatprep.subr.mxu0 0.0
        %3416 = vmatpush1.msra.mxu0 0.0
        %3417 = vmatprep.subr.mxu0 0.0
        %3418 = vmatpush1.msra.mxu0 0.0
        %3419 = vmatprep.mubr.f32.mxu0 0.0
        %3420 = vmatmul.mubr.f32.gmra.mrb[0].mxu0 %v3353
        %v3421 = vpop.f32.mrb[0].mxu0
        %v3422 = vadd.f32 %v1218, %v3421
        %v3423 = vpop.f32.mrb[0].mxu0
        %3424 = vdwg.mxu0
        %v3426 = vcombine.high %v3422, %v3422
        %v3427 = vsel %vm815, %v3422, 0
        %3429 = vmatprep.subr.mxu0 0.0
        %3430 = vmatpush1.msra.mxu0 %v1091
        %3431 = vmatprep.subr.mxu0 0.0
        %3432 = vmatpush1.msra.mxu0 %v1092
        %3433 = vmatprep.subr.mxu0 0.0
        %3434 = vmatpush1.msra.mxu0 %v1093
        %3435 = vmatprep.subr.mxu0 0.0
        %3436 = vmatpush1.msra.mxu0 %v1094
        %3437 = vmatprep.subr.mxu0 0.0
        %3438 = vmatpush1.msra.mxu0 0.0
        %3439 = vmatprep.subr.mxu0 0.0
        %3440 = vmatpush1.msra.mxu0 0.0
        %3441 = vmatprep.subr.mxu0 0.0
        %3442 = vmatpush1.msra.mxu0 0.0
        %3443 = vmatprep.subr.mxu0 0.0
        %3444 = vmatpush1.msra.mxu0 0.0
        %3445 = vmatprep.subr.mxu0 0.0
        %3446 = vmatpush1.msra.mxu0 0.0
        %3447 = vmatprep.subr.mxu0 0.0
        %3448 = vmatpush1.msra.mxu0 0.0
        %3449 = vmatprep.subr.mxu0 0.0
        %3450 = vmatpush1.msra.mxu0 0.0
        %3451 = vmatprep.subr.mxu0 0.0
        %3452 = vmatpush1.msra.mxu0 0.0
        %3453 = vmatprep.subr.mxu0 0.0
        %3454 = vmatpush1.msra.mxu0 0.0
        %3455 = vmatprep.subr.mxu0 0.0
        %3456 = vmatpush1.msra.mxu0 0.0
        %3457 = vmatprep.subr.mxu0 0.0
        %3458 = vmatpush1.msra.mxu0 0.0
        %3459 = vmatprep.subr.mxu0 0.0
        %3460 = vmatpush1.msra.mxu0 0.0
        %3461 = vmatprep.subr.mxu0 0.0
        %3462 = vmatpush1.msra.mxu0 0.0
        %3463 = vmatprep.subr.mxu0 0.0
        %3464 = vmatpush1.msra.mxu0 0.0
        %3465 = vmatprep.subr.mxu0 0.0
        %3466 = vmatpush1.msra.mxu0 0.0
        %3467 = vmatprep.subr.mxu0 0.0
        %3468 = vmatpush1.msra.mxu0 0.0
        %3469 = vmatprep.subr.mxu0 0.0
        %3470 = vmatpush1.msra.mxu0 0.0
        %3471 = vmatprep.subr.mxu0 0.0
        %3472 = vmatpush1.msra.mxu0 0.0
        %3473 = vmatprep.subr.mxu0 0.0
        %3474 = vmatpush1.msra.mxu0 0.0
        %3475 = vmatprep.subr.mxu0 0.0
        %3476 = vmatpush1.msra.mxu0 0.0
        %3477 = vmatprep.subr.mxu0 0.0
        %3478 = vmatpush1.msra.mxu0 0.0
        %3479 = vmatprep.subr.mxu0 0.0
        %3480 = vmatpush1.msra.mxu0 0.0
        %3481 = vmatprep.subr.mxu0 0.0
        %3482 = vmatpush1.msra.mxu0 0.0
        %3483 = vmatprep.subr.mxu0 0.0
        %3484 = vmatpush1.msra.mxu0 0.0
        %3485 = vmatprep.subr.mxu0 0.0
        %3486 = vmatpush1.msra.mxu0 0.0
        %3487 = vmatprep.subr.mxu0 0.0
        %3488 = vmatpush1.msra.mxu0 0.0
        %3489 = vmatprep.subr.mxu0 0.0
        %3490 = vmatpush1.msra.mxu0 0.0
        %3491 = vmatprep.subr.mxu0 0.0
        %3492 = vmatpush1.msra.mxu0 0.0
        %3493 = vmatprep.mubr.f32.mxu0 0.0
        %3494 = vmatmul.mubr.f32.gmra.mrb[0].mxu0 %v3427
        %v3495 = vpop.f32.mrb[0].mxu0
        %v3496 = vadd.f32 0.0, %v3495
        %v3497 = vpop.f32.mrb[0].mxu0
        %3498 = vdwg.mxu0
        %v3499 = vsel %vm815, %v3426, 0
        %3501 = vmatprep.subr.mxu0 0.0
        %3502 = vmatpush1.msra.mxu0 %v1123
        %3503 = vmatprep.subr.mxu0 0.0
        %3504 = vmatpush1.msra.mxu0 %v1124
        %3505 = vmatprep.subr.mxu0 0.0
        %3506 = vmatpush1.msra.mxu0 %v1125
        %3507 = vmatprep.subr.mxu0 0.0
        %3508 = vmatpush1.msra.mxu0 %v1126
        %3509 = vmatprep.subr.mxu0 0.0
        %3510 = vmatpush1.msra.mxu0 0.0
        %3511 = vmatprep.subr.mxu0 0.0
        %3512 = vmatpush1.msra.mxu0 0.0
        %3513 = vmatprep.subr.mxu0 0.0
        %3514 = vmatpush1.msra.mxu0 0.0
        %3515 = vmatprep.subr.mxu0 0.0
        %3516 = vmatpush1.msra.mxu0 0.0
        %3517 = vmatprep.subr.mxu0 0.0
        %3518 = vmatpush1.msra.mxu0 0.0
        %3519 = vmatprep.subr.mxu0 0.0
        %3520 = vmatpush1.msra.mxu0 0.0
        %3521 = vmatprep.subr.mxu0 0.0
        %3522 = vmatpush1.msra.mxu0 0.0
        %3523 = vmatprep.subr.mxu0 0.0
        %3524 = vmatpush1.msra.mxu0 0.0
        %3525 = vmatprep.subr.mxu0 0.0
        %3526 = vmatpush1.msra.mxu0 0.0
        %3527 = vmatprep.subr.mxu0 0.0
        %3528 = vmatpush1.msra.mxu0 0.0
        %3529 = vmatprep.subr.mxu0 0.0
        %3530 = vmatpush1.msra.mxu0 0.0
        %3531 = vmatprep.subr.mxu0 0.0
        %3532 = vmatpush1.msra.mxu0 0.0
        %3533 = vmatprep.subr.mxu0 0.0
        %3534 = vmatpush1.msra.mxu0 0.0
        %3535 = vmatprep.subr.mxu0 0.0
        %3536 = vmatpush1.msra.mxu0 0.0
        %3537 = vmatprep.subr.mxu0 0.0
        %3538 = vmatpush1.msra.mxu0 0.0
        %3539 = vmatprep.subr.mxu0 0.0
        %3540 = vmatpush1.msra.mxu0 0.0
        %3541 = vmatprep.subr.mxu0 0.0
        %3542 = vmatpush1.msra.mxu0 0.0
        %3543 = vmatprep.subr.mxu0 0.0
        %3544 = vmatpush1.msra.mxu0 0.0
        %3545 = vmatprep.subr.mxu0 0.0
        %3546 = vmatpush1.msra.mxu0 0.0
        %3547 = vmatprep.subr.mxu0 0.0
        %3548 = vmatpush1.msra.mxu0 0.0
        %3549 = vmatprep.subr.mxu0 0.0
        %3550 = vmatpush1.msra.mxu0 0.0
        %3551 = vmatprep.subr.mxu0 0.0
        %3552 = vmatpush1.msra.mxu0 0.0
        %3553 = vmatprep.subr.mxu0 0.0
        %3554 = vmatpush1.msra.mxu0 0.0
        %3555 = vmatprep.subr.mxu0 0.0
        %3556 = vmatpush1.msra.mxu0 0.0
        %3557 = vmatprep.subr.mxu0 0.0
        %3558 = vmatpush1.msra.mxu0 0.0
        %3559 = vmatprep.subr.mxu0 0.0
        %3560 = vmatpush1.msra.mxu0 0.0
        %3561 = vmatprep.subr.mxu0 0.0
        %3562 = vmatpush1.msra.mxu0 0.0
        %3563 = vmatprep.subr.mxu0 0.0
        %3564 = vmatpush1.msra.mxu0 0.0
        %3565 = vmatprep.mubr.f32.mxu0 0.0
        %3566 = vmatmul.mubr.f32.gmra.mrb[0].mxu0 %v3499
        %v3567 = vpop.f32.mrb[0].mxu0
        %v3568 = vadd.f32 0.0, %v3567
        %v3569 = vpop.f32.mrb[0].mxu0
        %3570 = vdwg.mxu0
        %v3571 = vsel %vm1440, %v3496, -inf
        %v3572 = vrot.slane %v3571, 4
        %v3573 = vmax.f32 %v3571, %v3572
        %v3574 = vrot.slane %v3573, 2
        %v3575 = vmax.f32 %v3573, %v3574
        %v3576 = vrot.slane %v3575, 1
        %v3577 = vmax.f32 %v3575, %v3576
        %v3578 = vsel %vm1440, %v3568, -inf
        %v3579 = vrot.slane %v3578, 4
        %v3580 = vmax.f32 %v3578, %v3579
        %v3581 = vrot.slane %v3580, 2
        %v3582 = vmax.f32 %v3580, %v3581
        %v3583 = vrot.slane %v3582, 1
        %v3584 = vmax.f32 %v3582, %v3583
        %v3585 = vsub.f32 %v3496, %v3577
        %v3586 = vsub.f32 %v3568, %v3584
        %v3587 = vmul.f32 %v3585, 1.442695
        %v3588 = vpow.pop %v3587
        %v3589 = vmul.f32 %v3586, 1.442695
        %v3590 = vpow.pop %v3589
        %v3591 = vsel %vm1440, %v3588, 0.0
        %v3592 = vrot.slane %v3591, 4
        %v3593 = vadd.f32 %v3591, %v3592
        %v3594 = vrot.slane %v3593, 2
        %v3595 = vadd.f32 %v3593, %v3594
        %v3596 = vrot.slane %v3595, 1
        %v3597 = vadd.f32 %v3595, %v3596
        %v3598 = vsel %vm1440, %v3590, 0.0
        %v3599 = vrot.slane %v3598, 4
        %v3600 = vadd.f32 %v3598, %v3599
        %v3601 = vrot.slane %v3600, 2
        %v3602 = vadd.f32 %v3600, %v3601
        %v3603 = vrot.slane %v3602, 1
        %v3604 = vadd.f32 %v3602, %v3603
        %v3605 = vrcp.pop %v3597
        %v3606 = vrcp.pop %v3604
        %v3607 = vmul.f32 %v3588, %v3605
        %v3608 = vmul.f32 %v3590, %v3606
        %v3609 = vadd.f32 %v3607, 1e-08
        %v3610 = vadd.f32 %v3608, 1e-08
        %v3611 = vsel %vm813, 0.0, %v3609
        %v3612 = vsel %vm814, 0.0, %v3610
        %v3613 = vsel %vm1440, %v3611, 0.0
        %3614 = vadd.xlane.f32.xlu0 %v3613
        %v3615 = vpop.xlane.xlu0 %3614
        %v3616 = vsel %vm1440, %v3612, 0.0
        %3617 = vadd.xlane.f32.xlu0 %v3616
        %v3618 = vpop.xlane.xlu0 %3617
        %v3619 = vrcp.pop %v3615
        %v3620 = vmul.f32 %v3611, %v3619
        %v3621 = vrcp.pop %v3618
        %v3622 = vmul.f32 %v3612, %v3621
        %v3624 = vsel %vm1493, %v3620, 0
        %3626 = vmatprep.subr.mxu0 0.0
        %3627 = vmatpush1.msra.mxu0 %v1057
        %3628 = vmatprep.subr.mxu0 0.0
        %3629 = vmatpush1.msra.mxu0 %v1062
        %3630 = vmatprep.subr.mxu0 0.0
        %3631 = vmatpush1.msra.mxu0 0.0
        %3632 = vmatprep.subr.mxu0 0.0
        %3633 = vmatpush1.msra.mxu0 0.0
        %3634 = vmatprep.subr.mxu0 0.0
        %3635 = vmatpush1.msra.mxu0 0.0
        %3636 = vmatprep.subr.mxu0 0.0
        %3637 = vmatpush1.msra.mxu0 0.0
        %3638 = vmatprep.subr.mxu0 0.0
        %3639 = vmatpush1.msra.mxu0 0.0
        %3640 = vmatprep.subr.mxu0 0.0
        %3641 = vmatpush1.msra.mxu0 0.0
        %3642 = vmatprep.subr.mxu0 0.0
        %3643 = vmatpush1.msra.mxu0 0.0
        %3644 = vmatprep.subr.mxu0 0.0
        %3645 = vmatpush1.msra.mxu0 0.0
        %3646 = vmatprep.subr.mxu0 0.0
        %3647 = vmatpush1.msra.mxu0 0.0
        %3648 = vmatprep.subr.mxu0 0.0
        %3649 = vmatpush1.msra.mxu0 0.0
        %3650 = vmatprep.subr.mxu0 0.0
        %3651 = vmatpush1.msra.mxu0 0.0
        %3652 = vmatprep.subr.mxu0 0.0
        %3653 = vmatpush1.msra.mxu0 0.0
        %3654 = vmatprep.subr.mxu0 0.0
        %3655 = vmatpush1.msra.mxu0 0.0
        %3656 = vmatprep.subr.mxu0 0.0
        %3657 = vmatpush1.msra.mxu0 0.0
        %3658 = vmatprep.subr.mxu0 0.0
        %3659 = vmatpush1.msra.mxu0 0.0
        %3660 = vmatprep.subr.mxu0 0.0
        %3661 = vmatpush1.msra.mxu0 0.0
        %3662 = vmatprep.subr.mxu0 0.0
        %3663 = vmatpush1.msra.mxu0 0.0
        %3664 = vmatprep.subr.mxu0 0.0
        %3665 = vmatpush1.msra.mxu0 0.0
        %3666 = vmatprep.subr.mxu0 0.0
        %3667 = vmatpush1.msra.mxu0 0.0
        %3668 = vmatprep.subr.mxu0 0.0
        %3669 = vmatpush1.msra.mxu0 0.0
        %3670 = vmatprep.subr.mxu0 0.0
        %3671 = vmatpush1.msra.mxu0 0.0
        %3672 = vmatprep.subr.mxu0 0.0
        %3673 = vmatpush1.msra.mxu0 0.0
        %3674 = vmatprep.subr.mxu0 0.0
        %3675 = vmatpush1.msra.mxu0 0.0
        %3676 = vmatprep.subr.mxu0 0.0
        %3677 = vmatpush1.msra.mxu0 0.0
        %3678 = vmatprep.subr.mxu0 0.0
        %3679 = vmatpush1.msra.mxu0 0.0
        %3680 = vmatprep.subr.mxu0 0.0
        %3681 = vmatpush1.msra.mxu0 0.0
        %3682 = vmatprep.subr.mxu0 0.0
        %3683 = vmatpush1.msra.mxu0 0.0
        %3684 = vmatprep.subr.mxu0 0.0
        %3685 = vmatpush1.msra.mxu0 0.0
        %3686 = vmatprep.subr.mxu0 0.0
        %3687 = vmatpush1.msra.mxu0 0.0
        %3688 = vmatprep.subr.mxu0 0.0
        %3689 = vmatpush1.msra.mxu0 0.0
        %3690 = vmatprep.mubr.f32.mxu0 0.0
        %3691 = vmatmul.mubr.f32.gmra.mrb[0].mxu0 %v3624
        %v3692 = vpop.f32.mrb[0].mxu0
        %v3693 = vadd.f32 0.0, %v3692
        %v3694 = vpop.f32.mrb[0].mxu0
        %3695 = vdwg.mxu0
        %v3697 = vsel %vm1493, %v3622, 0
        %3699 = vmatprep.subr.mxu0 0.0
        %3700 = vmatpush1.msra.mxu0 %v1067
        %3701 = vmatprep.subr.mxu0 0.0
        %3702 = vmatpush1.msra.mxu0 %v1072
        %3703 = vmatprep.subr.mxu0 0.0
        %3704 = vmatpush1.msra.mxu0 0.0
        %3705 = vmatprep.subr.mxu0 0.0
        %3706 = vmatpush1.msra.mxu0 0.0
        %3707 = vmatprep.subr.mxu0 0.0
        %3708 = vmatpush1.msra.mxu0 0.0
        %3709 = vmatprep.subr.mxu0 0.0
        %3710 = vmatpush1.msra.mxu0 0.0
        %3711 = vmatprep.subr.mxu0 0.0
        %3712 = vmatpush1.msra.mxu0 0.0
        %3713 = vmatprep.subr.mxu0 0.0
        %3714 = vmatpush1.msra.mxu0 0.0
        %3715 = vmatprep.subr.mxu0 0.0
        %3716 = vmatpush1.msra.mxu0 0.0
        %3717 = vmatprep.subr.mxu0 0.0
        %3718 = vmatpush1.msra.mxu0 0.0
        %3719 = vmatprep.subr.mxu0 0.0
        %3720 = vmatpush1.msra.mxu0 0.0
        %3721 = vmatprep.subr.mxu0 0.0
        %3722 = vmatpush1.msra.mxu0 0.0
        %3723 = vmatprep.subr.mxu0 0.0
        %3724 = vmatpush1.msra.mxu0 0.0
        %3725 = vmatprep.subr.mxu0 0.0
        %3726 = vmatpush1.msra.mxu0 0.0
        %3727 = vmatprep.subr.mxu0 0.0
        %3728 = vmatpush1.msra.mxu0 0.0
        %3729 = vmatprep.subr.mxu0 0.0
        %3730 = vmatpush1.msra.mxu0 0.0
        %3731 = vmatprep.subr.mxu0 0.0
        %3732 = vmatpush1.msra.mxu0 0.0
        %3733 = vmatprep.subr.mxu0 0.0
        %3734 = vmatpush1.msra.mxu0 0.0
        %3735 = vmatprep.subr.mxu0 0.0
        %3736 = vmatpush1.msra.mxu0 0.0
        %3737 = vmatprep.subr.mxu0 0.0
        %3738 = vmatpush1.msra.mxu0 0.0
        %3739 = vmatprep.subr.mxu0 0.0
        %3740 = vmatpush1.msra.mxu0 0.0
        %3741 = vmatprep.subr.mxu0 0.0
        %3742 = vmatpush1.msra.mxu0 0.0
        %3743 = vmatprep.subr.mxu0 0.0
        %3744 = vmatpush1.msra.mxu0 0.0
        %3745 = vmatprep.subr.mxu0 0.0
        %3746 = vmatpush1.msra.mxu0 0.0
        %3747 = vmatprep.subr.mxu0 0.0
        %3748 = vmatpush1.msra.mxu0 0.0
        %3749 = vmatprep.subr.mxu0 0.0
        %3750 = vmatpush1.msra.mxu0 0.0
        %3751 = vmatprep.subr.mxu0 0.0
        %3752 = vmatpush1.msra.mxu0 0.0
        %3753 = vmatprep.subr.mxu0 0.0
        %3754 = vmatpush1.msra.mxu0 0.0
        %3755 = vmatprep.subr.mxu0 0.0
        %3756 = vmatpush1.msra.mxu0 0.0
        %3757 = vmatprep.subr.mxu0 0.0
        %3758 = vmatpush1.msra.mxu0 0.0
        %3759 = vmatprep.subr.mxu0 0.0
        %3760 = vmatpush1.msra.mxu0 0.0
        %3761 = vmatprep.subr.mxu0 0.0
        %3762 = vmatpush1.msra.mxu0 0.0
        %3763 = vmatprep.mubr.f32.mxu0 0.0
        %3764 = vmatmul.mubr.f32.gmra.mrb[0].mxu0 %v3697
        %v3765 = vpop.f32.mrb[0].mxu0
        %v3766 = vadd.f32 0.0, %v3765
        %v3767 = vpop.f32.mrb[0].mxu0
        %3768 = vdwg.mxu0
        %v3771 = vcombine.low %v3693, %v3766
        %v3772 = vsel %vm815, %v3771, 0
        %3774 = vmatprep.subr.mxu0 0.0
        %3775 = vmatpush1.msra.mxu0 %v775
        %3776 = vmatprep.subr.mxu0 0.0
        %3777 = vmatpush1.msra.mxu0 %v776
        %3778 = vmatprep.subr.mxu0 0.0
        %3779 = vmatpush1.msra.mxu0 %v777
        %3780 = vmatprep.subr.mxu0 0.0
        %3781 = vmatpush1.msra.mxu0 %v778
        %3782 = vmatprep.subr.mxu0 0.0
        %3783 = vmatpush1.msra.mxu0 0.0
        %3784 = vmatprep.subr.mxu0 0.0
        %3785 = vmatpush1.msra.mxu0 0.0
        %3786 = vmatprep.subr.mxu0 0.0
        %3787 = vmatpush1.msra.mxu0 0.0
        %3788 = vmatprep.subr.mxu0 0.0
        %3789 = vmatpush1.msra.mxu0 0.0
        %3790 = vmatprep.subr.mxu0 0.0
        %3791 = vmatpush1.msra.mxu0 0.0
        %3792 = vmatprep.subr.mxu0 0.0
        %3793 = vmatpush1.msra.mxu0 0.0
        %3794 = vmatprep.subr.mxu0 0.0
        %3795 = vmatpush1.msra.mxu0 0.0
        %3796 = vmatprep.subr.mxu0 0.0
        %3797 = vmatpush1.msra.mxu0 0.0
        %3798 = vmatprep.subr.mxu0 0.0
        %3799 = vmatpush1.msra.mxu0 0.0
        %3800 = vmatprep.subr.mxu0 0.0
        %3801 = vmatpush1.msra.mxu0 0.0
        %3802 = vmatprep.subr.mxu0 0.0
        %3803 = vmatpush1.msra.mxu0 0.0
        %3804 = vmatprep.subr.mxu0 0.0
        %3805 = vmatpush1.msra.mxu0 0.0
        %3806 = vmatprep.subr.mxu0 0.0
        %3807 = vmatpush1.msra.mxu0 0.0
        %3808 = vmatprep.subr.mxu0 0.0
        %3809 = vmatpush1.msra.mxu0 0.0
        %3810 = vmatprep.subr.mxu0 0.0
        %3811 = vmatpush1.msra.mxu0 0.0
        %3812 = vmatprep.subr.mxu0 0.0
        %3813 = vmatpush1.msra.mxu0 0.0
        %3814 = vmatprep.subr.mxu0 0.0
        %3815 = vmatpush1.msra.mxu0 0.0
        %3816 = vmatprep.subr.mxu0 0.0
        %3817 = vmatpush1.msra.mxu0 0.0
        %3818 = vmatprep.subr.mxu0 0.0
        %3819 = vmatpush1.msra.mxu0 0.0
        %3820 = vmatprep.subr.mxu0 0.0
        %3821 = vmatpush1.msra.mxu0 0.0
        %3822 = vmatprep.subr.mxu0 0.0
        %3823 = vmatpush1.msra.mxu0 0.0
        %3824 = vmatprep.subr.mxu0 0.0
        %3825 = vmatpush1.msra.mxu0 0.0
        %3826 = vmatprep.subr.mxu0 0.0
        %3827 = vmatpush1.msra.mxu0 0.0
        %3828 = vmatprep.subr.mxu0 0.0
        %3829 = vmatpush1.msra.mxu0 0.0
        %3830 = vmatprep.subr.mxu0 0.0
        %3831 = vmatpush1.msra.mxu0 0.0
        %3832 = vmatprep.subr.mxu0 0.0
        %3833 = vmatpush1.msra.mxu0 0.0
        %3834 = vmatprep.subr.mxu0 0.0
        %3835 = vmatpush1.msra.mxu0 0.0
        %3836 = vmatprep.subr.mxu0 0.0
        %3837 = vmatpush1.msra.mxu0 0.0
        %3838 = vmatprep.mubr.f32.mxu0 0.0
        %3839 = vmatmul.mubr.f32.gmra.mrb[0].mxu0 %v3772
        %v3840 = vpop.f32.mrb[0].mxu0
        %v3841 = vadd.f32 %v1643, %v3840
        %v3842 = vpop.f32.mrb[0].mxu0
        %3843 = vdwg.mxu0
        %v3845 = vsel %vm815, %v3336, 0
        %3847 = vmatprep.subr.mxu0 0.0
        %3848 = vmatpush1.msra.mxu0 %v787
        %3849 = vmatprep.subr.mxu0 0.0
        %3850 = vmatpush1.msra.mxu0 %v788
        %3851 = vmatprep.subr.mxu0 0.0
        %3852 = vmatpush1.msra.mxu0 %v789
        %3853 = vmatprep.subr.mxu0 0.0
        %3854 = vmatpush1.msra.mxu0 %v790
        %3855 = vmatprep.subr.mxu0 0.0
        %3856 = vmatpush1.msra.mxu0 0.0
        %3857 = vmatprep.subr.mxu0 0.0
        %3858 = vmatpush1.msra.mxu0 0.0
        %3859 = vmatprep.subr.mxu0 0.0
        %3860 = vmatpush1.msra.mxu0 0.0
        %3861 = vmatprep.subr.mxu0 0.0
        %3862 = vmatpush1.msra.mxu0 0.0
        %3863 = vmatprep.subr.mxu0 0.0
        %3864 = vmatpush1.msra.mxu0 0.0
        %3865 = vmatprep.subr.mxu0 0.0
        %3866 = vmatpush1.msra.mxu0 0.0
        %3867 = vmatprep.subr.mxu0 0.0
        %3868 = vmatpush1.msra.mxu0 0.0
        %3869 = vmatprep.subr.mxu0 0.0
        %3870 = vmatpush1.msra.mxu0 0.0
        %3871 = vmatprep.subr.mxu0 0.0
        %3872 = vmatpush1.msra.mxu0 0.0
        %3873 = vmatprep.subr.mxu0 0.0
        %3874 = vmatpush1.msra.mxu0 0.0
        %3875 = vmatprep.subr.mxu0 0.0
        %3876 = vmatpush1.msra.mxu0 0.0
        %3877 = vmatprep.subr.mxu0 0.0
        %3878 = vmatpush1.msra.mxu0 0.0
        %3879 = vmatprep.subr.mxu0 0.0
        %3880 = vmatpush1.msra.mxu0 0.0
        %3881 = vmatprep.subr.mxu0 0.0
        %3882 = vmatpush1.msra.mxu0 0.0
        %3883 = vmatprep.subr.mxu0 0.0
        %3884 = vmatpush1.msra.mxu0 0.0
        %3885 = vmatprep.subr.mxu0 0.0
        %3886 = vmatpush1.msra.mxu0 0.0
        %3887 = vmatprep.subr.mxu0 0.0
        %3888 = vmatpush1.msra.mxu0 0.0
        %3889 = vmatprep.subr.mxu0 0.0
        %3890 = vmatpush1.msra.mxu0 0.0
        %3891 = vmatprep.subr.mxu0 0.0
        %3892 = vmatpush1.msra.mxu0 0.0
        %3893 = vmatprep.subr.mxu0 0.0
        %3894 = vmatpush1.msra.mxu0 0.0
        %3895 = vmatprep.subr.mxu0 0.0
        %3896 = vmatpush1.msra.mxu0 0.0
        %3897 = vmatprep.subr.mxu0 0.0
        %3898 = vmatpush1.msra.mxu0 0.0
        %3899 = vmatprep.subr.mxu0 0.0
        %3900 = vmatpush1.msra.mxu0 0.0
        %3901 = vmatprep.subr.mxu0 0.0
        %3902 = vmatpush1.msra.mxu0 0.0
        %3903 = vmatprep.subr.mxu0 0.0
        %3904 = vmatpush1.msra.mxu0 0.0
        %3905 = vmatprep.subr.mxu0 0.0
        %3906 = vmatpush1.msra.mxu0 0.0
        %3907 = vmatprep.subr.mxu0 0.0
        %3908 = vmatpush1.msra.mxu0 0.0
        %3909 = vmatprep.subr.mxu0 0.0
        %3910 = vmatpush1.msra.mxu0 0.0
        %3911 = vmatprep.mubr.f32.mxu0 0.0
        %3912 = vmatmul.mubr.f32.gmra.mrb[0].mxu0 %v3845
        %v3913 = vpop.f32.mrb[0].mxu0
        %v3914 = vadd.f32 0.0, %v3913
        %v3915 = vpop.f32.mrb[0].mxu0
        %3916 = vdwg.mxu0
        %v3917 = vadd.f32 %v3841, %v3914
        %v3918 = vadd.f32 %v3917, %v1795
        %v3919 = vxor.u32 %v3918, 2147483648
        %v3920 = vmul.f32 %v3919, 1.442695
        %v3921 = vpow.pop %v3920
        %v3922 = vadd.f32 %v3921, 1.0
        %v3923 = vrcp.pop %v3922
        %v3924 = vmul.f32 1.0, %v3923
        %3925 = vmatprep.subr.mxu0 0.0
        %3926 = vmatpush1.msra.mxu0 %v779
        %3927 = vmatprep.subr.mxu0 0.0
        %3928 = vmatpush1.msra.mxu0 %v780
        %3929 = vmatprep.subr.mxu0 0.0
        %3930 = vmatpush1.msra.mxu0 %v781
        %3931 = vmatprep.subr.mxu0 0.0
        %3932 = vmatpush1.msra.mxu0 %v782
        %3933 = vmatprep.subr.mxu0 0.0
        %3934 = vmatpush1.msra.mxu0 0.0
        %3935 = vmatprep.subr.mxu0 0.0
        %3936 = vmatpush1.msra.mxu0 0.0
        %3937 = vmatprep.subr.mxu0 0.0
        %3938 = vmatpush1.msra.mxu0 0.0
        %3939 = vmatprep.subr.mxu0 0.0
        %3940 = vmatpush1.msra.mxu0 0.0
        %3941 = vmatprep.subr.mxu0 0.0
        %3942 = vmatpush1.msra.mxu0 0.0
        %3943 = vmatprep.subr.mxu0 0.0
        %3944 = vmatpush1.msra.mxu0 0.0
        %3945 = vmatprep.subr.mxu0 0.0
        %3946 = vmatpush1.msra.mxu0 0.0
        %3947 = vmatprep.subr.mxu0 0.0
        %3948 = vmatpush1.msra.mxu0 0.0
        %3949 = vmatprep.subr.mxu0 0.0
        %3950 = vmatpush1.msra.mxu0 0.0
        %3951 = vmatprep.subr.mxu0 0.0
        %3952 = vmatpush1.msra.mxu0 0.0
        %3953 = vmatprep.subr.mxu0 0.0
        %3954 = vmatpush1.msra.mxu0 0.0
        %3955 = vmatprep.subr.mxu0 0.0
        %3956 = vmatpush1.msra.mxu0 0.0
        %3957 = vmatprep.subr.mxu0 0.0
        %3958 = vmatpush1.msra.mxu0 0.0
        %3959 = vmatprep.subr.mxu0 0.0
        %3960 = vmatpush1.msra.mxu0 0.0
        %3961 = vmatprep.subr.mxu0 0.0
        %3962 = vmatpush1.msra.mxu0 0.0
        %3963 = vmatprep.subr.mxu0 0.0
        %3964 = vmatpush1.msra.mxu0 0.0
        %3965 = vmatprep.subr.mxu0 0.0
        %3966 = vmatpush1.msra.mxu0 0.0
        %3967 = vmatprep.subr.mxu0 0.0
        %3968 = vmatpush1.msra.mxu0 0.0
        %3969 = vmatprep.subr.mxu0 0.0
        %3970 = vmatpush1.msra.mxu0 0.0
        %3971 = vmatprep.subr.mxu0 0.0
        %3972 = vmatpush1.msra.mxu0 0.0
        %3973 = vmatprep.subr.mxu0 0.0
        %3974 = vmatpush1.msra.mxu0 0.0
        %3975 = vmatprep.subr.mxu0 0.0
        %3976 = vmatpush1.msra.mxu0 0.0
        %3977 = vmatprep.subr.mxu0 0.0
        %3978 = vmatpush1.msra.mxu0 0.0
        %3979 = vmatprep.subr.mxu0 0.0
        %3980 = vmatpush1.msra.mxu0 0.0
        %3981 = vmatprep.subr.mxu0 0.0
        %3982 = vmatpush1.msra.mxu0 0.0
        %3983 = vmatprep.subr.mxu0 0.0
        %3984 = vmatpush1.msra.mxu0 0.0
        %3985 = vmatprep.subr.mxu0 0.0
        %3986 = vmatpush1.msra.mxu0 0.0
        %3987 = vmatprep.subr.mxu0 0.0
        %3988 = vmatpush1.msra.mxu0 0.0
        %3989 = vmatprep.mubr.f32.mxu0 0.0
        %3990 = vmatmul.mubr.f32.gmra.mrb[0].mxu0 %v3772
        %v3991 = vpop.f32.mrb[0].mxu0
        %v3992 = vadd.f32 %v1806, %v3991
        %v3993 = vpop.f32.mrb[0].mxu0
        %3994 = vdwg.mxu0
        %3995 = vmatprep.subr.mxu0 0.0
        %3996 = vmatpush1.msra.mxu0 %v791
        %3997 = vmatprep.subr.mxu0 0.0
        %3998 = vmatpush1.msra.mxu0 %v792
        %3999 = vmatprep.subr.mxu0 0.0
        %4000 = vmatpush1.msra.mxu0 %v793
        %4001 = vmatprep.subr.mxu0 0.0
        %4002 = vmatpush1.msra.mxu0 %v794
        %4003 = vmatprep.subr.mxu0 0.0
        %4004 = vmatpush1.msra.mxu0 0.0
        %4005 = vmatprep.subr.mxu0 0.0
        %4006 = vmatpush1.msra.mxu0 0.0
        %4007 = vmatprep.subr.mxu0 0.0
        %4008 = vmatpush1.msra.mxu0 0.0
        %4009 = vmatprep.subr.mxu0 0.0
        %4010 = vmatpush1.msra.mxu0 0.0
        %4011 = vmatprep.subr.mxu0 0.0
        %4012 = vmatpush1.msra.mxu0 0.0
        %4013 = vmatprep.subr.mxu0 0.0
        %4014 = vmatpush1.msra.mxu0 0.0
        %4015 = vmatprep.subr.mxu0 0.0
        %4016 = vmatpush1.msra.mxu0 0.0
        %4017 = vmatprep.subr.mxu0 0.0
        %4018 = vmatpush1.msra.mxu0 0.0
        %4019 = vmatprep.subr.mxu0 0.0
        %4020 = vmatpush1.msra.mxu0 0.0
        %4021 = vmatprep.subr.mxu0 0.0
        %4022 = vmatpush1.msra.mxu0 0.0
        %4023 = vmatprep.subr.mxu0 0.0
        %4024 = vmatpush1.msra.mxu0 0.0
        %4025 = vmatprep.subr.mxu0 0.0
        %4026 = vmatpush1.msra.mxu0 0.0
        %4027 = vmatprep.subr.mxu0 0.0
        %4028 = vmatpush1.msra.mxu0 0.0
        %4029 = vmatprep.subr.mxu0 0.0
        %4030 = vmatpush1.msra.mxu0 0.0
        %4031 = vmatprep.subr.mxu0 0.0
        %4032 = vmatpush1.msra.mxu0 0.0
        %4033 = vmatprep.subr.mxu0 0.0
        %4034 = vmatpush1.msra.mxu0 0.0
        %4035 = vmatprep.subr.mxu0 0.0
        %4036 = vmatpush1.msra.mxu0 0.0
        %4037 = vmatprep.subr.mxu0 0.0
        %4038 = vmatpush1.msra.mxu0 0.0
        %4039 = vmatprep.subr.mxu0 0.0
        %4040 = vmatpush1.msra.mxu0 0.0
        %4041 = vmatprep.subr.mxu0 0.0
        %4042 = vmatpush1.msra.mxu0 0.0
        %4043 = vmatprep.subr.mxu0 0.0
        %4044 = vmatpush1.msra.mxu0 0.0
        %4045 = vmatprep.subr.mxu0 0.0
        %4046 = vmatpush1.msra.mxu0 0.0
        %4047 = vmatprep.subr.mxu0 0.0
        %4048 = vmatpush1.msra.mxu0 0.0
        %4049 = vmatprep.subr.mxu0 0.0
        %4050 = vmatpush1.msra.mxu0 0.0
        %4051 = vmatprep.subr.mxu0 0.0
        %4052 = vmatpush1.msra.mxu0 0.0
        %4053 = vmatprep.subr.mxu0 0.0
        %4054 = vmatpush1.msra.mxu0 0.0
        %4055 = vmatprep.subr.mxu0 0.0
        %4056 = vmatpush1.msra.mxu0 0.0
        %4057 = vmatprep.subr.mxu0 0.0
        %4058 = vmatpush1.msra.mxu0 0.0
        %4059 = vmatprep.mubr.f32.mxu0 0.0
        %4060 = vmatmul.mubr.f32.gmra.mrb[0].mxu0 %v3845
        %v4061 = vpop.f32.mrb[0].mxu0
        %v4062 = vadd.f32 0.0, %v4061
        %v4063 = vpop.f32.mrb[0].mxu0
        %4064 = vdwg.mxu0
        %v4065 = vadd.f32 %v3992, %v4062
        %v4066 = vadd.f32 %v4065, %v1951
        %v4067 = vxor.u32 %v4066, 2147483648
        %v4068 = vmul.f32 %v4067, 1.442695
        %v4069 = vpow.pop %v4068
        %v4070 = vadd.f32 %v4069, 1.0
        %v4071 = vrcp.pop %v4070
        %v4072 = vmul.f32 1.0, %v4071
        %4073 = vmatprep.subr.mxu0 0.0
        %4074 = vmatpush1.msra.mxu0 %v783
        %4075 = vmatprep.subr.mxu0 0.0
        %4076 = vmatpush1.msra.mxu0 %v784
        %4077 = vmatprep.subr.mxu0 0.0
        %4078 = vmatpush1.msra.mxu0 %v785
        %4079 = vmatprep.subr.mxu0 0.0
        %4080 = vmatpush1.msra.mxu0 %v786
        %4081 = vmatprep.subr.mxu0 0.0
        %4082 = vmatpush1.msra.mxu0 0.0
        %4083 = vmatprep.subr.mxu0 0.0
        %4084 = vmatpush1.msra.mxu0 0.0
        %4085 = vmatprep.subr.mxu0 0.0
        %4086 = vmatpush1.msra.mxu0 0.0
        %4087 = vmatprep.subr.mxu0 0.0
        %4088 = vmatpush1.msra.mxu0 0.0
        %4089 = vmatprep.subr.mxu0 0.0
        %4090 = vmatpush1.msra.mxu0 0.0
        %4091 = vmatprep.subr.mxu0 0.0
        %4092 = vmatpush1.msra.mxu0 0.0
        %4093 = vmatprep.subr.mxu0 0.0
        %4094 = vmatpush1.msra.mxu0 0.0
        %4095 = vmatprep.subr.mxu0 0.0
        %4096 = vmatpush1.msra.mxu0 0.0
        %4097 = vmatprep.subr.mxu0 0.0
        %4098 = vmatpush1.msra.mxu0 0.0
        %4099 = vmatprep.subr.mxu0 0.0
        %4100 = vmatpush1.msra.mxu0 0.0
        %4101 = vmatprep.subr.mxu0 0.0
        %4102 = vmatpush1.msra.mxu0 0.0
        %4103 = vmatprep.subr.mxu0 0.0
        %4104 = vmatpush1.msra.mxu0 0.0
        %4105 = vmatprep.subr.mxu0 0.0
        %4106 = vmatpush1.msra.mxu0 0.0
        %4107 = vmatprep.subr.mxu0 0.0
        %4108 = vmatpush1.msra.mxu0 0.0
        %4109 = vmatprep.subr.mxu0 0.0
        %4110 = vmatpush1.msra.mxu0 0.0
        %4111 = vmatprep.subr.mxu0 0.0
        %4112 = vmatpush1.msra.mxu0 0.0
        %4113 = vmatprep.subr.mxu0 0.0
        %4114 = vmatpush1.msra.mxu0 0.0
        %4115 = vmatprep.subr.mxu0 0.0
        %4116 = vmatpush1.msra.mxu0 0.0
        %4117 = vmatprep.subr.mxu0 0.0
        %4118 = vmatpush1.msra.mxu0 0.0
        %4119 = vmatprep.subr.mxu0 0.0
        %4120 = vmatpush1.msra.mxu0 0.0
        %4121 = vmatprep.subr.mxu0 0.0
        %4122 = vmatpush1.msra.mxu0 0.0
        %4123 = vmatprep.subr.mxu0 0.0
        %4124 = vmatpush1.msra.mxu0 0.0
        %4125 = vmatprep.subr.mxu0 0.0
        %4126 = vmatpush1.msra.mxu0 0.0
        %4127 = vmatprep.subr.mxu0 0.0
        %4128 = vmatpush1.msra.mxu0 0.0
        %4129 = vmatprep.subr.mxu0 0.0
        %4130 = vmatpush1.msra.mxu0 0.0
        %4131 = vmatprep.subr.mxu0 0.0
        %4132 = vmatpush1.msra.mxu0 0.0
        %4133 = vmatprep.subr.mxu0 0.0
        %4134 = vmatpush1.msra.mxu0 0.0
        %4135 = vmatprep.subr.mxu0 0.0
        %4136 = vmatpush1.msra.mxu0 0.0
        %4137 = vmatprep.mubr.f32.mxu0 0.0
        %4138 = vmatmul.mubr.f32.gmra.mrb[0].mxu0 %v3772
        %v4139 = vpop.f32.mrb[0].mxu0
        %v4140 = vadd.f32 %v1962, %v4139
        %v4141 = vpop.f32.mrb[0].mxu0
        %4142 = vdwg.mxu0
        %4143 = vmatprep.subr.mxu0 0.0
        %4144 = vmatpush1.msra.mxu0 %v795
        %4145 = vmatprep.subr.mxu0 0.0
        %4146 = vmatpush1.msra.mxu0 %v796
        %4147 = vmatprep.subr.mxu0 0.0
        %4148 = vmatpush1.msra.mxu0 %v797
        %4149 = vmatprep.subr.mxu0 0.0
        %4150 = vmatpush1.msra.mxu0 %v798
        %4151 = vmatprep.subr.mxu0 0.0
        %4152 = vmatpush1.msra.mxu0 0.0
        %4153 = vmatprep.subr.mxu0 0.0
        %4154 = vmatpush1.msra.mxu0 0.0
        %4155 = vmatprep.subr.mxu0 0.0
        %4156 = vmatpush1.msra.mxu0 0.0
        %4157 = vmatprep.subr.mxu0 0.0
        %4158 = vmatpush1.msra.mxu0 0.0
        %4159 = vmatprep.subr.mxu0 0.0
        %4160 = vmatpush1.msra.mxu0 0.0
        %4161 = vmatprep.subr.mxu0 0.0
        %4162 = vmatpush1.msra.mxu0 0.0
        %4163 = vmatprep.subr.mxu0 0.0
        %4164 = vmatpush1.msra.mxu0 0.0
        %4165 = vmatprep.subr.mxu0 0.0
        %4166 = vmatpush1.msra.mxu0 0.0
        %4167 = vmatprep.subr.mxu0 0.0
        %4168 = vmatpush1.msra.mxu0 0.0
        %4169 = vmatprep.subr.mxu0 0.0
        %4170 = vmatpush1.msra.mxu0 0.0
        %4171 = vmatprep.subr.mxu0 0.0
        %4172 = vmatpush1.msra.mxu0 0.0
        %4173 = vmatprep.subr.mxu0 0.0
        %4174 = vmatpush1.msra.mxu0 0.0
        %4175 = vmatprep.subr.mxu0 0.0
        %4176 = vmatpush1.msra.mxu0 0.0
        %4177 = vmatprep.subr.mxu0 0.0
        %4178 = vmatpush1.msra.mxu0 0.0
        %4179 = vmatprep.subr.mxu0 0.0
        %4180 = vmatpush1.msra.mxu0 0.0
        %4181 = vmatprep.subr.mxu0 0.0
        %4182 = vmatpush1.msra.mxu0 0.0
        %4183 = vmatprep.subr.mxu0 0.0
        %4184 = vmatpush1.msra.mxu0 0.0
        %4185 = vmatprep.subr.mxu0 0.0
        %4186 = vmatpush1.msra.mxu0 0.0
        %4187 = vmatprep.subr.mxu0 0.0
        %4188 = vmatpush1.msra.mxu0 0.0
        %4189 = vmatprep.subr.mxu0 0.0
        %4190 = vmatpush1.msra.mxu0 0.0
        %4191 = vmatprep.subr.mxu0 0.0
        %4192 = vmatpush1.msra.mxu0 0.0
        %4193 = vmatprep.subr.mxu0 0.0
        %4194 = vmatpush1.msra.mxu0 0.0
        %4195 = vmatprep.subr.mxu0 0.0
        %4196 = vmatpush1.msra.mxu0 0.0
        %4197 = vmatprep.subr.mxu0 0.0
        %4198 = vmatpush1.msra.mxu0 0.0
        %4199 = vmatprep.subr.mxu0 0.0
        %4200 = vmatpush1.msra.mxu0 0.0
        %4201 = vmatprep.subr.mxu0 0.0
        %4202 = vmatpush1.msra.mxu0 0.0
        %4203 = vmatprep.subr.mxu0 0.0
        %4204 = vmatpush1.msra.mxu0 0.0
        %4205 = vmatprep.subr.mxu0 0.0
        %4206 = vmatpush1.msra.mxu0 0.0
        %4207 = vmatprep.mubr.f32.mxu0 0.0
        %4208 = vmatmul.mubr.f32.gmra.mrb[0].mxu0 %v3845
        %v4209 = vpop.f32.mrb[0].mxu0
        %v4210 = vadd.f32 %v2036, %v4209
        %v4211 = vpop.f32.mrb[0].mxu0
        %4212 = vdwg.mxu0
        %v4213 = vmul.f32 %v3924, %v4210
        %v4214 = vadd.f32 %v4140, %v4213
        %v4215 = vtanh.pop %v4214
        %v4216 = vsub.f32 1.0, %v4072
        %v4217 = vmul.f32 %v4216, %v4215
        %v4218 = vmul.f32 %v4072, %v3336
        %v4219 = vadd.f32 %v4217, %v4218
        %v4220 = vsel %vm815, %v4219, 0.0
        %4221 = vadd.xlane.f32.xlu0 %v4220
        %v4222 = vpop.xlane.xlu0 %4221
        %v4223 = vmul.f32 %v4222, %v828
        %v4224 = vsub.f32 %v4219, %v4223
        %v4225 = vmul.f32 %v4224, %v4224
        %v4226 = vsel %vm815, %v4225, 0.0
        %4227 = vadd.xlane.f32.xlu0 %v4226
        %v4228 = vpop.xlane.xlu0 %4227
        %v4229 = vmul.f32 %v4228, %v828
        %v4230 = vadd.f32 %v4229, 1e-05
        %v4231 = vrsqrt.pop %v4230
        %v4232 = vmul.f32 %v4224, %v4231
        %v4233 = vmul.f32 %v4232, %v2130
        %v4234 = vadd.f32 %v4233, %v2135
        %v4236 = vsel %vm815, %v4234, 0
        %4238 = vmatprep.subr.mxu0 0.0
        %4239 = vmatpush1.msra.mxu0 %v755
        %4240 = vmatprep.subr.mxu0 0.0
        %4241 = vmatpush1.msra.mxu0 %v756
        %4242 = vmatprep.subr.mxu0 0.0
        %4243 = vmatpush1.msra.mxu0 %v757
        %4244 = vmatprep.subr.mxu0 0.0
        %4245 = vmatpush1.msra.mxu0 %v758
        %4246 = vmatprep.subr.mxu0 0.0
        %4247 = vmatpush1.msra.mxu0 0.0
        %4248 = vmatprep.subr.mxu0 0.0
        %4249 = vmatpush1.msra.mxu0 0.0
        %4250 = vmatprep.subr.mxu0 0.0
        %4251 = vmatpush1.msra.mxu0 0.0
        %4252 = vmatprep.subr.mxu0 0.0
        %4253 = vmatpush1.msra.mxu0 0.0
        %4254 = vmatprep.subr.mxu0 0.0
        %4255 = vmatpush1.msra.mxu0 0.0
        %4256 = vmatprep.subr.mxu0 0.0
        %4257 = vmatpush1.msra.mxu0 0.0
        %4258 = vmatprep.subr.mxu0 0.0
        %4259 = vmatpush1.msra.mxu0 0.0
        %4260 = vmatprep.subr.mxu0 0.0
        %4261 = vmatpush1.msra.mxu0 0.0
        %4262 = vmatprep.subr.mxu0 0.0
        %4263 = vmatpush1.msra.mxu0 0.0
        %4264 = vmatprep.subr.mxu0 0.0
        %4265 = vmatpush1.msra.mxu0 0.0
        %4266 = vmatprep.subr.mxu0 0.0
        %4267 = vmatpush1.msra.mxu0 0.0
        %4268 = vmatprep.subr.mxu0 0.0
        %4269 = vmatpush1.msra.mxu0 0.0
        %4270 = vmatprep.subr.mxu0 0.0
        %4271 = vmatpush1.msra.mxu0 0.0
        %4272 = vmatprep.subr.mxu0 0.0
        %4273 = vmatpush1.msra.mxu0 0.0
        %4274 = vmatprep.subr.mxu0 0.0
        %4275 = vmatpush1.msra.mxu0 0.0
        %4276 = vmatprep.subr.mxu0 0.0
        %4277 = vmatpush1.msra.mxu0 0.0
        %4278 = vmatprep.subr.mxu0 0.0
        %4279 = vmatpush1.msra.mxu0 0.0
        %4280 = vmatprep.subr.mxu0 0.0
        %4281 = vmatpush1.msra.mxu0 0.0
        %4282 = vmatprep.subr.mxu0 0.0
        %4283 = vmatpush1.msra.mxu0 0.0
        %4284 = vmatprep.subr.mxu0 0.0
        %4285 = vmatpush1.msra.mxu0 0.0
        %4286 = vmatprep.subr.mxu0 0.0
        %4287 = vmatpush1.msra.mxu0 0.0
        %4288 = vmatprep.subr.mxu0 0.0
        %4289 = vmatpush1.msra.mxu0 0.0
        %4290 = vmatprep.subr.mxu0 0.0
        %4291 = vmatpush1.msra.mxu0 0.0
        %4292 = vmatprep.subr.mxu0 0.0
        %4293 = vmatpush1.msra.mxu0 0.0
        %4294 = vmatprep.subr.mxu0 0.0
        %4295 = vmatpush1.msra.mxu0 0.0
        %4296 = vmatprep.subr.mxu0 0.0
        %4297 = vmatpush1.msra.mxu0 0.0
        %4298 = vmatprep.subr.mxu0 0.0
        %4299 = vmatpush1.msra.mxu0 0.0
        %4300 = vmatprep.subr.mxu0 0.0
        %4301 = vmatpush1.msra.mxu0 0.0
        %4302 = vmatprep.mubr.f32.mxu0 0.0
        %4303 = vmatmul.mubr.f32.gmra.mrb[0].mxu0 %v4236
        %v4304 = vpop.f32.mrb[0].mxu0
        %v4305 = vadd.f32 %v2141, %v4304
        %v4306 = vpop.f32.mrb[0].mxu0
        %4307 = vdwg.mxu0
        %v4308 = vmax.f32 %v4305, 0.0
        %4309 = vmatprep.subr.mxu0 0.0
        %4310 = vmatpush1.msra.mxu0 %v759
        %4311 = vmatprep.subr.mxu0 0.0
        %4312 = vmatpush1.msra.mxu0 %v760
        %4313 = vmatprep.subr.mxu0 0.0
        %4314 = vmatpush1.msra.mxu0 %v761
        %4315 = vmatprep.subr.mxu0 0.0
        %4316 = vmatpush1.msra.mxu0 %v762
        %4317 = vmatprep.subr.mxu0 0.0
        %4318 = vmatpush1.msra.mxu0 %v763
        %4319 = vmatprep.subr.mxu0 0.0
        %4320 = vmatpush1.msra.mxu0 %v764
        %4321 = vmatprep.subr.mxu0 0.0
        %4322 = vmatpush1.msra.mxu0 %v765
        %4323 = vmatprep.subr.mxu0 0.0
        %4324 = vmatpush1.msra.mxu0 %v766
        %4325 = vmatprep.subr.mxu0 0.0
        %4326 = vmatpush1.msra.mxu0 %v767
        %4327 = vmatprep.subr.mxu0 0.0
        %4328 = vmatpush1.msra.mxu0 %v768
        %4329 = vmatprep.subr.mxu0 0.0
        %4330 = vmatpush1.msra.mxu0 %v769
        %4331 = vmatprep.subr.mxu0 0.0
        %4332 = vmatpush1.msra.mxu0 %v770
        %4333 = vmatprep.subr.mxu0 0.0
        %4334 = vmatpush1.msra.mxu0 %v771
        %4335 = vmatprep.subr.mxu0 0.0
        %4336 = vmatpush1.msra.mxu0 %v772
        %4337 = vmatprep.subr.mxu0 0.0
        %4338 = vmatpush1.msra.mxu0 %v773
        %4339 = vmatprep.subr.mxu0 0.0
        %4340 = vmatpush1.msra.mxu0 %v774
        %4341 = vmatprep.subr.mxu0 0.0
        %4342 = vmatpush1.msra.mxu0 0.0
        %4343 = vmatprep.subr.mxu0 0.0
        %4344 = vmatpush1.msra.mxu0 0.0
        %4345 = vmatprep.subr.mxu0 0.0
        %4346 = vmatpush1.msra.mxu0 0.0
        %4347 = vmatprep.subr.mxu0 0.0
        %4348 = vmatpush1.msra.mxu0 0.0
        %4349 = vmatprep.subr.mxu0 0.0
        %4350 = vmatpush1.msra.mxu0 0.0
        %4351 = vmatprep.subr.mxu0 0.0
        %4352 = vmatpush1.msra.mxu0 0.0
        %4353 = vmatprep.subr.mxu0 0.0
        %4354 = vmatpush1.msra.mxu0 0.0
        %4355 = vmatprep.subr.mxu0 0.0
        %4356 = vmatpush1.msra.mxu0 0.0
        %4357 = vmatprep.subr.mxu0 0.0
        %4358 = vmatpush1.msra.mxu0 0.0
        %4359 = vmatprep.subr.mxu0 0.0
        %4360 = vmatpush1.msra.mxu0 0.0
        %4361 = vmatprep.subr.mxu0 0.0
        %4362 = vmatpush1.msra.mxu0 0.0
        %4363 = vmatprep.subr.mxu0 0.0
        %4364 = vmatpush1.msra.mxu0 0.0
        %4365 = vmatprep.subr.mxu0 0.0
        %4366 = vmatpush1.msra.mxu0 0.0
        %4367 = vmatprep.subr.mxu0 0.0
        %4368 = vmatpush1.msra.mxu0 0.0
        %4369 = vmatprep.subr.mxu0 0.0
        %4370 = vmatpush1.msra.mxu0 0.0
        %4371 = vmatprep.subr.mxu0 0.0
        %4372 = vmatpush1.msra.mxu0 0.0
        %4373 = vmatprep.mubr.f32.mxu0 0.0
        %4374 = vmatmul.mubr.f32.gmra.mrb[0].mxu0 %v4308
        %v4375 = vpop.f32.mrb[0].mxu0
        %v4376 = vadd.f32 0.0, %v4375
        %v4377 = vpop.f32.mrb[0].mxu0
        %4378 = vdwg.mxu0
        %v4379 = vadd.f32 %v4219, %v4376
        %v4380 = vadd.f32 %v4379, %v2291
        %v4382 = vcombine.high %v4380, %v4380
        %vm4384 = vcmask 253952
        %4385 = vst.msk [vmem:[%s718] sm:$0x1] %vm4384, %v4380
        %4386 = vst.msk [vmem:[%s718 + $0x1] sm:$0x1] %vm4384, %v4382
        %v4387 = vlaneseq
        %v4388 = vshrl.u32 %v4387, 7
        %v4389 = vsub.s32 1, %v4388
        %v4390 = vrot.slane %v4380, %v4389
        %v4391 = vlaneseq
        %v4392 = vshrl.u32 %v4391, 7
        %v4393 = vsub.s32 1, %v4392
        %v4394 = vrot.slane %v4382, %v4393
        %4395 = vrot.lane.b32.xlu0 %v4390, 32
        %v4396 = vpop.permute.xlu0 %4395
        %4397 = vrot.lane.b32.xlu0 %v4394, 32
        %v4398 = vpop.permute.xlu0 %4397
        %vm4401 = vcmask 517377
        %4402 = vst.msk [vmem:[%s718 - $0x1] sm:$0x2] %vm4401, %v4396
        %4403 = vst.msk [vmem:[%s718] sm:$0x2] %vm4401, %v4398
        %v4404 = vlaneseq
        %v4405 = vshrl.u32 %v4404, 7
        %v4406 = vsub.s32 2, %v4405
        %v4407 = vrot.slane %v4380, %v4406
        %v4408 = vlaneseq
        %v4409 = vshrl.u32 %v4408, 7
        %v4410 = vsub.s32 2, %v4409
        %v4411 = vrot.slane %v4382, %v4410
        %4412 = vrot.lane.b32.xlu0 %v4407, 64
        %v4413 = vpop.permute.xlu0 %4412
        %4414 = vrot.lane.b32.xlu0 %v4411, 64
        %v4415 = vpop.permute.xlu0 %4414
        %vm4418 = vcmask 780802
        %4419 = vst.msk [vmem:[%s718 - $0x2] sm:$0x4] %vm4418, %v4413
        %4420 = vst.msk [vmem:[%s718 - $0x1] sm:$0x4] %vm4418, %v4415
        %v4421 = vlaneseq
        %v4422 = vshrl.u32 %v4421, 7
        %v4423 = vsub.s32 3, %v4422
        %v4424 = vrot.slane %v4380, %v4423
        %v4425 = vlaneseq
        %v4426 = vshrl.u32 %v4425, 7
        %v4427 = vsub.s32 3, %v4426
        %v4428 = vrot.slane %v4382, %v4427
        %4429 = vrot.lane.b32.xlu0 %v4424, 96
        %v4430 = vpop.permute.xlu0 %4429
        %4431 = vrot.lane.b32.xlu0 %v4428, 96
        %v4432 = vpop.permute.xlu0 %4431
        %vm4435 = vcmask 1044227
        %4436 = vst.msk [vmem:[%s718 - $0x3] sm:$0x8] %vm4435, %v4430
        %4437 = vst.msk [vmem:[%s718 - $0x2] sm:$0x8] %vm4435, %v4432
        %s4438 = sand.u32 %s397, 1
        %s4439 = scalar_lea.sflag [#allocation4], %s4438
        %s4440 = sand.u32 %s397, 1
        %s4441 = smul.addr %s4440, 2
        %s4442 = scalar_lea.vmem [#allocation20], %s4441
        // Predicated region
        $region129: #{tpu_custom_call.1} parent=83 // pred_check
          %p4443 = pneg %p407
        $region130: #{tpu_custom_call.1} parent=83 // pred_check_branch
          %4445 = sbr.rel (%p4443) target = $region132
        $region131: #{tpu_custom_call.1} parent=83 // pred_region
          %s4446 = smul.u32 2, %s38
          %s4448 = ssub.s32 32, 32
          %4449 = vsyncadd %s4439, %s4448
          %s4450 = smul.addr %s4446, 16
          %s4451 = scalar_lea.hbm %s16, %s4450
          %s4452 = sshll.u32 %s4442, 4
          %s4453 = int_to_ptr.vmem [resolvable:$true] %s4452
          %4458 = dma.vmem_to_hbm [thread:$0]  %s4453, 32, %s4451, %s4439, 16, 16, 1
        $region132: #{tpu_custom_call.1} parent=83 // pred_fallthru
          _
      $region84: #{tpu_custom_call.1} parent=5 // pred_fallthru
        _
      %p4459 = scmp.le.s32.totalorder 2, %s33
      // Predicated region
      $region133: #{tpu_custom_call.1} parent=5 // pred_check
        %p4460 = pneg %p4459
      $region134: #{tpu_custom_call.1} parent=5 // pred_check_branch
        %4462 = sbr.rel (%p4460) target = $region136
      $region135: #{tpu_custom_call.1} parent=5 // pred_region
        %s4463 = ssub.s32 %s33, 2
        // Predicated region
        $region137: #{tpu_custom_call.1} parent=135 // pred_check
          %p4464 = pneg %p413
        $region138: #{tpu_custom_call.1} parent=135 // pred_check_branch
          %4466 = sbr.rel (%p4464) target = $region140
        $region139: #{tpu_custom_call.1} parent=135 // pred_region
          %s4467 = sand.u32 %s398, 1
          %s4468 = scalar_lea.sflag [#allocation4], %s4467
          %s4469 = sand.u32 %s398, 1
          %s4470 = smul.addr %s4469, 2
          %s4471 = scalar_lea.vmem [#allocation20], %s4470
          %4472 = dma.done %s4468, 32
        $region140: #{tpu_custom_call.1} parent=135 // pred_fallthru
          _
      $region136: #{tpu_custom_call.1} parent=5 // pred_fallthru
        _
    $region6: #{tpu_custom_call.1} parent=1 // loop_footer
      %s37 = sadd.s32 1, %s33
    $region7: #{tpu_custom_call.1} parent=1 // loop_footer_branch
      %32 = sbr.rel target = $region3
    $region8: #{tpu_custom_call.1} parent=1 // loop_exit
      _
    %4473 = vsyncpa [#allocation3], 1
    %s4474 = scalar_lea.sflag [#allocation3], 1
    %4475 = vsyncpa %s4474, 1
    %4476 = vsyncpa [#allocation6], 1
    %4477 = vsyncpa [#allocation9], 1
    %4478 = vsyncpa [#allocation12], 1
    %4479 = vsyncpa [#allocation15], 1
    %4480 = vsyncpa [#allocation18], 1
    %4481 = vsyncpa [#allocation4], 1
    %s4482 = scalar_lea.sflag [#allocation4], 1
    %4483 = vsyncpa %s4482, 1

</llo_original>
